<compile_context>
chip_gen: v7x
topology: tpu7x:2x2x1
jax: 0.10.0
libtpu: 0.0.40
codegen_flags: <defaults>
</compile_context>

<pallas_src>
import functools

import jax
import jax.numpy as jnp
import numpy as np
from jax.experimental import pallas as pl
from jax.experimental.pallas import tpu as pltpu

EPS = 1e-5  # BatchNorm2d default eps


def down_kernel(x_ref, w1_ref, w2_ref, wr_ref, o_ref, col_ref, *, use_proj):
    N, H2, _, Wp, Cin = x_ref.shape          # x: (N, 2*Hp, 2, Wp, Cin)
    Hp = H2 // 2
    M, Cout = o_ref.shape                    # M = N * Hp * Wp

    # ---------------- MaxPool2d(2): 2x2 window, stride 2, floor ----------------
    xv = x_ref[...]                                               # (N, 2Hp, 2, Wp, Cin)
    pooled = jnp.max(xv, axis=2)                                  # max over W pairs
    pooled = jnp.max(pooled.reshape(N, Hp, 2, Wp, Cin), axis=2)   # max over H pairs
    # pooled: (N, Hp, Wp, Cin) f32

    def conv3x3(a, w_ref):
        """Conv2d(C, Cout, 3, padding=1); bias omitted (dead under train-mode BN).

        Builds the (N, Hp, Wp, 9C) im2col slab in the shared scratch with one
        block store per tap plus 1-wide zero strips for the pad=1 halo, then
        runs ONE MXU matmul against the pre-packed (9C, Cout) bf16 weights
        with f32 accumulation.
        """
        C = a.shape[-1]
        for di in range(3):
            for dj in range(3):
                k = di * 3 + dj
                oi, oj = di - 1, dj - 1
                i0, i1 = max(0, -oi), Hp - max(0, oi)
                j0, j1 = max(0, -oj), Wp - max(0, oj)
                # Zero only the 1-wide halo strips of this tap's lane block.
                if oi == -1:
                    col_ref[:, 0:1, :, k * C:(k + 1) * C] = jnp.zeros(
                        (N, 1, Wp, C), jnp.float32)
                if oi == 1:
                    col_ref[:, Hp - 1:Hp, :, k * C:(k + 1) * C] = jnp.zeros(
                        (N, 1, Wp, C), jnp.float32)
                if oj == -1:
                    col_ref[:, :, 0:1, k * C:(k + 1) * C] = jnp.zeros(
                        (N, Hp, 1, C), jnp.float32)
                if oj == 1:
                    col_ref[:, :, Wp - 1:Wp, k * C:(k + 1) * C] = jnp.zeros(
                        (N, Hp, 1, C), jnp.float32)
                col_ref[:, i0:i1, j0:j1, k * C:(k + 1) * C] = (
                    a[:, i0 + oi:i1 + oi, j0 + oj:j1 + oj, :])
        # NOTE: at production channel counts (C a multiple of 128) every tap
        # lands on an aligned lane block and the slab would be kept in bf16.
        col = col_ref[:, :, :, :9 * C].reshape(M, 9 * C).astype(jnp.bfloat16)
        return jnp.dot(col, w_ref[...], preferred_element_type=jnp.float32)

    def batchnorm(y):
        """Training-mode BatchNorm2d: one-pass biased batch stats, gamma=1, beta=0."""
        mean = jnp.mean(y, axis=0, keepdims=True)
        var = jnp.mean(y * y, axis=0, keepdims=True) - mean * mean
        return (y - mean) * jax.lax.rsqrt(var + EPS)

    # (conv => BN => ReLU) * 2
    y1 = jnp.maximum(batchnorm(conv3x3(pooled, w1_ref)), 0.0)                  # (M, Cout)
    y2 = jnp.maximum(batchnorm(conv3x3(y1.reshape(N, Hp, Wp, Cout), w2_ref)), 0.0)

    # Residual branch of double_conv.
    if use_proj:   # Cin != Cout: 1x1 conv (no bias) + BN
        res = batchnorm(jnp.dot(pooled.reshape(M, Cin).astype(jnp.bfloat16),
                                wr_ref[...], preferred_element_type=jnp.float32))
    else:          # Cin == Cout: identity residual
        res = pooled.reshape(M, Cin)

    o_ref[...] = (y2 + res).astype(o_ref.dtype)    # matmul-native (M, Cout) store


def down_forward(x_nchw, params):
    """down.forward. x_nchw: (N, Cin, H, W) f32 -> (N, Cout, H//2, W//2) f32."""
    N, Cin, H, W = x_nchw.shape
    Hp, Wp = H // 2, W // 2
    Cout = params["w1"].shape[0]
    use_proj = (Cin != Cout)

    # MaxPool2d floor mode (drop any trailing odd row/col) + a SINGLE fused
    # relayout NCHW -> (N, 2Hp, 2, Wp, Cin): W is split into (Wp, pair) so the
    # kernel's 2x2 pool reduces only over small leading axes.
    x_split = (x_nchw[:, :, :2 * Hp, :2 * Wp]
               .reshape(N, Cin, 2 * Hp, Wp, 2)
               .transpose(0, 2, 4, 3, 1))

    # Pre-packed bf16 weights: OIHW -> (kh*kw*Cin, Cout); row (kh*3+kw)*Cin+ci
    # matches the kernel's im2col column order.  Conv biases are NOT passed:
    # training-mode BN (gamma=1, beta=0) cancels them exactly.
    w1k = jnp.transpose(params["w1"], (2, 3, 1, 0)).reshape(9 * Cin, Cout).astype(jnp.bfloat16)
    w2k = jnp.transpose(params["w2"], (2, 3, 1, 0)).reshape(9 * Cout, Cout).astype(jnp.bfloat16)
    if use_proj:
        wrk = jnp.transpose(params["wr"][:, :, 0, 0], (1, 0)).astype(jnp.bfloat16)
    else:
        wrk = jnp.zeros((Cin, Cout), jnp.bfloat16)   # unused

    M = N * Hp * Wp
    out2d = pl.pallas_call(
        functools.partial(down_kernel, use_proj=use_proj),
        out_shape=jax.ShapeDtypeStruct((M, Cout), jnp.float32),
        in_specs=[pl.BlockSpec(memory_space=pltpu.MemorySpace.VMEM)] * 4,
        out_specs=pl.BlockSpec(memory_space=pltpu.MemorySpace.VMEM),
        scratch_shapes=[
            # One shared im2col slab serves both 3x3 convs (never full-zeroed).
            pltpu.VMEM((N, Hp, Wp, 9 * max(Cin, Cout)), jnp.float32),
        ],
        compiler_params=pltpu.CompilerParams(vmem_limit_bytes=32 * 1024 * 1024),
    )(x_split, w1k, w2k, wrk)

    # Back to the module's NCHW output layout.
    return jnp.transpose(out2d.reshape(N, Hp, Wp, Cout), (0, 3, 1, 2))


def down_reference(x_nchw, params):
    """Pure-JAX (XLA) reference used only to validate the Pallas kernel."""
    N, Cin, H, W = x_nchw.shape
    xp = jax.lax.reduce_window(x_nchw[:, :, :(H // 2) * 2, :(W // 2) * 2],
                               -jnp.inf, jax.lax.max,
                               (1, 1, 2, 2), (1, 1, 2, 2), "VALID")

    def conv(x, w, b, pad):
        y = jax.lax.conv_general_dilated(
            x, w, window_strides=(1, 1), padding=((pad, pad), (pad, pad)),
            dimension_numbers=("NCHW", "OIHW", "NCHW"),
            precision=jax.lax.Precision.HIGHEST)
        return y if b is None else y + b[None, :, None, None]

    def bn(y):
        mean = jnp.mean(y, axis=(0, 2, 3), keepdims=True)
        var = jnp.mean(jnp.square(y - mean), axis=(0, 2, 3), keepdims=True)
        return (y - mean) * jax.lax.rsqrt(var + EPS)

    y = jnp.maximum(bn(conv(xp, params["w1"], params["b1"], 1)), 0.0)
    y = jnp.maximum(bn(conv(y, params["w2"], params["b2"], 1)), 0.0)
    res = bn(conv(xp, params["wr"], None, 0)) if Cin != params["w1"].shape[0] else xp
    return y + res


if __name__ == "__main__":
    N, Cin, Cout, H, W = 2, 4, 8, 16, 16
    key = jax.random.PRNGKey(0)
    ks = jax.random.split(key, 6)

    def kaiming(k, shape):               # shape = (out, in, kh, kw), fan_in mode
        fan_in = shape[1] * shape[2] * shape[3]
        return jax.random.normal(k, shape, jnp.float32) * float(np.sqrt(2.0 / fan_in))

    params = {
        "w1": kaiming(ks[0], (Cout, Cin, 3, 3)),
        "b1": 0.1 * jax.random.normal(ks[1], (Cout,), jnp.float32),   # dead under BN
        "w2": kaiming(ks[2], (Cout, Cout, 3, 3)),
        "b2": 0.1 * jax.random.normal(ks[3], (Cout,), jnp.float32),   # dead under BN
        "wr": kaiming(ks[4], (Cout, Cin, 1, 1)),    # channel_conv, bias=False
    }
    x = jax.random.normal(ks[5], (N, Cin, H, W), jnp.float32)

    out = jax.block_until_ready(down_forward(x, params))
    ref = jax.block_until_ready(down_reference(x, params))
    # The kernel feeds bf16 operands to the MXU (f32 accumulate) per the perf
    # review while the reference runs f32 at HIGHEST precision, and the kernel
    # drops the conv biases (exactly cancelled by training-mode BN).  Post-BN
    # activations are O(1), so this tolerance absorbs bf16-class rounding yet
    # still catches any structural error (which would be O(1)).
    np.testing.assert_allclose(np.asarray(out), np.asarray(ref),
                               rtol=1e-2, atol=2e-2)
    print("KERNEL_OK")
</pallas_src>

<mosaic_0001>
module attributes {stable_mosaic.version = 11 : i64} {
  func.func @down_kernel(%arg0: memref<2x16x2x8x4xf32, #tpu.memory_space<vmem>>, %arg1: memref<36x8xbf16, #tpu.memory_space<vmem>>, %arg2: memref<72x8xbf16, #tpu.memory_space<vmem>>, %arg3: memref<4x8xbf16, #tpu.memory_space<vmem>>, %arg4: memref<128x8xf32, #tpu.memory_space<vmem>>, %arg5: memref<2x8x8x72xf32, #tpu.memory_space<vmem>>) attributes {dimension_semantics = [], scalar_prefetch = 0 : i64, scratch_operands = 1 : i64, tpu.core_type = #tpu.core_type<tc>} {
    %c0 = arith.constant 0 : index
    %c0_0 = arith.constant 0 : index
    %c0_1 = arith.constant 0 : index
    %c0_2 = arith.constant 0 : index
    %c0_3 = arith.constant 0 : index
    %0 = vector.load %arg0[%c0, %c0_0, %c0_1, %c0_2, %c0_3] : memref<2x16x2x8x4xf32, #tpu.memory_space<vmem>>, vector<2x16x2x8x4xf32>
    %cst = arith.constant dense<0xFF800000> : vector<2x16x8x4xf32>
    %1 = vector.multi_reduction <maximumf>, %0, %cst [2] : vector<2x16x2x8x4xf32> to vector<2x16x8x4xf32>
    %2 = vector.shape_cast %1 : vector<2x16x8x4xf32> to vector<2x8x2x8x4xf32>
    %cst_4 = arith.constant dense<0xFF800000> : vector<2x8x8x4xf32>
    %3 = vector.multi_reduction <maximumf>, %2, %cst_4 [2] : vector<2x8x2x8x4xf32> to vector<2x8x8x4xf32>
    %cst_5 = arith.constant 0.000000e+00 : f32
    %4 = vector.broadcast %cst_5 : f32 to vector<2x1x8x4xf32>
    %c0_6 = arith.constant 0 : index
    %c0_7 = arith.constant 0 : index
    %c0_8 = arith.constant 0 : index
    %c0_9 = arith.constant 0 : index
    %5 = vector.load %arg5[%c0_6, %c0_7, %c0_8, %c0_9] : memref<2x8x8x72xf32, #tpu.memory_space<vmem>>, vector<2x1x8x4xf32>
    tpu.vector_store %arg5[%c0_6, %c0_7, %c0_8, %c0_9], %4 {strides = array<i32>} : memref<2x8x8x72xf32, #tpu.memory_space<vmem>>, vector<2x1x8x4xf32>,
    %cst_10 = arith.constant 0.000000e+00 : f32
    %6 = vector.broadcast %cst_10 : f32 to vector<2x8x1x4xf32>
    %c0_11 = arith.constant 0 : index
    %c0_12 = arith.constant 0 : index
    %c0_13 = arith.constant 0 : index
    %c0_14 = arith.constant 0 : index
    %7 = vector.load %arg5[%c0_11, %c0_12, %c0_13, %c0_14] : memref<2x8x8x72xf32, #tpu.memory_space<vmem>>, vector<2x8x1x4xf32>
    tpu.vector_store %arg5[%c0_11, %c0_12, %c0_13, %c0_14], %6 {strides = array<i32>} : memref<2x8x8x72xf32, #tpu.memory_space<vmem>>, vector<2x8x1x4xf32>,
    %8 = vector.extract_strided_slice %3 {offsets = [0, 0, 0, 0], sizes = [2, 7, 7, 4], strides = [1, 1, 1, 1]} : vector<2x8x8x4xf32> to vector<2x7x7x4xf32>
    %c0_15 = arith.constant 0 : index
    %c1 = arith.constant 1 : index
    %c1_16 = arith.constant 1 : index
    %c0_17 = arith.constant 0 : index
    %9 = vector.load %arg5[%c0_15, %c1, %c1_16, %c0_17] : memref<2x8x8x72xf32, #tpu.memory_space<vmem>>, vector<2x7x7x4xf32>
    tpu.vector_store %arg5[%c0_15, %c1, %c1_16, %c0_17], %8 {strides = array<i32>} : memref<2x8x8x72xf32, #tpu.memory_space<vmem>>, vector<2x7x7x4xf32>,
    %cst_18 = arith.constant 0.000000e+00 : f32
    %10 = vector.broadcast %cst_18 : f32 to vector<2x1x8x4xf32>
    %c0_19 = arith.constant 0 : index
    %c0_20 = arith.constant 0 : index
    %c0_21 = arith.constant 0 : index
    %c4 = arith.constant 4 : index
    %11 = vector.load %arg5[%c0_19, %c0_20, %c0_21, %c4] : memref<2x8x8x72xf32, #tpu.memory_space<vmem>>, vector<2x1x8x4xf32>
    tpu.vector_store %arg5[%c0_19, %c0_20, %c0_21, %c4], %10 {strides = array<i32>} : memref<2x8x8x72xf32, #tpu.memory_space<vmem>>, vector<2x1x8x4xf32>,
    %12 = vector.extract_strided_slice %3 {offsets = [0, 0, 0, 0], sizes = [2, 7, 8, 4], strides = [1, 1, 1, 1]} : vector<2x8x8x4xf32> to vector<2x7x8x4xf32>
    %c0_22 = arith.constant 0 : index
    %c1_23 = arith.constant 1 : index
    %c0_24 = arith.constant 0 : index
    %c4_25 = arith.constant 4 : index
    %13 = vector.load %arg5[%c0_22, %c1_23, %c0_24, %c4_25] : memref<2x8x8x72xf32, #tpu.memory_space<vmem>>, vector<2x7x8x4xf32>
    tpu.vector_store %arg5[%c0_22, %c1_23, %c0_24, %c4_25], %12 {strides = array<i32>} : memref<2x8x8x72xf32, #tpu.memory_space<vmem>>, vector<2x7x8x4xf32>,
    %cst_26 = arith.constant 0.000000e+00 : f32
    %14 = vector.broadcast %cst_26 : f32 to vector<2x1x8x4xf32>
    %c0_27 = arith.constant 0 : index
    %c0_28 = arith.constant 0 : index
    %c0_29 = arith.constant 0 : index
    %c8 = arith.constant 8 : index
    %15 = vector.load %arg5[%c0_27, %c0_28, %c0_29, %c8] : memref<2x8x8x72xf32, #tpu.memory_space<vmem>>, vector<2x1x8x4xf32>
    tpu.vector_store %arg5[%c0_27, %c0_28, %c0_29, %c8], %14 {strides = array<i32>} : memref<2x8x8x72xf32, #tpu.memory_space<vmem>>, vector<2x1x8x4xf32>,
    %cst_30 = arith.constant 0.000000e+00 : f32
    %16 = vector.broadcast %cst_30 : f32 to vector<2x8x1x4xf32>
    %c0_31 = arith.constant 0 : index
    %c0_32 = arith.constant 0 : index
    %c7 = arith.constant 7 : index
    %c8_33 = arith.constant 8 : index
    %17 = vector.load %arg5[%c0_31, %c0_32, %c7, %c8_33] : memref<2x8x8x72xf32, #tpu.memory_space<vmem>>, vector<2x8x1x4xf32>
    tpu.vector_store %arg5[%c0_31, %c0_32, %c7, %c8_33], %16 {strides = array<i32>} : memref<2x8x8x72xf32, #tpu.memory_space<vmem>>, vector<2x8x1x4xf32>,
    %18 = vector.extract_strided_slice %3 {offsets = [0, 0, 1, 0], sizes = [2, 7, 7, 4], strides = [1, 1, 1, 1]} : vector<2x8x8x4xf32> to vector<2x7x7x4xf32>
    %c0_34 = arith.constant 0 : index
    %c1_35 = arith.constant 1 : index
    %c0_36 = arith.constant 0 : index
    %c8_37 = arith.constant 8 : index
    %19 = vector.load %arg5[%c0_34, %c1_35, %c0_36, %c8_37] : memref<2x8x8x72xf32, #tpu.memory_space<vmem>>, vector<2x7x7x4xf32>
    tpu.vector_store %arg5[%c0_34, %c1_35, %c0_36, %c8_37], %18 {strides = array<i32>} : memref<2x8x8x72xf32, #tpu.memory_space<vmem>>, vector<2x7x7x4xf32>,
    %cst_38 = arith.constant 0.000000e+00 : f32
    %20 = vector.broadcast %cst_38 : f32 to vector<2x8x1x4xf32>
    %c0_39 = arith.constant 0 : index
    %c0_40 = arith.constant 0 : index
    %c0_41 = arith.constant 0 : index
    %c12 = arith.constant 12 : index
    %21 = vector.load %arg5[%c0_39, %c0_40, %c0_41, %c12] : memref<2x8x8x72xf32, #tpu.memory_space<vmem>>, vector<2x8x1x4xf32>
    tpu.vector_store %arg5[%c0_39, %c0_40, %c0_41, %c12], %20 {strides = array<i32>} : memref<2x8x8x72xf32, #tpu.memory_space<vmem>>, vector<2x8x1x4xf32>,
    %22 = vector.extract_strided_slice %3 {offsets = [0, 0, 0, 0], sizes = [2, 8, 7, 4], strides = [1, 1, 1, 1]} : vector<2x8x8x4xf32> to vector<2x8x7x4xf32>
    %c0_42 = arith.constant 0 : index
    %c0_43 = arith.constant 0 : index
    %c1_44 = arith.constant 1 : index
    %c12_45 = arith.constant 12 : index
    %23 = vector.load %arg5[%c0_42, %c0_43, %c1_44, %c12_45] : memref<2x8x8x72xf32, #tpu.memory_space<vmem>>, vector<2x8x7x4xf32>
    tpu.vector_store %arg5[%c0_42, %c0_43, %c1_44, %c12_45], %22 {strides = array<i32>} : memref<2x8x8x72xf32, #tpu.memory_space<vmem>>, vector<2x8x7x4xf32>,
    %c0_46 = arith.constant 0 : index
    %c0_47 = arith.constant 0 : index
    %c0_48 = arith.constant 0 : index
    %c16 = arith.constant 16 : index
    %24 = vector.load %arg5[%c0_46, %c0_47, %c0_48, %c16] : memref<2x8x8x72xf32, #tpu.memory_space<vmem>>, vector<2x8x8x4xf32>
    tpu.vector_store %arg5[%c0_46, %c0_47, %c0_48, %c16], %3 {strides = array<i32>} : memref<2x8x8x72xf32, #tpu.memory_space<vmem>>, vector<2x8x8x4xf32>,
    %cst_49 = arith.constant 0.000000e+00 : f32
    %25 = vector.broadcast %cst_49 : f32 to vector<2x8x1x4xf32>
    %c0_50 = arith.constant 0 : index
    %c0_51 = arith.constant 0 : index
    %c7_52 = arith.constant 7 : index
    %c20 = arith.constant 20 : index
    %26 = vector.load %arg5[%c0_50, %c0_51, %c7_52, %c20] : memref<2x8x8x72xf32, #tpu.memory_space<vmem>>, vector<2x8x1x4xf32>
    tpu.vector_store %arg5[%c0_50, %c0_51, %c7_52, %c20], %25 {strides = array<i32>} : memref<2x8x8x72xf32, #tpu.memory_space<vmem>>, vector<2x8x1x4xf32>,
    %27 = vector.extract_strided_slice %3 {offsets = [0, 0, 1, 0], sizes = [2, 8, 7, 4], strides = [1, 1, 1, 1]} : vector<2x8x8x4xf32> to vector<2x8x7x4xf32>
    %c0_53 = arith.constant 0 : index
    %c0_54 = arith.constant 0 : index
    %c0_55 = arith.constant 0 : index
    %c20_56 = arith.constant 20 : index
    %28 = vector.load %arg5[%c0_53, %c0_54, %c0_55, %c20_56] : memref<2x8x8x72xf32, #tpu.memory_space<vmem>>, vector<2x8x7x4xf32>
    tpu.vector_store %arg5[%c0_53, %c0_54, %c0_55, %c20_56], %27 {strides = array<i32>} : memref<2x8x8x72xf32, #tpu.memory_space<vmem>>, vector<2x8x7x4xf32>,
    %cst_57 = arith.constant 0.000000e+00 : f32
    %29 = vector.broadcast %cst_57 : f32 to vector<2x1x8x4xf32>
    %c0_58 = arith.constant 0 : index
    %c7_59 = arith.constant 7 : index
    %c0_60 = arith.constant 0 : index
    %c24 = arith.constant 24 : index
    %30 = vector.load %arg5[%c0_58, %c7_59, %c0_60, %c24] : memref<2x8x8x72xf32, #tpu.memory_space<vmem>>, vector<2x1x8x4xf32>
    tpu.vector_store %arg5[%c0_58, %c7_59, %c0_60, %c24], %29 {strides = array<i32>} : memref<2x8x8x72xf32, #tpu.memory_space<vmem>>, vector<2x1x8x4xf32>,
    %cst_61 = arith.constant 0.000000e+00 : f32
    %31 = vector.broadcast %cst_61 : f32 to vector<2x8x1x4xf32>
    %c0_62 = arith.constant 0 : index
    %c0_63 = arith.constant 0 : index
    %c0_64 = arith.constant 0 : index
    %c24_65 = arith.constant 24 : index
    %32 = vector.load %arg5[%c0_62, %c0_63, %c0_64, %c24_65] : memref<2x8x8x72xf32, #tpu.memory_space<vmem>>, vector<2x8x1x4xf32>
    tpu.vector_store %arg5[%c0_62, %c0_63, %c0_64, %c24_65], %31 {strides = array<i32>} : memref<2x8x8x72xf32, #tpu.memory_space<vmem>>, vector<2x8x1x4xf32>,
    %33 = vector.extract_strided_slice %3 {offsets = [0, 1, 0, 0], sizes = [2, 7, 7, 4], strides = [1, 1, 1, 1]} : vector<2x8x8x4xf32> to vector<2x7x7x4xf32>
    %c0_66 = arith.constant 0 : index
    %c0_67 = arith.constant 0 : index
    %c1_68 = arith.constant 1 : index
    %c24_69 = arith.constant 24 : index
    %34 = vector.load %arg5[%c0_66, %c0_67, %c1_68, %c24_69] : memref<2x8x8x72xf32, #tpu.memory_space<vmem>>, vector<2x7x7x4xf32>
    tpu.vector_store %arg5[%c0_66, %c0_67, %c1_68, %c24_69], %33 {strides = array<i32>} : memref<2x8x8x72xf32, #tpu.memory_space<vmem>>, vector<2x7x7x4xf32>,
    %cst_70 = arith.constant 0.000000e+00 : f32
    %35 = vector.broadcast %cst_70 : f32 to vector<2x1x8x4xf32>
    %c0_71 = arith.constant 0 : index
    %c7_72 = arith.constant 7 : index
    %c0_73 = arith.constant 0 : index
    %c28 = arith.constant 28 : index
    %36 = vector.load %arg5[%c0_71, %c7_72, %c0_73, %c28] : memref<2x8x8x72xf32, #tpu.memory_space<vmem>>, vector<2x1x8x4xf32>
    tpu.vector_store %arg5[%c0_71, %c7_72, %c0_73, %c28], %35 {strides = array<i32>} : memref<2x8x8x72xf32, #tpu.memory_space<vmem>>, vector<2x1x8x4xf32>,
    %37 = vector.extract_strided_slice %3 {offsets = [0, 1, 0, 0], sizes = [2, 7, 8, 4], strides = [1, 1, 1, 1]} : vector<2x8x8x4xf32> to vector<2x7x8x4xf32>
    %c0_74 = arith.constant 0 : index
    %c0_75 = arith.constant 0 : index
    %c0_76 = arith.constant 0 : index
    %c28_77 = arith.constant 28 : index
    %38 = vector.load %arg5[%c0_74, %c0_75, %c0_76, %c28_77] : memref<2x8x8x72xf32, #tpu.memory_space<vmem>>, vector<2x7x8x4xf32>
    tpu.vector_store %arg5[%c0_74, %c0_75, %c0_76, %c28_77], %37 {strides = array<i32>} : memref<2x8x8x72xf32, #tpu.memory_space<vmem>>, vector<2x7x8x4xf32>,
    %cst_78 = arith.constant 0.000000e+00 : f32
    %39 = vector.broadcast %cst_78 : f32 to vector<2x1x8x4xf32>
    %c0_79 = arith.constant 0 : index
    %c7_80 = arith.constant 7 : index
    %c0_81 = arith.constant 0 : index
    %c32 = arith.constant 32 : index
    %40 = vector.load %arg5[%c0_79, %c7_80, %c0_81, %c32] : memref<2x8x8x72xf32, #tpu.memory_space<vmem>>, vector<2x1x8x4xf32>
    tpu.vector_store %arg5[%c0_79, %c7_80, %c0_81, %c32], %39 {strides = array<i32>} : memref<2x8x8x72xf32, #tpu.memory_space<vmem>>, vector<2x1x8x4xf32>,
    %cst_82 = arith.constant 0.000000e+00 : f32
    %41 = vector.broadcast %cst_82 : f32 to vector<2x8x1x4xf32>
    %c0_83 = arith.constant 0 : index
    %c0_84 = arith.constant 0 : index
    %c7_85 = arith.constant 7 : index
    %c32_86 = arith.constant 32 : index
    %42 = vector.load %arg5[%c0_83, %c0_84, %c7_85, %c32_86] : memref<2x8x8x72xf32, #tpu.memory_space<vmem>>, vector<2x8x1x4xf32>
    tpu.vector_store %arg5[%c0_83, %c0_84, %c7_85, %c32_86], %41 {strides = array<i32>} : memref<2x8x8x72xf32, #tpu.memory_space<vmem>>, vector<2x8x1x4xf32>,
    %43 = vector.extract_strided_slice %3 {offsets = [0, 1, 1, 0], sizes = [2, 7, 7, 4], strides = [1, 1, 1, 1]} : vector<2x8x8x4xf32> to vector<2x7x7x4xf32>
    %c0_87 = arith.constant 0 : index
    %c0_88 = arith.constant 0 : index
    %c0_89 = arith.constant 0 : index
    %c32_90 = arith.constant 32 : index
    %44 = vector.load %arg5[%c0_87, %c0_88, %c0_89, %c32_90] : memref<2x8x8x72xf32, #tpu.memory_space<vmem>>, vector<2x7x7x4xf32>
    tpu.vector_store %arg5[%c0_87, %c0_88, %c0_89, %c32_90], %43 {strides = array<i32>} : memref<2x8x8x72xf32, #tpu.memory_space<vmem>>, vector<2x7x7x4xf32>,
    %c0_91 = arith.constant 0 : index
    %c0_92 = arith.constant 0 : index
    %c0_93 = arith.constant 0 : index
    %c0_94 = arith.constant 0 : index
    %45 = vector.load %arg5[%c0_91, %c0_92, %c0_93, %c0_94] : memref<2x8x8x72xf32, #tpu.memory_space<vmem>>, vector<2x8x8x36xf32>
    %46 = vector.shape_cast %45 : vector<2x8x8x36xf32> to vector<128x36xf32>
    %47 = arith.truncf %46 : vector<128x36xf32> to vector<128x36xbf16>
    %c0_95 = arith.constant 0 : index
    %c0_96 = arith.constant 0 : index
    %48 = vector.load %arg1[%c0_95, %c0_96] : memref<36x8xbf16, #tpu.memory_space<vmem>>, vector<36x8xbf16>
    %cst_97 = arith.constant dense<0.000000e+00> : vector<128x8xf32>
    %49 = tpu.matmul %47, %48, %cst_97 {dimension_numbers = #tpu.dot_dimension_numbers<[1], [0], [0], [1], [0, 0, 1, 1], [], []>} : vector<128x36xbf16>, vector<36x8xbf16>, vector<128x8xf32> -> vector<128x8xf32>
    %cst_98 = arith.constant dense<0.000000e+00> : vector<8xf32>
    %50 = vector.multi_reduction <add>, %49, %cst_98 [0] : vector<128x8xf32> to vector<8xf32>
    %51 = vector.shape_cast %50 : vector<8xf32> to vector<1x8xf32>
    %cst_99 = arith.constant 1.280000e+02 : f32
    %52 = vector.broadcast %cst_99 : f32 to vector<1x8xf32>
    %53 = arith.divf %51, %52 : vector<1x8xf32>
    %54 = arith.mulf %49, %49 : vector<128x8xf32>
    %cst_100 = arith.constant dense<0.000000e+00> : vector<8xf32>
    %55 = vector.multi_reduction <add>, %54, %cst_100 [0] : vector<128x8xf32> to vector<8xf32>
    %56 = vector.shape_cast %55 : vector<8xf32> to vector<1x8xf32>
    %cst_101 = arith.constant 1.280000e+02 : f32
    %57 = vector.broadcast %cst_101 : f32 to vector<1x8xf32>
    %58 = arith.divf %56, %57 : vector<1x8xf32>
    %59 = arith.mulf %53, %53 : vector<1x8xf32>
    %60 = arith.subf %58, %59 : vector<1x8xf32>
    %61 = vector.broadcast %53 : vector<1x8xf32> to vector<128x8xf32>
    %62 = arith.subf %49, %61 : vector<128x8xf32>
    %cst_102 = arith.constant 9.99999974E-6 : f32
    %63 = vector.broadcast %cst_102 : f32 to vector<1x8xf32>
    %64 = arith.addf %60, %63 : vector<1x8xf32>
    %65 = math.rsqrt %64 : vector<1x8xf32>
    %66 = vector.broadcast %65 : vector<1x8xf32> to vector<128x8xf32>
    %67 = arith.mulf %62, %66 : vector<128x8xf32>
    %cst_103 = arith.constant 0.000000e+00 : f32
    %68 = vector.broadcast %cst_103 : f32 to vector<128x8xf32>
    %69 = arith.maximumf %67, %68 : vector<128x8xf32>
    %70 = vector.shape_cast %69 : vector<128x8xf32> to vector<2x8x8x8xf32>
    %cst_104 = arith.constant 0.000000e+00 : f32
    %71 = vector.broadcast %cst_104 : f32 to vector<2x1x8x8xf32>
    %c0_105 = arith.constant 0 : index
    %c0_106 = arith.constant 0 : index
    %c0_107 = arith.constant 0 : index
    %c0_108 = arith.constant 0 : index
    %72 = vector.load %arg5[%c0_105, %c0_106, %c0_107, %c0_108] : memref<2x8x8x72xf32, #tpu.memory_space<vmem>>, vector<2x1x8x8xf32>
    tpu.vector_store %arg5[%c0_105, %c0_106, %c0_107, %c0_108], %71 {strides = array<i32>} : memref<2x8x8x72xf32, #tpu.memory_space<vmem>>, vector<2x1x8x8xf32>,
    %cst_109 = arith.constant 0.000000e+00 : f32
    %73 = vector.broadcast %cst_109 : f32 to vector<2x8x1x8xf32>
    %c0_110 = arith.constant 0 : index
    %c0_111 = arith.constant 0 : index
    %c0_112 = arith.constant 0 : index
    %c0_113 = arith.constant 0 : index
    %74 = vector.load %arg5[%c0_110, %c0_111, %c0_112, %c0_113] : memref<2x8x8x72xf32, #tpu.memory_space<vmem>>, vector<2x8x1x8xf32>
    tpu.vector_store %arg5[%c0_110, %c0_111, %c0_112, %c0_113], %73 {strides = array<i32>} : memref<2x8x8x72xf32, #tpu.memory_space<vmem>>, vector<2x8x1x8xf32>,
    %75 = vector.extract_strided_slice %70 {offsets = [0, 0, 0, 0], sizes = [2, 7, 7, 8], strides = [1, 1, 1, 1]} : vector<2x8x8x8xf32> to vector<2x7x7x8xf32>
    %c0_114 = arith.constant 0 : index
    %c1_115 = arith.constant 1 : index
    %c1_116 = arith.constant 1 : index
    %c0_117 = arith.constant 0 : index
    %76 = vector.load %arg5[%c0_114, %c1_115, %c1_116, %c0_117] : memref<2x8x8x72xf32, #tpu.memory_space<vmem>>, vector<2x7x7x8xf32>
    tpu.vector_store %arg5[%c0_114, %c1_115, %c1_116, %c0_117], %75 {strides = array<i32>} : memref<2x8x8x72xf32, #tpu.memory_space<vmem>>, vector<2x7x7x8xf32>,
    %cst_118 = arith.constant 0.000000e+00 : f32
    %77 = vector.broadcast %cst_118 : f32 to vector<2x1x8x8xf32>
    %c0_119 = arith.constant 0 : index
    %c0_120 = arith.constant 0 : index
    %c0_121 = arith.constant 0 : index
    %c8_122 = arith.constant 8 : index
    %78 = vector.load %arg5[%c0_119, %c0_120, %c0_121, %c8_122] : memref<2x8x8x72xf32, #tpu.memory_space<vmem>>, vector<2x1x8x8xf32>
    tpu.vector_store %arg5[%c0_119, %c0_120, %c0_121, %c8_122], %77 {strides = array<i32>} : memref<2x8x8x72xf32, #tpu.memory_space<vmem>>, vector<2x1x8x8xf32>,
    %79 = vector.extract_strided_slice %70 {offsets = [0, 0, 0, 0], sizes = [2, 7, 8, 8], strides = [1, 1, 1, 1]} : vector<2x8x8x8xf32> to vector<2x7x8x8xf32>
    %c0_123 = arith.constant 0 : index
    %c1_124 = arith.constant 1 : index
    %c0_125 = arith.constant 0 : index
    %c8_126 = arith.constant 8 : index
    %80 = vector.load %arg5[%c0_123, %c1_124, %c0_125, %c8_126] : memref<2x8x8x72xf32, #tpu.memory_space<vmem>>, vector<2x7x8x8xf32>
    tpu.vector_store %arg5[%c0_123, %c1_124, %c0_125, %c8_126], %79 {strides = array<i32>} : memref<2x8x8x72xf32, #tpu.memory_space<vmem>>, vector<2x7x8x8xf32>,
    %cst_127 = arith.constant 0.000000e+00 : f32
    %81 = vector.broadcast %cst_127 : f32 to vector<2x1x8x8xf32>
    %c0_128 = arith.constant 0 : index
    %c0_129 = arith.constant 0 : index
    %c0_130 = arith.constant 0 : index
    %c16_131 = arith.constant 16 : index
    %82 = vector.load %arg5[%c0_128, %c0_129, %c0_130, %c16_131] : memref<2x8x8x72xf32, #tpu.memory_space<vmem>>, vector<2x1x8x8xf32>
    tpu.vector_store %arg5[%c0_128, %c0_129, %c0_130, %c16_131], %81 {strides = array<i32>} : memref<2x8x8x72xf32, #tpu.memory_space<vmem>>, vector<2x1x8x8xf32>,
    %cst_132 = arith.constant 0.000000e+00 : f32
    %83 = vector.broadcast %cst_132 : f32 to vector<2x8x1x8xf32>
    %c0_133 = arith.constant 0 : index
    %c0_134 = arith.constant 0 : index
    %c7_135 = arith.constant 7 : index
    %c16_136 = arith.constant 16 : index
    %84 = vector.load %arg5[%c0_133, %c0_134, %c7_135, %c16_136] : memref<2x8x8x72xf32, #tpu.memory_space<vmem>>, vector<2x8x1x8xf32>
    tpu.vector_store %arg5[%c0_133, %c0_134, %c7_135, %c16_136], %83 {strides = array<i32>} : memref<2x8x8x72xf32, #tpu.memory_space<vmem>>, vector<2x8x1x8xf32>,
    %85 = vector.extract_strided_slice %70 {offsets = [0, 0, 1, 0], sizes = [2, 7, 7, 8], strides = [1, 1, 1, 1]} : vector<2x8x8x8xf32> to vector<2x7x7x8xf32>
    %c0_137 = arith.constant 0 : index
    %c1_138 = arith.constant 1 : index
    %c0_139 = arith.constant 0 : index
    %c16_140 = arith.constant 16 : index
    %86 = vector.load %arg5[%c0_137, %c1_138, %c0_139, %c16_140] : memref<2x8x8x72xf32, #tpu.memory_space<vmem>>, vector<2x7x7x8xf32>
    tpu.vector_store %arg5[%c0_137, %c1_138, %c0_139, %c16_140], %85 {strides = array<i32>} : memref<2x8x8x72xf32, #tpu.memory_space<vmem>>, vector<2x7x7x8xf32>,
    %cst_141 = arith.constant 0.000000e+00 : f32
    %87 = vector.broadcast %cst_141 : f32 to vector<2x8x1x8xf32>
    %c0_142 = arith.constant 0 : index
    %c0_143 = arith.constant 0 : index
    %c0_144 = arith.constant 0 : index
    %c24_145 = arith.constant 24 : index
    %88 = vector.load %arg5[%c0_142, %c0_143, %c0_144, %c24_145] : memref<2x8x8x72xf32, #tpu.memory_space<vmem>>, vector<2x8x1x8xf32>
    tpu.vector_store %arg5[%c0_142, %c0_143, %c0_144, %c24_145], %87 {strides = array<i32>} : memref<2x8x8x72xf32, #tpu.memory_space<vmem>>, vector<2x8x1x8xf32>,
    %89 = vector.extract_strided_slice %70 {offsets = [0, 0, 0, 0], sizes = [2, 8, 7, 8], strides = [1, 1, 1, 1]} : vector<2x8x8x8xf32> to vector<2x8x7x8xf32>
    %c0_146 = arith.constant 0 : index
    %c0_147 = arith.constant 0 : index
    %c1_148 = arith.constant 1 : index
    %c24_149 = arith.constant 24 : index
    %90 = vector.load %arg5[%c0_146, %c0_147, %c1_148, %c24_149] : memref<2x8x8x72xf32, #tpu.memory_space<vmem>>, vector<2x8x7x8xf32>
    tpu.vector_store %arg5[%c0_146, %c0_147, %c1_148, %c24_149], %89 {strides = array<i32>} : memref<2x8x8x72xf32, #tpu.memory_space<vmem>>, vector<2x8x7x8xf32>,
    %c0_150 = arith.constant 0 : index
    %c0_151 = arith.constant 0 : index
    %c0_152 = arith.constant 0 : index
    %c32_153 = arith.constant 32 : index
    %91 = vector.load %arg5[%c0_150, %c0_151, %c0_152, %c32_153] : memref<2x8x8x72xf32, #tpu.memory_space<vmem>>, vector<2x8x8x8xf32>
    tpu.vector_store %arg5[%c0_150, %c0_151, %c0_152, %c32_153], %70 {strides = array<i32>} : memref<2x8x8x72xf32, #tpu.memory_space<vmem>>, vector<2x8x8x8xf32>,
    %cst_154 = arith.constant 0.000000e+00 : f32
    %92 = vector.broadcast %cst_154 : f32 to vector<2x8x1x8xf32>
    %c0_155 = arith.constant 0 : index
    %c0_156 = arith.constant 0 : index
    %c7_157 = arith.constant 7 : index
    %c40 = arith.constant 40 : index
    %93 = vector.load %arg5[%c0_155, %c0_156, %c7_157, %c40] : memref<2x8x8x72xf32, #tpu.memory_space<vmem>>, vector<2x8x1x8xf32>
    tpu.vector_store %arg5[%c0_155, %c0_156, %c7_157, %c40], %92 {strides = array<i32>} : memref<2x8x8x72xf32, #tpu.memory_space<vmem>>, vector<2x8x1x8xf32>,
    %94 = vector.extract_strided_slice %70 {offsets = [0, 0, 1, 0], sizes = [2, 8, 7, 8], strides = [1, 1, 1, 1]} : vector<2x8x8x8xf32> to vector<2x8x7x8xf32>
    %c0_158 = arith.constant 0 : index
    %c0_159 = arith.constant 0 : index
    %c0_160 = arith.constant 0 : index
    %c40_161 = arith.constant 40 : index
    %95 = vector.load %arg5[%c0_158, %c0_159, %c0_160, %c40_161] : memref<2x8x8x72xf32, #tpu.memory_space<vmem>>, vector<2x8x7x8xf32>
    tpu.vector_store %arg5[%c0_158, %c0_159, %c0_160, %c40_161], %94 {strides = array<i32>} : memref<2x8x8x72xf32, #tpu.memory_space<vmem>>, vector<2x8x7x8xf32>,
    %cst_162 = arith.constant 0.000000e+00 : f32
    %96 = vector.broadcast %cst_162 : f32 to vector<2x1x8x8xf32>
    %c0_163 = arith.constant 0 : index
    %c7_164 = arith.constant 7 : index
    %c0_165 = arith.constant 0 : index
    %c48 = arith.constant 48 : index
    %97 = vector.load %arg5[%c0_163, %c7_164, %c0_165, %c48] : memref<2x8x8x72xf32, #tpu.memory_space<vmem>>, vector<2x1x8x8xf32>
    tpu.vector_store %arg5[%c0_163, %c7_164, %c0_165, %c48], %96 {strides = array<i32>} : memref<2x8x8x72xf32, #tpu.memory_space<vmem>>, vector<2x1x8x8xf32>,
    %cst_166 = arith.constant 0.000000e+00 : f32
    %98 = vector.broadcast %cst_166 : f32 to vector<2x8x1x8xf32>
    %c0_167 = arith.constant 0 : index
    %c0_168 = arith.constant 0 : index
    %c0_169 = arith.constant 0 : index
    %c48_170 = arith.constant 48 : index
    %99 = vector.load %arg5[%c0_167, %c0_168, %c0_169, %c48_170] : memref<2x8x8x72xf32, #tpu.memory_space<vmem>>, vector<2x8x1x8xf32>
    tpu.vector_store %arg5[%c0_167, %c0_168, %c0_169, %c48_170], %98 {strides = array<i32>} : memref<2x8x8x72xf32, #tpu.memory_space<vmem>>, vector<2x8x1x8xf32>,
    %100 = vector.extract_strided_slice %70 {offsets = [0, 1, 0, 0], sizes = [2, 7, 7, 8], strides = [1, 1, 1, 1]} : vector<2x8x8x8xf32> to vector<2x7x7x8xf32>
    %c0_171 = arith.constant 0 : index
    %c0_172 = arith.constant 0 : index
    %c1_173 = arith.constant 1 : index
    %c48_174 = arith.constant 48 : index
    %101 = vector.load %arg5[%c0_171, %c0_172, %c1_173, %c48_174] : memref<2x8x8x72xf32, #tpu.memory_space<vmem>>, vector<2x7x7x8xf32>
    tpu.vector_store %arg5[%c0_171, %c0_172, %c1_173, %c48_174], %100 {strides = array<i32>} : memref<2x8x8x72xf32, #tpu.memory_space<vmem>>, vector<2x7x7x8xf32>,
    %cst_175 = arith.constant 0.000000e+00 : f32
    %102 = vector.broadcast %cst_175 : f32 to vector<2x1x8x8xf32>
    %c0_176 = arith.constant 0 : index
    %c7_177 = arith.constant 7 : index
    %c0_178 = arith.constant 0 : index
    %c56 = arith.constant 56 : index
    %103 = vector.load %arg5[%c0_176, %c7_177, %c0_178, %c56] : memref<2x8x8x72xf32, #tpu.memory_space<vmem>>, vector<2x1x8x8xf32>
    tpu.vector_store %arg5[%c0_176, %c7_177, %c0_178, %c56], %102 {strides = array<i32>} : memref<2x8x8x72xf32, #tpu.memory_space<vmem>>, vector<2x1x8x8xf32>,
    %104 = vector.extract_strided_slice %70 {offsets = [0, 1, 0, 0], sizes = [2, 7, 8, 8], strides = [1, 1, 1, 1]} : vector<2x8x8x8xf32> to vector<2x7x8x8xf32>
    %c0_179 = arith.constant 0 : index
    %c0_180 = arith.constant 0 : index
    %c0_181 = arith.constant 0 : index
    %c56_182 = arith.constant 56 : index
    %105 = vector.load %arg5[%c0_179, %c0_180, %c0_181, %c56_182] : memref<2x8x8x72xf32, #tpu.memory_space<vmem>>, vector<2x7x8x8xf32>
    tpu.vector_store %arg5[%c0_179, %c0_180, %c0_181, %c56_182], %104 {strides = array<i32>} : memref<2x8x8x72xf32, #tpu.memory_space<vmem>>, vector<2x7x8x8xf32>,
    %cst_183 = arith.constant 0.000000e+00 : f32
    %106 = vector.broadcast %cst_183 : f32 to vector<2x1x8x8xf32>
    %c0_184 = arith.constant 0 : index
    %c7_185 = arith.constant 7 : index
    %c0_186 = arith.constant 0 : index
    %c64 = arith.constant 64 : index
    %107 = vector.load %arg5[%c0_184, %c7_185, %c0_186, %c64] : memref<2x8x8x72xf32, #tpu.memory_space<vmem>>, vector<2x1x8x8xf32>
    tpu.vector_store %arg5[%c0_184, %c7_185, %c0_186, %c64], %106 {strides = array<i32>} : memref<2x8x8x72xf32, #tpu.memory_space<vmem>>, vector<2x1x8x8xf32>,
    %cst_187 = arith.constant 0.000000e+00 : f32
    %108 = vector.broadcast %cst_187 : f32 to vector<2x8x1x8xf32>
    %c0_188 = arith.constant 0 : index
    %c0_189 = arith.constant 0 : index
    %c7_190 = arith.constant 7 : index
    %c64_191 = arith.constant 64 : index
    %109 = vector.load %arg5[%c0_188, %c0_189, %c7_190, %c64_191] : memref<2x8x8x72xf32, #tpu.memory_space<vmem>>, vector<2x8x1x8xf32>
    tpu.vector_store %arg5[%c0_188, %c0_189, %c7_190, %c64_191], %108 {strides = array<i32>} : memref<2x8x8x72xf32, #tpu.memory_space<vmem>>, vector<2x8x1x8xf32>,
    %110 = vector.extract_strided_slice %70 {offsets = [0, 1, 1, 0], sizes = [2, 7, 7, 8], strides = [1, 1, 1, 1]} : vector<2x8x8x8xf32> to vector<2x7x7x8xf32>
    %c0_192 = arith.constant 0 : index
    %c0_193 = arith.constant 0 : index
    %c0_194 = arith.constant 0 : index
    %c64_195 = arith.constant 64 : index
    %111 = vector.load %arg5[%c0_192, %c0_193, %c0_194, %c64_195] : memref<2x8x8x72xf32, #tpu.memory_space<vmem>>, vector<2x7x7x8xf32>
    tpu.vector_store %arg5[%c0_192, %c0_193, %c0_194, %c64_195], %110 {strides = array<i32>} : memref<2x8x8x72xf32, #tpu.memory_space<vmem>>, vector<2x7x7x8xf32>,
    %c0_196 = arith.constant 0 : index
    %c0_197 = arith.constant 0 : index
    %c0_198 = arith.constant 0 : index
    %c0_199 = arith.constant 0 : index
    %112 = vector.load %arg5[%c0_196, %c0_197, %c0_198, %c0_199] : memref<2x8x8x72xf32, #tpu.memory_space<vmem>>, vector<2x8x8x72xf32>
    %113 = vector.shape_cast %112 : vector<2x8x8x72xf32> to vector<128x72xf32>
    %114 = arith.truncf %113 : vector<128x72xf32> to vector<128x72xbf16>
    %c0_200 = arith.constant 0 : index
    %c0_201 = arith.constant 0 : index
    %115 = vector.load %arg2[%c0_200, %c0_201] : memref<72x8xbf16, #tpu.memory_space<vmem>>, vector<72x8xbf16>
    %cst_202 = arith.constant dense<0.000000e+00> : vector<128x8xf32>
    %116 = tpu.matmul %114, %115, %cst_202 {dimension_numbers = #tpu.dot_dimension_numbers<[1], [0], [0], [1], [0, 0, 1, 1], [], []>} : vector<128x72xbf16>, vector<72x8xbf16>, vector<128x8xf32> -> vector<128x8xf32>
    %cst_203 = arith.constant dense<0.000000e+00> : vector<8xf32>
    %117 = vector.multi_reduction <add>, %116, %cst_203 [0] : vector<128x8xf32> to vector<8xf32>
    %118 = vector.shape_cast %117 : vector<8xf32> to vector<1x8xf32>
    %cst_204 = arith.constant 1.280000e+02 : f32
    %119 = vector.broadcast %cst_204 : f32 to vector<1x8xf32>
    %120 = arith.divf %118, %119 : vector<1x8xf32>
    %121 = arith.mulf %116, %116 : vector<128x8xf32>
    %cst_205 = arith.constant dense<0.000000e+00> : vector<8xf32>
    %122 = vector.multi_reduction <add>, %121, %cst_205 [0] : vector<128x8xf32> to vector<8xf32>
    %123 = vector.shape_cast %122 : vector<8xf32> to vector<1x8xf32>
    %cst_206 = arith.constant 1.280000e+02 : f32
    %124 = vector.broadcast %cst_206 : f32 to vector<1x8xf32>
    %125 = arith.divf %123, %124 : vector<1x8xf32>
    %126 = arith.mulf %120, %120 : vector<1x8xf32>
    %127 = arith.subf %125, %126 : vector<1x8xf32>
    %128 = vector.broadcast %120 : vector<1x8xf32> to vector<128x8xf32>
    %129 = arith.subf %116, %128 : vector<128x8xf32>
    %cst_207 = arith.constant 9.99999974E-6 : f32
    %130 = vector.broadcast %cst_207 : f32 to vector<1x8xf32>
    %131 = arith.addf %127, %130 : vector<1x8xf32>
    %132 = math.rsqrt %131 : vector<1x8xf32>
    %133 = vector.broadcast %132 : vector<1x8xf32> to vector<128x8xf32>
    %134 = arith.mulf %129, %133 : vector<128x8xf32>
    %cst_208 = arith.constant 0.000000e+00 : f32
    %135 = vector.broadcast %cst_208 : f32 to vector<128x8xf32>
    %136 = arith.maximumf %134, %135 : vector<128x8xf32>
    %137 = vector.shape_cast %3 : vector<2x8x8x4xf32> to vector<128x4xf32>
    %138 = arith.truncf %137 : vector<128x4xf32> to vector<128x4xbf16>
    %c0_209 = arith.constant 0 : index
    %c0_210 = arith.constant 0 : index
    %139 = vector.load %arg3[%c0_209, %c0_210] : memref<4x8xbf16, #tpu.memory_space<vmem>>, vector<4x8xbf16>
    %cst_211 = arith.constant dense<0.000000e+00> : vector<128x8xf32>
    %140 = tpu.matmul %138, %139, %cst_211 {dimension_numbers = #tpu.dot_dimension_numbers<[1], [0], [0], [1], [0, 0, 1, 1], [], []>} : vector<128x4xbf16>, vector<4x8xbf16>, vector<128x8xf32> -> vector<128x8xf32>
    %cst_212 = arith.constant dense<0.000000e+00> : vector<8xf32>
    %141 = vector.multi_reduction <add>, %140, %cst_212 [0] : vector<128x8xf32> to vector<8xf32>
    %142 = vector.shape_cast %141 : vector<8xf32> to vector<1x8xf32>
    %cst_213 = arith.constant 1.280000e+02 : f32
    %143 = vector.broadcast %cst_213 : f32 to vector<1x8xf32>
    %144 = arith.divf %142, %143 : vector<1x8xf32>
    %145 = arith.mulf %140, %140 : vector<128x8xf32>
    %cst_214 = arith.constant dense<0.000000e+00> : vector<8xf32>
    %146 = vector.multi_reduction <add>, %145, %cst_214 [0] : vector<128x8xf32> to vector<8xf32>
    %147 = vector.shape_cast %146 : vector<8xf32> to vector<1x8xf32>
    %cst_215 = arith.constant 1.280000e+02 : f32
    %148 = vector.broadcast %cst_215 : f32 to vector<1x8xf32>
    %149 = arith.divf %147, %148 : vector<1x8xf32>
    %150 = arith.mulf %144, %144 : vector<1x8xf32>
    %151 = arith.subf %149, %150 : vector<1x8xf32>
    %152 = vector.broadcast %144 : vector<1x8xf32> to vector<128x8xf32>
    %153 = arith.subf %140, %152 : vector<128x8xf32>
    %cst_216 = arith.constant 9.99999974E-6 : f32
    %154 = vector.broadcast %cst_216 : f32 to vector<1x8xf32>
    %155 = arith.addf %151, %154 : vector<1x8xf32>
    %156 = math.rsqrt %155 : vector<1x8xf32>
    %157 = vector.broadcast %156 : vector<1x8xf32> to vector<128x8xf32>
    %158 = arith.mulf %153, %157 : vector<128x8xf32>
    %159 = arith.addf %136, %158 : vector<128x8xf32>
    %c0_217 = arith.constant 0 : index
    %c0_218 = arith.constant 0 : index
    %160 = vector.load %arg4[%c0_217, %c0_218] : memref<128x8xf32, #tpu.memory_space<vmem>>, vector<128x8xf32>
    tpu.vector_store %arg4[%c0_217, %c0_218], %159 {strides = array<i32>} : memref<128x8xf32, #tpu.memory_space<vmem>>, vector<128x8xf32>,
    return
  }
}

</mosaic_0001>

<llo_original>
// kernel: tpu_custom_call.1
$region0: #{tpu_custom_call.1}
  #allocation0 [shape = 'u32[]', space=smem, size = 0x4, offset = 0x4, fixed_abs, tag = 'smem constant byte address 0x4 - core index']
  #allocation1 [shape = 'u32[144,128]{1,0:T(1,128)}', space=vmem, size = 0x12000, scoped, tag = 'internal scratch']
  #allocation2 [shape = 'f32[2,8,8,72]{3,2,1,0:T(8,128)}', space=vmem, size = 0x10000, scoped, tag = 'scratch operand']
  %s0 = inlined_call_operand.vmem [shape: f32[2,16,2,8,4], index: 0, kind: input, shape index: {}]
  %s1 = inlined_call_operand.vmem [shape: bf16[36,8], index: 1, kind: input, shape index: {}]
  %s2 = inlined_call_operand.vmem [shape: bf16[72,8], index: 2, kind: input, shape index: {}]
  %s3 = inlined_call_operand.vmem [shape: bf16[4,8], index: 3, kind: input, shape index: {}]
  %s4 = inlined_call_operand.vmem [shape: f32[128,8], index: 4, kind: output, shape index: {}]
  %s5 = sld [smem:[#allocation0]]
  $region26: #{tpu_custom_call.1} parent=0
    _
  %s7 = ssub.s32 1, %s5
  %s8 = scalar_select 0, %s7, %s5
  // Predicated region
  $region2: #{tpu_custom_call.1} parent=0 // pred_check
    _
  $region3: #{tpu_custom_call.1} parent=0 // pred_check_branch
    %10 = sbr.rel (0) target = $region5
  $region4: #{tpu_custom_call.1} parent=0 // pred_region
    _
  $region5: #{tpu_custom_call.1} parent=0 // pred_fallthru
    _
  // Predicated region
  $region6: #{tpu_custom_call.1} parent=0 // pred_check
    _
  $region7: #{tpu_custom_call.1} parent=0 // pred_check_branch
    %12 = sbr.rel (0) target = $region9
  $region8: #{tpu_custom_call.1} parent=0 // pred_region
    _
  $region9: #{tpu_custom_call.1} parent=0 // pred_fallthru
    _
  // Predicated region
  $region10: #{tpu_custom_call.1} parent=0 // pred_check
    _
  $region11: #{tpu_custom_call.1} parent=0 // pred_check_branch
    %14 = sbr.rel (0) target = $region13
  $region12: #{tpu_custom_call.1} parent=0 // pred_region
    _
  $region13: #{tpu_custom_call.1} parent=0 // pred_fallthru
    _
  // Predicated region
  $region14: #{tpu_custom_call.1} parent=0 // pred_check
    _
  $region15: #{tpu_custom_call.1} parent=0 // pred_check_branch
    %16 = sbr.rel (0) target = $region17
  $region16: #{tpu_custom_call.1} parent=0 // pred_region
    _
  $region17: #{tpu_custom_call.1} parent=0 // pred_fallthru
    _
  %v18 = vld [vmem:[%s0] sm:$0xff]
  %v19 = vld [vmem:[%s0 + $0x8] sm:$0xff]
  %v20 = vld [vmem:[%s0 + $0x10] sm:$0xff]
  %v21 = vld [vmem:[%s0 + $0x18] sm:$0xff]
  %v22 = vld [vmem:[%s0 + $0x20] sm:$0xff]
  %v23 = vld [vmem:[%s0 + $0x28] sm:$0xff]
  %v24 = vld [vmem:[%s0 + $0x30] sm:$0xff]
  %v25 = vld [vmem:[%s0 + $0x38] sm:$0xff]
  %v26 = vld [vmem:[%s0 + $0x40] sm:$0xff]
  %v27 = vld [vmem:[%s0 + $0x48] sm:$0xff]
  %v28 = vld [vmem:[%s0 + $0x50] sm:$0xff]
  %v29 = vld [vmem:[%s0 + $0x58] sm:$0xff]
  %v30 = vld [vmem:[%s0 + $0x60] sm:$0xff]
  %v31 = vld [vmem:[%s0 + $0x68] sm:$0xff]
  %v32 = vld [vmem:[%s0 + $0x70] sm:$0xff]
  %v33 = vld [vmem:[%s0 + $0x78] sm:$0xff]
  %v34 = vld [vmem:[%s0 + $0x80] sm:$0xff]
  %v35 = vld [vmem:[%s0 + $0x88] sm:$0xff]
  %v36 = vld [vmem:[%s0 + $0x90] sm:$0xff]
  %v37 = vld [vmem:[%s0 + $0x98] sm:$0xff]
  %v38 = vld [vmem:[%s0 + $0xa0] sm:$0xff]
  %v39 = vld [vmem:[%s0 + $0xa8] sm:$0xff]
  %v40 = vld [vmem:[%s0 + $0xb0] sm:$0xff]
  %v41 = vld [vmem:[%s0 + $0xb8] sm:$0xff]
  %v42 = vld [vmem:[%s0 + $0xc0] sm:$0xff]
  %v43 = vld [vmem:[%s0 + $0xc8] sm:$0xff]
  %v44 = vld [vmem:[%s0 + $0xd0] sm:$0xff]
  %v45 = vld [vmem:[%s0 + $0xd8] sm:$0xff]
  %v46 = vld [vmem:[%s0 + $0xe0] sm:$0xff]
  %v47 = vld [vmem:[%s0 + $0xe8] sm:$0xff]
  %v48 = vld [vmem:[%s0 + $0xf0] sm:$0xff]
  %v49 = vld [vmem:[%s0 + $0xf8] sm:$0xff]
  %v50 = vld [vmem:[%s0 + $0x100] sm:$0xff]
  %v51 = vld [vmem:[%s0 + $0x108] sm:$0xff]
  %v52 = vld [vmem:[%s0 + $0x110] sm:$0xff]
  %v53 = vld [vmem:[%s0 + $0x118] sm:$0xff]
  %v54 = vld [vmem:[%s0 + $0x120] sm:$0xff]
  %v55 = vld [vmem:[%s0 + $0x128] sm:$0xff]
  %v56 = vld [vmem:[%s0 + $0x130] sm:$0xff]
  %v57 = vld [vmem:[%s0 + $0x138] sm:$0xff]
  %v58 = vld [vmem:[%s0 + $0x140] sm:$0xff]
  %v59 = vld [vmem:[%s0 + $0x148] sm:$0xff]
  %v60 = vld [vmem:[%s0 + $0x150] sm:$0xff]
  %v61 = vld [vmem:[%s0 + $0x158] sm:$0xff]
  %v62 = vld [vmem:[%s0 + $0x160] sm:$0xff]
  %v63 = vld [vmem:[%s0 + $0x168] sm:$0xff]
  %v64 = vld [vmem:[%s0 + $0x170] sm:$0xff]
  %v65 = vld [vmem:[%s0 + $0x178] sm:$0xff]
  %v66 = vld [vmem:[%s0 + $0x180] sm:$0xff]
  %v67 = vld [vmem:[%s0 + $0x188] sm:$0xff]
  %v68 = vld [vmem:[%s0 + $0x190] sm:$0xff]
  %v69 = vld [vmem:[%s0 + $0x198] sm:$0xff]
  %v70 = vld [vmem:[%s0 + $0x1a0] sm:$0xff]
  %v71 = vld [vmem:[%s0 + $0x1a8] sm:$0xff]
  %v72 = vld [vmem:[%s0 + $0x1b0] sm:$0xff]
  %v73 = vld [vmem:[%s0 + $0x1b8] sm:$0xff]
  %v74 = vld [vmem:[%s0 + $0x1c0] sm:$0xff]
  %v75 = vld [vmem:[%s0 + $0x1c8] sm:$0xff]
  %v76 = vld [vmem:[%s0 + $0x1d0] sm:$0xff]
  %v77 = vld [vmem:[%s0 + $0x1d8] sm:$0xff]
  %v78 = vld [vmem:[%s0 + $0x1e0] sm:$0xff]
  %v79 = vld [vmem:[%s0 + $0x1e8] sm:$0xff]
  %v80 = vld [vmem:[%s0 + $0x1f0] sm:$0xff]
  %v81 = vld [vmem:[%s0 + $0x1f8] sm:$0xff]
  %vm82 = vcmask 31744
  %v83 = vsel %vm82, %v18, -inf
  %v84 = vsel %vm82, %v19, -inf
  %v85 = vmax.f32 %v83, %v84
  %v86 = vsel %vm82, %v20, -inf
  %v87 = vsel %vm82, %v21, -inf
  %v88 = vmax.f32 %v86, %v87
  %v89 = vsel %vm82, %v22, -inf
  %v90 = vsel %vm82, %v23, -inf
  %v91 = vmax.f32 %v89, %v90
  %v92 = vsel %vm82, %v24, -inf
  %v93 = vsel %vm82, %v25, -inf
  %v94 = vmax.f32 %v92, %v93
  %v95 = vsel %vm82, %v26, -inf
  %v96 = vsel %vm82, %v27, -inf
  %v97 = vmax.f32 %v95, %v96
  %v98 = vsel %vm82, %v28, -inf
  %v99 = vsel %vm82, %v29, -inf
  %v100 = vmax.f32 %v98, %v99
  %v101 = vsel %vm82, %v30, -inf
  %v102 = vsel %vm82, %v31, -inf
  %v103 = vmax.f32 %v101, %v102
  %v104 = vsel %vm82, %v32, -inf
  %v105 = vsel %vm82, %v33, -inf
  %v106 = vmax.f32 %v104, %v105
  %v107 = vsel %vm82, %v34, -inf
  %v108 = vsel %vm82, %v35, -inf
  %v109 = vmax.f32 %v107, %v108
  %v110 = vsel %vm82, %v36, -inf
  %v111 = vsel %vm82, %v37, -inf
  %v112 = vmax.f32 %v110, %v111
  %v113 = vsel %vm82, %v38, -inf
  %v114 = vsel %vm82, %v39, -inf
  %v115 = vmax.f32 %v113, %v114
  %v116 = vsel %vm82, %v40, -inf
  %v117 = vsel %vm82, %v41, -inf
  %v118 = vmax.f32 %v116, %v117
  %v119 = vsel %vm82, %v42, -inf
  %v120 = vsel %vm82, %v43, -inf
  %v121 = vmax.f32 %v119, %v120
  %v122 = vsel %vm82, %v44, -inf
  %v123 = vsel %vm82, %v45, -inf
  %v124 = vmax.f32 %v122, %v123
  %v125 = vsel %vm82, %v46, -inf
  %v126 = vsel %vm82, %v47, -inf
  %v127 = vmax.f32 %v125, %v126
  %v128 = vsel %vm82, %v48, -inf
  %v129 = vsel %vm82, %v49, -inf
  %v130 = vmax.f32 %v128, %v129
  %v131 = vsel %vm82, %v50, -inf
  %v132 = vsel %vm82, %v51, -inf
  %v133 = vmax.f32 %v131, %v132
  %v134 = vsel %vm82, %v52, -inf
  %v135 = vsel %vm82, %v53, -inf
  %v136 = vmax.f32 %v134, %v135
  %v137 = vsel %vm82, %v54, -inf
  %v138 = vsel %vm82, %v55, -inf
  %v139 = vmax.f32 %v137, %v138
  %v140 = vsel %vm82, %v56, -inf
  %v141 = vsel %vm82, %v57, -inf
  %v142 = vmax.f32 %v140, %v141
  %v143 = vsel %vm82, %v58, -inf
  %v144 = vsel %vm82, %v59, -inf
  %v145 = vmax.f32 %v143, %v144
  %v146 = vsel %vm82, %v60, -inf
  %v147 = vsel %vm82, %v61, -inf
  %v148 = vmax.f32 %v146, %v147
  %v149 = vsel %vm82, %v62, -inf
  %v150 = vsel %vm82, %v63, -inf
  %v151 = vmax.f32 %v149, %v150
  %v152 = vsel %vm82, %v64, -inf
  %v153 = vsel %vm82, %v65, -inf
  %v154 = vmax.f32 %v152, %v153
  %v155 = vsel %vm82, %v66, -inf
  %v156 = vsel %vm82, %v67, -inf
  %v157 = vmax.f32 %v155, %v156
  %v158 = vsel %vm82, %v68, -inf
  %v159 = vsel %vm82, %v69, -inf
  %v160 = vmax.f32 %v158, %v159
  %v161 = vsel %vm82, %v70, -inf
  %v162 = vsel %vm82, %v71, -inf
  %v163 = vmax.f32 %v161, %v162
  %v164 = vsel %vm82, %v72, -inf
  %v165 = vsel %vm82, %v73, -inf
  %v166 = vmax.f32 %v164, %v165
  %v167 = vsel %vm82, %v74, -inf
  %v168 = vsel %vm82, %v75, -inf
  %v169 = vmax.f32 %v167, %v168
  %v170 = vsel %vm82, %v76, -inf
  %v171 = vsel %vm82, %v77, -inf
  %v172 = vmax.f32 %v170, %v171
  %v173 = vsel %vm82, %v78, -inf
  %v174 = vsel %vm82, %v79, -inf
  %v175 = vmax.f32 %v173, %v174
  %v176 = vsel %vm82, %v80, -inf
  %v177 = vsel %vm82, %v81, -inf
  %v178 = vmax.f32 %v176, %v177
  %v179 = vsel %vm82, %v85, -inf
  %v180 = vsel %vm82, %v88, -inf
  %v181 = vmax.f32 %v179, %v180
  %v182 = vsel %vm82, %v91, -inf
  %v183 = vsel %vm82, %v94, -inf
  %v184 = vmax.f32 %v182, %v183
  %v185 = vsel %vm82, %v97, -inf
  %v186 = vsel %vm82, %v100, -inf
  %v187 = vmax.f32 %v185, %v186
  %v188 = vsel %vm82, %v103, -inf
  %v189 = vsel %vm82, %v106, -inf
  %v190 = vmax.f32 %v188, %v189
  %v191 = vsel %vm82, %v109, -inf
  %v192 = vsel %vm82, %v112, -inf
  %v193 = vmax.f32 %v191, %v192
  %v194 = vsel %vm82, %v115, -inf
  %v195 = vsel %vm82, %v118, -inf
  %v196 = vmax.f32 %v194, %v195
  %v197 = vsel %vm82, %v121, -inf
  %v198 = vsel %vm82, %v124, -inf
  %v199 = vmax.f32 %v197, %v198
  %v200 = vsel %vm82, %v127, -inf
  %v201 = vsel %vm82, %v130, -inf
  %v202 = vmax.f32 %v200, %v201
  %v203 = vsel %vm82, %v133, -inf
  %v204 = vsel %vm82, %v136, -inf
  %v205 = vmax.f32 %v203, %v204
  %v206 = vsel %vm82, %v139, -inf
  %v207 = vsel %vm82, %v142, -inf
  %v208 = vmax.f32 %v206, %v207
  %v209 = vsel %vm82, %v145, -inf
  %v210 = vsel %vm82, %v148, -inf
  %v211 = vmax.f32 %v209, %v210
  %v212 = vsel %vm82, %v151, -inf
  %v213 = vsel %vm82, %v154, -inf
  %v214 = vmax.f32 %v212, %v213
  %v215 = vsel %vm82, %v157, -inf
  %v216 = vsel %vm82, %v160, -inf
  %v217 = vmax.f32 %v215, %v216
  %v218 = vsel %vm82, %v163, -inf
  %v219 = vsel %vm82, %v166, -inf
  %v220 = vmax.f32 %v218, %v219
  %v221 = vsel %vm82, %v169, -inf
  %v222 = vsel %vm82, %v172, -inf
  %v223 = vmax.f32 %v221, %v222
  %v224 = vsel %vm82, %v175, -inf
  %v225 = vsel %vm82, %v178, -inf
  %v226 = vmax.f32 %v224, %v225
  %227 = vst.msk [vmem:[#allocation2] sm:$0xff] %vm82, 0.0
  %228 = vst.msk [vmem:[#allocation2 + $0x40] sm:$0xff] %vm82, 0.0
  %vm229 = vcmask 24576
  %230 = vst.msk [vmem:[#allocation2] sm:$0x1] %vm229, 0.0
  %231 = vst.msk [vmem:[#allocation2 + $0x8] sm:$0x1] %vm229, 0.0
  %232 = vst.msk [vmem:[#allocation2 + $0x10] sm:$0x1] %vm229, 0.0
  %233 = vst.msk [vmem:[#allocation2 + $0x18] sm:$0x1] %vm229, 0.0
  %234 = vst.msk [vmem:[#allocation2 + $0x20] sm:$0x1] %vm229, 0.0
  %235 = vst.msk [vmem:[#allocation2 + $0x28] sm:$0x1] %vm229, 0.0
  %236 = vst.msk [vmem:[#allocation2 + $0x30] sm:$0x1] %vm229, 0.0
  %237 = vst.msk [vmem:[#allocation2 + $0x38] sm:$0x1] %vm229, 0.0
  %238 = vst.msk [vmem:[#allocation2 + $0x40] sm:$0x1] %vm229, 0.0
  %239 = vst.msk [vmem:[#allocation2 + $0x48] sm:$0x1] %vm229, 0.0
  %240 = vst.msk [vmem:[#allocation2 + $0x50] sm:$0x1] %vm229, 0.0
  %241 = vst.msk [vmem:[#allocation2 + $0x58] sm:$0x1] %vm229, 0.0
  %242 = vst.msk [vmem:[#allocation2 + $0x60] sm:$0x1] %vm229, 0.0
  %243 = vst.msk [vmem:[#allocation2 + $0x68] sm:$0x1] %vm229, 0.0
  %244 = vst.msk [vmem:[#allocation2 + $0x70] sm:$0x1] %vm229, 0.0
  %245 = vst.msk [vmem:[#allocation2 + $0x78] sm:$0x1] %vm229, 0.0
  %s246 = scalar_lea.vmem [#allocation2], 8
  %vm247 = vcmask 30720
  %248 = vst.msk [vmem:[%s246 + $0x1] sm:$0x7f] %vm247, %v181
  %249 = vst.msk [vmem:[%s246 + $0x9] sm:$0x7f] %vm247, %v184
  %250 = vst.msk [vmem:[%s246 + $0x11] sm:$0x7f] %vm247, %v187
  %251 = vst.msk [vmem:[%s246 + $0x19] sm:$0x7f] %vm247, %v190
  %252 = vst.msk [vmem:[%s246 + $0x21] sm:$0x7f] %vm247, %v193
  %253 = vst.msk [vmem:[%s246 + $0x29] sm:$0x7f] %vm247, %v196
  %254 = vst.msk [vmem:[%s246 + $0x31] sm:$0x7f] %vm247, %v199
  %255 = vst.msk [vmem:[%s246 + $0x41] sm:$0x7f] %vm247, %v205
  %256 = vst.msk [vmem:[%s246 + $0x49] sm:$0x7f] %vm247, %v208
  %257 = vst.msk [vmem:[%s246 + $0x51] sm:$0x7f] %vm247, %v211
  %258 = vst.msk [vmem:[%s246 + $0x59] sm:$0x7f] %vm247, %v214
  %259 = vst.msk [vmem:[%s246 + $0x61] sm:$0x7f] %vm247, %v217
  %260 = vst.msk [vmem:[%s246 + $0x69] sm:$0x7f] %vm247, %v220
  %261 = vst.msk [vmem:[%s246 + $0x71] sm:$0x7f] %vm247, %v223
  %vm262 = vcmask 64544
  %263 = vst.msk [vmem:[#allocation2] sm:$0xff] %vm262, 0.0
  %264 = vst.msk [vmem:[#allocation2 + $0x40] sm:$0xff] %vm262, 0.0
  %279 = vrot.lane.b32.xlu0 %v181, 4
  %v280 = vpop.permute.xlu0 %279
  %281 = vrot.lane.b32.xlu0 %v184, 4
  %v282 = vpop.permute.xlu0 %281
  %283 = vrot.lane.b32.xlu0 %v187, 4
  %v284 = vpop.permute.xlu0 %283
  %285 = vrot.lane.b32.xlu0 %v190, 4
  %v286 = vpop.permute.xlu0 %285
  %287 = vrot.lane.b32.xlu0 %v193, 4
  %v288 = vpop.permute.xlu0 %287
  %289 = vrot.lane.b32.xlu0 %v196, 4
  %v290 = vpop.permute.xlu0 %289
  %291 = vrot.lane.b32.xlu0 %v199, 4
  %v292 = vpop.permute.xlu0 %291
  %293 = vrot.lane.b32.xlu0 %v205, 4
  %v294 = vpop.permute.xlu0 %293
  %295 = vrot.lane.b32.xlu0 %v208, 4
  %v296 = vpop.permute.xlu0 %295
  %297 = vrot.lane.b32.xlu0 %v211, 4
  %v298 = vpop.permute.xlu0 %297
  %299 = vrot.lane.b32.xlu0 %v214, 4
  %v300 = vpop.permute.xlu0 %299
  %301 = vrot.lane.b32.xlu0 %v217, 4
  %v302 = vpop.permute.xlu0 %301
  %303 = vrot.lane.b32.xlu0 %v220, 4
  %v304 = vpop.permute.xlu0 %303
  %305 = vrot.lane.b32.xlu0 %v223, 4
  %v306 = vpop.permute.xlu0 %305
  %321 = vst.msk [vmem:[%s246] sm:$0xff] %vm262, %v280
  %322 = vst.msk [vmem:[%s246 + $0x8] sm:$0xff] %vm262, %v282
  %323 = vst.msk [vmem:[%s246 + $0x10] sm:$0xff] %vm262, %v284
  %324 = vst.msk [vmem:[%s246 + $0x18] sm:$0xff] %vm262, %v286
  %325 = vst.msk [vmem:[%s246 + $0x20] sm:$0xff] %vm262, %v288
  %326 = vst.msk [vmem:[%s246 + $0x28] sm:$0xff] %vm262, %v290
  %327 = vst.msk [vmem:[%s246 + $0x30] sm:$0xff] %vm262, %v292
  %328 = vst.msk [vmem:[%s246 + $0x40] sm:$0xff] %vm262, %v294
  %329 = vst.msk [vmem:[%s246 + $0x48] sm:$0xff] %vm262, %v296
  %330 = vst.msk [vmem:[%s246 + $0x50] sm:$0xff] %vm262, %v298
  %331 = vst.msk [vmem:[%s246 + $0x58] sm:$0xff] %vm262, %v300
  %332 = vst.msk [vmem:[%s246 + $0x60] sm:$0xff] %vm262, %v302
  %333 = vst.msk [vmem:[%s246 + $0x68] sm:$0xff] %vm262, %v304
  %334 = vst.msk [vmem:[%s246 + $0x70] sm:$0xff] %vm262, %v306
  %vm335 = vcmask 97344
  %336 = vst.msk [vmem:[#allocation2] sm:$0xff] %vm335, 0.0
  %337 = vst.msk [vmem:[#allocation2 + $0x40] sm:$0xff] %vm335, 0.0
  %vm338 = vcmask 90176
  %339 = vst.msk [vmem:[#allocation2 + $0x7] sm:$0x1] %vm338, 0.0
  %340 = vst.msk [vmem:[#allocation2 + $0xf] sm:$0x1] %vm338, 0.0
  %341 = vst.msk [vmem:[#allocation2 + $0x17] sm:$0x1] %vm338, 0.0
  %342 = vst.msk [vmem:[#allocation2 + $0x1f] sm:$0x1] %vm338, 0.0
  %343 = vst.msk [vmem:[#allocation2 + $0x27] sm:$0x1] %vm338, 0.0
  %344 = vst.msk [vmem:[#allocation2 + $0x2f] sm:$0x1] %vm338, 0.0
  %345 = vst.msk [vmem:[#allocation2 + $0x37] sm:$0x1] %vm338, 0.0
  %346 = vst.msk [vmem:[#allocation2 + $0x3f] sm:$0x1] %vm338, 0.0
  %347 = vst.msk [vmem:[#allocation2 + $0x47] sm:$0x1] %vm338, 0.0
  %348 = vst.msk [vmem:[#allocation2 + $0x4f] sm:$0x1] %vm338, 0.0
  %349 = vst.msk [vmem:[#allocation2 + $0x57] sm:$0x1] %vm338, 0.0
  %350 = vst.msk [vmem:[#allocation2 + $0x5f] sm:$0x1] %vm338, 0.0
  %351 = vst.msk [vmem:[#allocation2 + $0x67] sm:$0x1] %vm338, 0.0
  %352 = vst.msk [vmem:[#allocation2 + $0x6f] sm:$0x1] %vm338, 0.0
  %353 = vst.msk [vmem:[#allocation2 + $0x77] sm:$0x1] %vm338, 0.0
  %354 = vst.msk [vmem:[#allocation2 + $0x7f] sm:$0x1] %vm338, 0.0
  %355 = vrot.lane.b32.xlu0 %v181, 8
  %v356 = vpop.permute.xlu0 %355
  %357 = vrot.lane.b32.xlu0 %v184, 8
  %v358 = vpop.permute.xlu0 %357
  %359 = vrot.lane.b32.xlu0 %v187, 8
  %v360 = vpop.permute.xlu0 %359
  %361 = vrot.lane.b32.xlu0 %v190, 8
  %v362 = vpop.permute.xlu0 %361
  %363 = vrot.lane.b32.xlu0 %v193, 8
  %v364 = vpop.permute.xlu0 %363
  %365 = vrot.lane.b32.xlu0 %v196, 8
  %v366 = vpop.permute.xlu0 %365
  %367 = vrot.lane.b32.xlu0 %v199, 8
  %v368 = vpop.permute.xlu0 %367
  %369 = vrot.lane.b32.xlu0 %v205, 8
  %v370 = vpop.permute.xlu0 %369
  %371 = vrot.lane.b32.xlu0 %v208, 8
  %v372 = vpop.permute.xlu0 %371
  %373 = vrot.lane.b32.xlu0 %v211, 8
  %v374 = vpop.permute.xlu0 %373
  %375 = vrot.lane.b32.xlu0 %v214, 8
  %v376 = vpop.permute.xlu0 %375
  %377 = vrot.lane.b32.xlu0 %v217, 8
  %v378 = vpop.permute.xlu0 %377
  %379 = vrot.lane.b32.xlu0 %v220, 8
  %v380 = vpop.permute.xlu0 %379
  %381 = vrot.lane.b32.xlu0 %v223, 8
  %v382 = vpop.permute.xlu0 %381
  %vm397 = vcmask 97345
  %398 = vst.msk [vmem:[%s246 - $0x1] sm:$0xfe] %vm397, %v356
  %399 = vst.msk [vmem:[%s246 + $0x7] sm:$0xfe] %vm397, %v358
  %400 = vst.msk [vmem:[%s246 + $0xf] sm:$0xfe] %vm397, %v360
  %401 = vst.msk [vmem:[%s246 + $0x17] sm:$0xfe] %vm397, %v362
  %402 = vst.msk [vmem:[%s246 + $0x1f] sm:$0xfe] %vm397, %v364
  %403 = vst.msk [vmem:[%s246 + $0x27] sm:$0xfe] %vm397, %v366
  %404 = vst.msk [vmem:[%s246 + $0x2f] sm:$0xfe] %vm397, %v368
  %405 = vst.msk [vmem:[%s246 + $0x3f] sm:$0xfe] %vm397, %v370
  %406 = vst.msk [vmem:[%s246 + $0x47] sm:$0xfe] %vm397, %v372
  %407 = vst.msk [vmem:[%s246 + $0x4f] sm:$0xfe] %vm397, %v374
  %408 = vst.msk [vmem:[%s246 + $0x57] sm:$0xfe] %vm397, %v376
  %409 = vst.msk [vmem:[%s246 + $0x5f] sm:$0xfe] %vm397, %v378
  %410 = vst.msk [vmem:[%s246 + $0x67] sm:$0xfe] %vm397, %v380
  %411 = vst.msk [vmem:[%s246 + $0x6f] sm:$0xfe] %vm397, %v382
  %vm412 = vcmask 122976
  %413 = vst.msk [vmem:[#allocation2] sm:$0x1] %vm412, 0.0
  %414 = vst.msk [vmem:[#allocation2 + $0x8] sm:$0x1] %vm412, 0.0
  %415 = vst.msk [vmem:[#allocation2 + $0x10] sm:$0x1] %vm412, 0.0
  %416 = vst.msk [vmem:[#allocation2 + $0x18] sm:$0x1] %vm412, 0.0
  %417 = vst.msk [vmem:[#allocation2 + $0x20] sm:$0x1] %vm412, 0.0
  %418 = vst.msk [vmem:[#allocation2 + $0x28] sm:$0x1] %vm412, 0.0
  %419 = vst.msk [vmem:[#allocation2 + $0x30] sm:$0x1] %vm412, 0.0
  %420 = vst.msk [vmem:[#allocation2 + $0x38] sm:$0x1] %vm412, 0.0
  %421 = vst.msk [vmem:[#allocation2 + $0x40] sm:$0x1] %vm412, 0.0
  %422 = vst.msk [vmem:[#allocation2 + $0x48] sm:$0x1] %vm412, 0.0
  %423 = vst.msk [vmem:[#allocation2 + $0x50] sm:$0x1] %vm412, 0.0
  %424 = vst.msk [vmem:[#allocation2 + $0x58] sm:$0x1] %vm412, 0.0
  %425 = vst.msk [vmem:[#allocation2 + $0x60] sm:$0x1] %vm412, 0.0
  %426 = vst.msk [vmem:[#allocation2 + $0x68] sm:$0x1] %vm412, 0.0
  %427 = vst.msk [vmem:[#allocation2 + $0x70] sm:$0x1] %vm412, 0.0
  %428 = vst.msk [vmem:[#allocation2 + $0x78] sm:$0x1] %vm412, 0.0
  %431 = vrot.lane.b32.xlu0 %v181, 12
  %v432 = vpop.permute.xlu0 %431
  %433 = vrot.lane.b32.xlu0 %v184, 12
  %v434 = vpop.permute.xlu0 %433
  %435 = vrot.lane.b32.xlu0 %v187, 12
  %v436 = vpop.permute.xlu0 %435
  %437 = vrot.lane.b32.xlu0 %v190, 12
  %v438 = vpop.permute.xlu0 %437
  %439 = vrot.lane.b32.xlu0 %v193, 12
  %v440 = vpop.permute.xlu0 %439
  %441 = vrot.lane.b32.xlu0 %v196, 12
  %v442 = vpop.permute.xlu0 %441
  %443 = vrot.lane.b32.xlu0 %v199, 12
  %v444 = vpop.permute.xlu0 %443
  %445 = vrot.lane.b32.xlu0 %v202, 12
  %v446 = vpop.permute.xlu0 %445
  %447 = vrot.lane.b32.xlu0 %v205, 12
  %v448 = vpop.permute.xlu0 %447
  %449 = vrot.lane.b32.xlu0 %v208, 12
  %v450 = vpop.permute.xlu0 %449
  %451 = vrot.lane.b32.xlu0 %v211, 12
  %v452 = vpop.permute.xlu0 %451
  %453 = vrot.lane.b32.xlu0 %v214, 12
  %v454 = vpop.permute.xlu0 %453
  %455 = vrot.lane.b32.xlu0 %v217, 12
  %v456 = vpop.permute.xlu0 %455
  %457 = vrot.lane.b32.xlu0 %v220, 12
  %v458 = vpop.permute.xlu0 %457
  %459 = vrot.lane.b32.xlu0 %v223, 12
  %v460 = vpop.permute.xlu0 %459
  %461 = vrot.lane.b32.xlu0 %v226, 12
  %v462 = vpop.permute.xlu0 %461
  %vm479 = vcmask 129120
  %480 = vst.msk [vmem:[#allocation2 + $0x1] sm:$0x7f] %vm479, %v432
  %481 = vst.msk [vmem:[#allocation2 + $0x9] sm:$0x7f] %vm479, %v434
  %482 = vst.msk [vmem:[#allocation2 + $0x11] sm:$0x7f] %vm479, %v436
  %483 = vst.msk [vmem:[#allocation2 + $0x19] sm:$0x7f] %vm479, %v438
  %484 = vst.msk [vmem:[#allocation2 + $0x21] sm:$0x7f] %vm479, %v440
  %485 = vst.msk [vmem:[#allocation2 + $0x29] sm:$0x7f] %vm479, %v442
  %486 = vst.msk [vmem:[#allocation2 + $0x31] sm:$0x7f] %vm479, %v444
  %487 = vst.msk [vmem:[#allocation2 + $0x39] sm:$0x7f] %vm479, %v446
  %488 = vst.msk [vmem:[#allocation2 + $0x41] sm:$0x7f] %vm479, %v448
  %489 = vst.msk [vmem:[#allocation2 + $0x49] sm:$0x7f] %vm479, %v450
  %490 = vst.msk [vmem:[#allocation2 + $0x51] sm:$0x7f] %vm479, %v452
  %491 = vst.msk [vmem:[#allocation2 + $0x59] sm:$0x7f] %vm479, %v454
  %492 = vst.msk [vmem:[#allocation2 + $0x61] sm:$0x7f] %vm479, %v456
  %493 = vst.msk [vmem:[#allocation2 + $0x69] sm:$0x7f] %vm479, %v458
  %494 = vst.msk [vmem:[#allocation2 + $0x71] sm:$0x7f] %vm479, %v460
  %495 = vst.msk [vmem:[#allocation2 + $0x79] sm:$0x7f] %vm479, %v462
  %496 = vrot.lane.b32.xlu0 %v181, 16
  %v497 = vpop.permute.xlu0 %496
  %498 = vrot.lane.b32.xlu0 %v184, 16
  %v499 = vpop.permute.xlu0 %498
  %500 = vrot.lane.b32.xlu0 %v187, 16
  %v501 = vpop.permute.xlu0 %500
  %502 = vrot.lane.b32.xlu0 %v190, 16
  %v503 = vpop.permute.xlu0 %502
  %504 = vrot.lane.b32.xlu0 %v193, 16
  %v505 = vpop.permute.xlu0 %504
  %506 = vrot.lane.b32.xlu0 %v196, 16
  %v507 = vpop.permute.xlu0 %506
  %508 = vrot.lane.b32.xlu0 %v199, 16
  %v509 = vpop.permute.xlu0 %508
  %510 = vrot.lane.b32.xlu0 %v202, 16
  %v511 = vpop.permute.xlu0 %510
  %512 = vrot.lane.b32.xlu0 %v205, 16
  %v513 = vpop.permute.xlu0 %512
  %514 = vrot.lane.b32.xlu0 %v208, 16
  %v515 = vpop.permute.xlu0 %514
  %516 = vrot.lane.b32.xlu0 %v211, 16
  %v517 = vpop.permute.xlu0 %516
  %518 = vrot.lane.b32.xlu0 %v214, 16
  %v519 = vpop.permute.xlu0 %518
  %520 = vrot.lane.b32.xlu0 %v217, 16
  %v521 = vpop.permute.xlu0 %520
  %522 = vrot.lane.b32.xlu0 %v220, 16
  %v523 = vpop.permute.xlu0 %522
  %524 = vrot.lane.b32.xlu0 %v223, 16
  %v525 = vpop.permute.xlu0 %524
  %526 = vrot.lane.b32.xlu0 %v226, 16
  %v527 = vpop.permute.xlu0 %526
  %vm544 = vcmask 162944
  %545 = vst.msk [vmem:[#allocation2] sm:$0xff] %vm544, %v497
  %546 = vst.msk [vmem:[#allocation2 + $0x8] sm:$0xff] %vm544, %v499
  %547 = vst.msk [vmem:[#allocation2 + $0x10] sm:$0xff] %vm544, %v501
  %548 = vst.msk [vmem:[#allocation2 + $0x18] sm:$0xff] %vm544, %v503
  %549 = vst.msk [vmem:[#allocation2 + $0x20] sm:$0xff] %vm544, %v505
  %550 = vst.msk [vmem:[#allocation2 + $0x28] sm:$0xff] %vm544, %v507
  %551 = vst.msk [vmem:[#allocation2 + $0x30] sm:$0xff] %vm544, %v509
  %552 = vst.msk [vmem:[#allocation2 + $0x38] sm:$0xff] %vm544, %v511
  %553 = vst.msk [vmem:[#allocation2 + $0x40] sm:$0xff] %vm544, %v513
  %554 = vst.msk [vmem:[#allocation2 + $0x48] sm:$0xff] %vm544, %v515
  %555 = vst.msk [vmem:[#allocation2 + $0x50] sm:$0xff] %vm544, %v517
  %556 = vst.msk [vmem:[#allocation2 + $0x58] sm:$0xff] %vm544, %v519
  %557 = vst.msk [vmem:[#allocation2 + $0x60] sm:$0xff] %vm544, %v521
  %558 = vst.msk [vmem:[#allocation2 + $0x68] sm:$0xff] %vm544, %v523
  %559 = vst.msk [vmem:[#allocation2 + $0x70] sm:$0xff] %vm544, %v525
  %560 = vst.msk [vmem:[#allocation2 + $0x78] sm:$0xff] %vm544, %v527
  %vm561 = vcmask 188576
  %562 = vst.msk [vmem:[#allocation2 + $0x7] sm:$0x1] %vm561, 0.0
  %563 = vst.msk [vmem:[#allocation2 + $0xf] sm:$0x1] %vm561, 0.0
  %564 = vst.msk [vmem:[#allocation2 + $0x17] sm:$0x1] %vm561, 0.0
  %565 = vst.msk [vmem:[#allocation2 + $0x1f] sm:$0x1] %vm561, 0.0
  %566 = vst.msk [vmem:[#allocation2 + $0x27] sm:$0x1] %vm561, 0.0
  %567 = vst.msk [vmem:[#allocation2 + $0x2f] sm:$0x1] %vm561, 0.0
  %568 = vst.msk [vmem:[#allocation2 + $0x37] sm:$0x1] %vm561, 0.0
  %569 = vst.msk [vmem:[#allocation2 + $0x3f] sm:$0x1] %vm561, 0.0
  %570 = vst.msk [vmem:[#allocation2 + $0x47] sm:$0x1] %vm561, 0.0
  %571 = vst.msk [vmem:[#allocation2 + $0x4f] sm:$0x1] %vm561, 0.0
  %572 = vst.msk [vmem:[#allocation2 + $0x57] sm:$0x1] %vm561, 0.0
  %573 = vst.msk [vmem:[#allocation2 + $0x5f] sm:$0x1] %vm561, 0.0
  %574 = vst.msk [vmem:[#allocation2 + $0x67] sm:$0x1] %vm561, 0.0
  %575 = vst.msk [vmem:[#allocation2 + $0x6f] sm:$0x1] %vm561, 0.0
  %576 = vst.msk [vmem:[#allocation2 + $0x77] sm:$0x1] %vm561, 0.0
  %577 = vst.msk [vmem:[#allocation2 + $0x7f] sm:$0x1] %vm561, 0.0
  %578 = vrot.lane.b32.xlu0 %v181, 20
  %v579 = vpop.permute.xlu0 %578
  %580 = vrot.lane.b32.xlu0 %v184, 20
  %v581 = vpop.permute.xlu0 %580
  %582 = vrot.lane.b32.xlu0 %v187, 20
  %v583 = vpop.permute.xlu0 %582
  %584 = vrot.lane.b32.xlu0 %v190, 20
  %v585 = vpop.permute.xlu0 %584
  %586 = vrot.lane.b32.xlu0 %v193, 20
  %v587 = vpop.permute.xlu0 %586
  %588 = vrot.lane.b32.xlu0 %v196, 20
  %v589 = vpop.permute.xlu0 %588
  %590 = vrot.lane.b32.xlu0 %v199, 20
  %v591 = vpop.permute.xlu0 %590
  %592 = vrot.lane.b32.xlu0 %v202, 20
  %v593 = vpop.permute.xlu0 %592
  %594 = vrot.lane.b32.xlu0 %v205, 20
  %v595 = vpop.permute.xlu0 %594
  %596 = vrot.lane.b32.xlu0 %v208, 20
  %v597 = vpop.permute.xlu0 %596
  %598 = vrot.lane.b32.xlu0 %v211, 20
  %v599 = vpop.permute.xlu0 %598
  %600 = vrot.lane.b32.xlu0 %v214, 20
  %v601 = vpop.permute.xlu0 %600
  %602 = vrot.lane.b32.xlu0 %v217, 20
  %v603 = vpop.permute.xlu0 %602
  %604 = vrot.lane.b32.xlu0 %v220, 20
  %v605 = vpop.permute.xlu0 %604
  %606 = vrot.lane.b32.xlu0 %v223, 20
  %v607 = vpop.permute.xlu0 %606
  %608 = vrot.lane.b32.xlu0 %v226, 20
  %v609 = vpop.permute.xlu0 %608
  %vm626 = vcmask 195745
  %627 = vst.msk [vmem:[#allocation2 - $0x1] sm:$0xfe] %vm626, %v579
  %628 = vst.msk [vmem:[#allocation2 + $0x7] sm:$0xfe] %vm626, %v581
  %629 = vst.msk [vmem:[#allocation2 + $0xf] sm:$0xfe] %vm626, %v583
  %630 = vst.msk [vmem:[#allocation2 + $0x17] sm:$0xfe] %vm626, %v585
  %631 = vst.msk [vmem:[#allocation2 + $0x1f] sm:$0xfe] %vm626, %v587
  %632 = vst.msk [vmem:[#allocation2 + $0x27] sm:$0xfe] %vm626, %v589
  %633 = vst.msk [vmem:[#allocation2 + $0x2f] sm:$0xfe] %vm626, %v591
  %634 = vst.msk [vmem:[#allocation2 + $0x37] sm:$0xfe] %vm626, %v593
  %635 = vst.msk [vmem:[#allocation2 + $0x3f] sm:$0xfe] %vm626, %v595
  %636 = vst.msk [vmem:[#allocation2 + $0x47] sm:$0xfe] %vm626, %v597
  %637 = vst.msk [vmem:[#allocation2 + $0x4f] sm:$0xfe] %vm626, %v599
  %638 = vst.msk [vmem:[#allocation2 + $0x57] sm:$0xfe] %vm626, %v601
  %639 = vst.msk [vmem:[#allocation2 + $0x5f] sm:$0xfe] %vm626, %v603
  %640 = vst.msk [vmem:[#allocation2 + $0x67] sm:$0xfe] %vm626, %v605
  %641 = vst.msk [vmem:[#allocation2 + $0x6f] sm:$0xfe] %vm626, %v607
  %642 = vst.msk [vmem:[#allocation2 + $0x77] sm:$0xfe] %vm626, %v609
  %s643 = scalar_lea.vmem [#allocation2], 56
  %vm644 = vcmask 228544
  %645 = vst.msk [vmem:[%s643] sm:$0xff] %vm644, 0.0
  %646 = vst.msk [vmem:[%s643 + $0x40] sm:$0xff] %vm644, 0.0
  %vm647 = vcmask 221376
  %648 = vst.msk [vmem:[#allocation2] sm:$0x1] %vm647, 0.0
  %649 = vst.msk [vmem:[#allocation2 + $0x8] sm:$0x1] %vm647, 0.0
  %650 = vst.msk [vmem:[#allocation2 + $0x10] sm:$0x1] %vm647, 0.0
  %651 = vst.msk [vmem:[#allocation2 + $0x18] sm:$0x1] %vm647, 0.0
  %652 = vst.msk [vmem:[#allocation2 + $0x20] sm:$0x1] %vm647, 0.0
  %653 = vst.msk [vmem:[#allocation2 + $0x28] sm:$0x1] %vm647, 0.0
  %654 = vst.msk [vmem:[#allocation2 + $0x30] sm:$0x1] %vm647, 0.0
  %655 = vst.msk [vmem:[#allocation2 + $0x38] sm:$0x1] %vm647, 0.0
  %656 = vst.msk [vmem:[#allocation2 + $0x40] sm:$0x1] %vm647, 0.0
  %657 = vst.msk [vmem:[#allocation2 + $0x48] sm:$0x1] %vm647, 0.0
  %658 = vst.msk [vmem:[#allocation2 + $0x50] sm:$0x1] %vm647, 0.0
  %659 = vst.msk [vmem:[#allocation2 + $0x58] sm:$0x1] %vm647, 0.0
  %660 = vst.msk [vmem:[#allocation2 + $0x60] sm:$0x1] %vm647, 0.0
  %661 = vst.msk [vmem:[#allocation2 + $0x68] sm:$0x1] %vm647, 0.0
  %662 = vst.msk [vmem:[#allocation2 + $0x70] sm:$0x1] %vm647, 0.0
  %663 = vst.msk [vmem:[#allocation2 + $0x78] sm:$0x1] %vm647, 0.0
  %664 = vrot.lane.b32.xlu0 %v184, 24
  %v665 = vpop.permute.xlu0 %664
  %666 = vrot.lane.b32.xlu0 %v187, 24
  %v667 = vpop.permute.xlu0 %666
  %668 = vrot.lane.b32.xlu0 %v190, 24
  %v669 = vpop.permute.xlu0 %668
  %670 = vrot.lane.b32.xlu0 %v193, 24
  %v671 = vpop.permute.xlu0 %670
  %672 = vrot.lane.b32.xlu0 %v196, 24
  %v673 = vpop.permute.xlu0 %672
  %674 = vrot.lane.b32.xlu0 %v199, 24
  %v675 = vpop.permute.xlu0 %674
  %676 = vrot.lane.b32.xlu0 %v202, 24
  %v677 = vpop.permute.xlu0 %676
  %678 = vrot.lane.b32.xlu0 %v208, 24
  %v679 = vpop.permute.xlu0 %678
  %680 = vrot.lane.b32.xlu0 %v211, 24
  %v681 = vpop.permute.xlu0 %680
  %682 = vrot.lane.b32.xlu0 %v214, 24
  %v683 = vpop.permute.xlu0 %682
  %684 = vrot.lane.b32.xlu0 %v217, 24
  %v685 = vpop.permute.xlu0 %684
  %686 = vrot.lane.b32.xlu0 %v220, 24
  %v687 = vpop.permute.xlu0 %686
  %688 = vrot.lane.b32.xlu0 %v223, 24
  %v689 = vpop.permute.xlu0 %688
  %690 = vrot.lane.b32.xlu0 %v226, 24
  %v691 = vpop.permute.xlu0 %690
  %vm706 = vcmask 227520
  %707 = vst.msk [vmem:[#allocation2 + $0x1] sm:$0x7f] %vm706, %v665
  %708 = vst.msk [vmem:[#allocation2 + $0x9] sm:$0x7f] %vm706, %v667
  %709 = vst.msk [vmem:[#allocation2 + $0x11] sm:$0x7f] %vm706, %v669
  %710 = vst.msk [vmem:[#allocation2 + $0x19] sm:$0x7f] %vm706, %v671
  %711 = vst.msk [vmem:[#allocation2 + $0x21] sm:$0x7f] %vm706, %v673
  %712 = vst.msk [vmem:[#allocation2 + $0x29] sm:$0x7f] %vm706, %v675
  %713 = vst.msk [vmem:[#allocation2 + $0x31] sm:$0x7f] %vm706, %v677
  %714 = vst.msk [vmem:[#allocation2 + $0x41] sm:$0x7f] %vm706, %v679
  %715 = vst.msk [vmem:[#allocation2 + $0x49] sm:$0x7f] %vm706, %v681
  %716 = vst.msk [vmem:[#allocation2 + $0x51] sm:$0x7f] %vm706, %v683
  %717 = vst.msk [vmem:[#allocation2 + $0x59] sm:$0x7f] %vm706, %v685
  %718 = vst.msk [vmem:[#allocation2 + $0x61] sm:$0x7f] %vm706, %v687
  %719 = vst.msk [vmem:[#allocation2 + $0x69] sm:$0x7f] %vm706, %v689
  %720 = vst.msk [vmem:[#allocation2 + $0x71] sm:$0x7f] %vm706, %v691
  %vm721 = vcmask 261344
  %722 = vst.msk [vmem:[%s643] sm:$0xff] %vm721, 0.0
  %723 = vst.msk [vmem:[%s643 + $0x40] sm:$0xff] %vm721, 0.0
  %724 = vrot.lane.b32.xlu0 %v184, 28
  %v725 = vpop.permute.xlu0 %724
  %726 = vrot.lane.b32.xlu0 %v187, 28
  %v727 = vpop.permute.xlu0 %726
  %728 = vrot.lane.b32.xlu0 %v190, 28
  %v729 = vpop.permute.xlu0 %728
  %730 = vrot.lane.b32.xlu0 %v193, 28
  %v731 = vpop.permute.xlu0 %730
  %732 = vrot.lane.b32.xlu0 %v196, 28
  %v733 = vpop.permute.xlu0 %732
  %734 = vrot.lane.b32.xlu0 %v199, 28
  %v735 = vpop.permute.xlu0 %734
  %736 = vrot.lane.b32.xlu0 %v202, 28
  %v737 = vpop.permute.xlu0 %736
  %738 = vrot.lane.b32.xlu0 %v208, 28
  %v739 = vpop.permute.xlu0 %738
  %740 = vrot.lane.b32.xlu0 %v211, 28
  %v741 = vpop.permute.xlu0 %740
  %742 = vrot.lane.b32.xlu0 %v214, 28
  %v743 = vpop.permute.xlu0 %742
  %744 = vrot.lane.b32.xlu0 %v217, 28
  %v745 = vpop.permute.xlu0 %744
  %746 = vrot.lane.b32.xlu0 %v220, 28
  %v747 = vpop.permute.xlu0 %746
  %748 = vrot.lane.b32.xlu0 %v223, 28
  %v749 = vpop.permute.xlu0 %748
  %750 = vrot.lane.b32.xlu0 %v226, 28
  %v751 = vpop.permute.xlu0 %750
  %766 = vst.msk [vmem:[#allocation2] sm:$0xff] %vm721, %v725
  %767 = vst.msk [vmem:[#allocation2 + $0x8] sm:$0xff] %vm721, %v727
  %768 = vst.msk [vmem:[#allocation2 + $0x10] sm:$0xff] %vm721, %v729
  %769 = vst.msk [vmem:[#allocation2 + $0x18] sm:$0xff] %vm721, %v731
  %770 = vst.msk [vmem:[#allocation2 + $0x20] sm:$0xff] %vm721, %v733
  %771 = vst.msk [vmem:[#allocation2 + $0x28] sm:$0xff] %vm721, %v735
  %772 = vst.msk [vmem:[#allocation2 + $0x30] sm:$0xff] %vm721, %v737
  %773 = vst.msk [vmem:[#allocation2 + $0x40] sm:$0xff] %vm721, %v739
  %774 = vst.msk [vmem:[#allocation2 + $0x48] sm:$0xff] %vm721, %v741
  %775 = vst.msk [vmem:[#allocation2 + $0x50] sm:$0xff] %vm721, %v743
  %776 = vst.msk [vmem:[#allocation2 + $0x58] sm:$0xff] %vm721, %v745
  %777 = vst.msk [vmem:[#allocation2 + $0x60] sm:$0xff] %vm721, %v747
  %778 = vst.msk [vmem:[#allocation2 + $0x68] sm:$0xff] %vm721, %v749
  %779 = vst.msk [vmem:[#allocation2 + $0x70] sm:$0xff] %vm721, %v751
  %vm780 = vcmask 294144
  %781 = vst.msk [vmem:[%s643] sm:$0xff] %vm780, 0.0
  %782 = vst.msk [vmem:[%s643 + $0x40] sm:$0xff] %vm780, 0.0
  %vm783 = vcmask 286976
  %784 = vst.msk [vmem:[#allocation2 + $0x7] sm:$0x1] %vm783, 0.0
  %785 = vst.msk [vmem:[#allocation2 + $0xf] sm:$0x1] %vm783, 0.0
  %786 = vst.msk [vmem:[#allocation2 + $0x17] sm:$0x1] %vm783, 0.0
  %787 = vst.msk [vmem:[#allocation2 + $0x1f] sm:$0x1] %vm783, 0.0
  %788 = vst.msk [vmem:[#allocation2 + $0x27] sm:$0x1] %vm783, 0.0
  %789 = vst.msk [vmem:[#allocation2 + $0x2f] sm:$0x1] %vm783, 0.0
  %790 = vst.msk [vmem:[#allocation2 + $0x37] sm:$0x1] %vm783, 0.0
  %791 = vst.msk [vmem:[#allocation2 + $0x3f] sm:$0x1] %vm783, 0.0
  %792 = vst.msk [vmem:[#allocation2 + $0x47] sm:$0x1] %vm783, 0.0
  %793 = vst.msk [vmem:[#allocation2 + $0x4f] sm:$0x1] %vm783, 0.0
  %794 = vst.msk [vmem:[#allocation2 + $0x57] sm:$0x1] %vm783, 0.0
  %795 = vst.msk [vmem:[#allocation2 + $0x5f] sm:$0x1] %vm783, 0.0
  %796 = vst.msk [vmem:[#allocation2 + $0x67] sm:$0x1] %vm783, 0.0
  %797 = vst.msk [vmem:[#allocation2 + $0x6f] sm:$0x1] %vm783, 0.0
  %798 = vst.msk [vmem:[#allocation2 + $0x77] sm:$0x1] %vm783, 0.0
  %799 = vst.msk [vmem:[#allocation2 + $0x7f] sm:$0x1] %vm783, 0.0
  %800 = vrot.lane.b32.xlu0 %v184, 32
  %v801 = vpop.permute.xlu0 %800
  %802 = vrot.lane.b32.xlu0 %v187, 32
  %v803 = vpop.permute.xlu0 %802
  %804 = vrot.lane.b32.xlu0 %v190, 32
  %v805 = vpop.permute.xlu0 %804
  %806 = vrot.lane.b32.xlu0 %v193, 32
  %v807 = vpop.permute.xlu0 %806
  %808 = vrot.lane.b32.xlu0 %v196, 32
  %v809 = vpop.permute.xlu0 %808
  %810 = vrot.lane.b32.xlu0 %v199, 32
  %v811 = vpop.permute.xlu0 %810
  %812 = vrot.lane.b32.xlu0 %v202, 32
  %v813 = vpop.permute.xlu0 %812
  %814 = vrot.lane.b32.xlu0 %v208, 32
  %v815 = vpop.permute.xlu0 %814
  %816 = vrot.lane.b32.xlu0 %v211, 32
  %v817 = vpop.permute.xlu0 %816
  %818 = vrot.lane.b32.xlu0 %v214, 32
  %v819 = vpop.permute.xlu0 %818
  %820 = vrot.lane.b32.xlu0 %v217, 32
  %v821 = vpop.permute.xlu0 %820
  %822 = vrot.lane.b32.xlu0 %v220, 32
  %v823 = vpop.permute.xlu0 %822
  %824 = vrot.lane.b32.xlu0 %v223, 32
  %v825 = vpop.permute.xlu0 %824
  %826 = vrot.lane.b32.xlu0 %v226, 32
  %v827 = vpop.permute.xlu0 %826
  %vm842 = vcmask 294145
  %843 = vst.msk [vmem:[#allocation2 - $0x1] sm:$0xfe] %vm842, %v801
  %844 = vst.msk [vmem:[#allocation2 + $0x7] sm:$0xfe] %vm842, %v803
  %845 = vst.msk [vmem:[#allocation2 + $0xf] sm:$0xfe] %vm842, %v805
  %846 = vst.msk [vmem:[#allocation2 + $0x17] sm:$0xfe] %vm842, %v807
  %847 = vst.msk [vmem:[#allocation2 + $0x1f] sm:$0xfe] %vm842, %v809
  %848 = vst.msk [vmem:[#allocation2 + $0x27] sm:$0xfe] %vm842, %v811
  %849 = vst.msk [vmem:[#allocation2 + $0x2f] sm:$0xfe] %vm842, %v813
  %850 = vst.msk [vmem:[#allocation2 + $0x3f] sm:$0xfe] %vm842, %v815
  %851 = vst.msk [vmem:[#allocation2 + $0x47] sm:$0xfe] %vm842, %v817
  %852 = vst.msk [vmem:[#allocation2 + $0x4f] sm:$0xfe] %vm842, %v819
  %853 = vst.msk [vmem:[#allocation2 + $0x57] sm:$0xfe] %vm842, %v821
  %854 = vst.msk [vmem:[#allocation2 + $0x5f] sm:$0xfe] %vm842, %v823
  %855 = vst.msk [vmem:[#allocation2 + $0x67] sm:$0xfe] %vm842, %v825
  %856 = vst.msk [vmem:[#allocation2 + $0x6f] sm:$0xfe] %vm842, %v827
  %v857 = vld [vmem:[#allocation2] sm:$0xff]
  %v858 = vld [vmem:[#allocation2 + $0x8] sm:$0xff]
  %v859 = vld [vmem:[#allocation2 + $0x10] sm:$0xff]
  %v860 = vld [vmem:[#allocation2 + $0x18] sm:$0xff]
  %v861 = vld [vmem:[#allocation2 + $0x20] sm:$0xff]
  %v862 = vld [vmem:[#allocation2 + $0x28] sm:$0xff]
  %v863 = vld [vmem:[#allocation2 + $0x30] sm:$0xff]
  %v864 = vld [vmem:[#allocation2 + $0x38] sm:$0xff]
  %v865 = vld [vmem:[#allocation2 + $0x40] sm:$0xff]
  %v866 = vld [vmem:[#allocation2 + $0x48] sm:$0xff]
  %v867 = vld [vmem:[#allocation2 + $0x50] sm:$0xff]
  %v868 = vld [vmem:[#allocation2 + $0x58] sm:$0xff]
  %v869 = vld [vmem:[#allocation2 + $0x60] sm:$0xff]
  %v870 = vld [vmem:[#allocation2 + $0x68] sm:$0xff]
  %v871 = vld [vmem:[#allocation2 + $0x70] sm:$0xff]
  %v872 = vld [vmem:[#allocation2 + $0x78] sm:$0xff]
  %v873 = vpack.c.bf16 %v858, %v857
  %v874 = vpack.c.bf16 %v860, %v859
  %v875 = vpack.c.bf16 %v862, %v861
  %v876 = vpack.c.bf16 %v864, %v863
  %v877 = vpack.c.bf16 %v866, %v865
  %v878 = vpack.c.bf16 %v868, %v867
  %v879 = vpack.c.bf16 %v870, %v869
  %v880 = vpack.c.bf16 %v872, %v871
  %v881 = vld [vmem:[%s1] sm:$0xf]
  %v882 = vld [vmem:[%s1 + $0x4] sm:$0xf]
  %v883 = vld [vmem:[%s1 + $0x8] sm:$0xf]
  %v884 = vld [vmem:[%s1 + $0xc] sm:$0xf]
  %v885 = vld [vmem:[%s1 + $0x10] sm:$0x3]
  %v891 = vunpack.c.l.b16 %v881
  %v892 = vunpack.c.l.b16 %v882
  %v893 = vunpack.c.l.b16 %v883
  %v894 = vunpack.c.l.b16 %v884
  %v895 = vunpack.c.l.b16 %v885
  %v896 = vpack.c.b16 %v892, %v891
  %v897 = vpack.c.b16 %v894, %v893
  %v898 = vpack.c.b16 %v895, %v895
  %vm901 = vcmask 293888
  %v903 = vsel %vm901, %v873, 0
  %v906 = vsel %vm901, %v874, 0
  %v909 = vsel %vm901, %v875, 0
  %v912 = vsel %vm901, %v876, 0
  %v915 = vsel %vm901, %v877, 0
  %v918 = vsel %vm901, %v878, 0
  %v921 = vsel %vm901, %v879, 0
  %v924 = vsel %vm901, %v880, 0
  %vm926 = vcmask 1041408
  %v928 = vsel %vm926, %v898, 0
  %930 = vmatprep.subr.bf16.mxu0 0
  %931 = vmatpush1.bf16.msra.mxu0 %v896
  %932 = vmatprep.subr.bf16.mxu0 0
  %933 = vmatpush1.bf16.msra.mxu0 %v897
  %934 = vmatprep.subr.bf16.mxu0 0
  %935 = vmatpush1.bf16.msra.mxu0 %v928
  %936 = vmatprep.subr.bf16.mxu0 0
  %937 = vmatpush1.bf16.msra.mxu0 0
  %938 = vmatprep.subr.bf16.mxu0 0
  %939 = vmatpush1.bf16.msra.mxu0 0
  %940 = vmatprep.subr.bf16.mxu0 0
  %941 = vmatpush1.bf16.msra.mxu0 0
  %942 = vmatprep.subr.bf16.mxu0 0
  %943 = vmatpush1.bf16.msra.mxu0 0
  %944 = vmatprep.subr.bf16.mxu0 0
  %945 = vmatpush1.bf16.msra.mxu0 0
  %946 = vmatprep.subr.bf16.mxu0 0
  %947 = vmatpush1.bf16.msra.mxu0 0
  %948 = vmatprep.subr.bf16.mxu0 0
  %949 = vmatpush1.bf16.msra.mxu0 0
  %950 = vmatprep.subr.bf16.mxu0 0
  %951 = vmatpush1.bf16.msra.mxu0 0
  %952 = vmatprep.subr.bf16.mxu0 0
  %953 = vmatpush1.bf16.msra.mxu0 0
  %954 = vmatprep.subr.bf16.mxu0 0
  %955 = vmatpush1.bf16.msra.mxu0 0
  %956 = vmatprep.subr.bf16.mxu0 0
  %957 = vmatpush1.bf16.msra.mxu0 0
  %958 = vmatprep.subr.bf16.mxu0 0
  %959 = vmatpush1.bf16.msra.mxu0 0
  %960 = vmatprep.subr.bf16.mxu0 0
  %961 = vmatpush1.bf16.msra.mxu0 0
  %962 = vmatprep.mubr.bf16.mxu0 0
  %963 = vmatmul.mubr.bf16.gmra.mrb[0].mxu0 %v903
  %v964 = vpop.f32.mrb[0].mxu0
  %v965 = vadd.f32 0.0, %v964
  %v966 = vpop.f32.mrb[0].mxu0
  %v967 = vpop.f32.mrb[0].mxu0
  %v968 = vadd.f32 0.0, %v967
  %v969 = vpop.f32.mrb[0].mxu0
  %970 = vmatprep.mubr.bf16.mxu0 0
  %971 = vmatmul.mubr.bf16.gmra.mrb[0].mxu0 %v906
  %v972 = vpop.f32.mrb[0].mxu0
  %v973 = vadd.f32 0.0, %v972
  %v974 = vpop.f32.mrb[0].mxu0
  %v975 = vpop.f32.mrb[0].mxu0
  %v976 = vadd.f32 0.0, %v975
  %v977 = vpop.f32.mrb[0].mxu0
  %978 = vmatprep.mubr.bf16.mxu0 0
  %979 = vmatmul.mubr.bf16.gmra.mrb[0].mxu0 %v909
  %v980 = vpop.f32.mrb[0].mxu0
  %v981 = vadd.f32 0.0, %v980
  %v982 = vpop.f32.mrb[0].mxu0
  %v983 = vpop.f32.mrb[0].mxu0
  %v984 = vadd.f32 0.0, %v983
  %v985 = vpop.f32.mrb[0].mxu0
  %986 = vmatprep.mubr.bf16.mxu0 0
  %987 = vmatmul.mubr.bf16.gmra.mrb[0].mxu0 %v912
  %v988 = vpop.f32.mrb[0].mxu0
  %v989 = vadd.f32 0.0, %v988
  %v990 = vpop.f32.mrb[0].mxu0
  %v991 = vpop.f32.mrb[0].mxu0
  %v992 = vadd.f32 0.0, %v991
  %v993 = vpop.f32.mrb[0].mxu0
  %994 = vmatprep.mubr.bf16.mxu0 0
  %995 = vmatmul.mubr.bf16.gmra.mrb[0].mxu0 %v915
  %v996 = vpop.f32.mrb[0].mxu0
  %v997 = vadd.f32 0.0, %v996
  %v998 = vpop.f32.mrb[0].mxu0
  %v999 = vpop.f32.mrb[0].mxu0
  %v1000 = vadd.f32 0.0, %v999
  %v1001 = vpop.f32.mrb[0].mxu0
  %1002 = vmatprep.mubr.bf16.mxu0 0
  %1003 = vmatmul.mubr.bf16.gmra.mrb[0].mxu0 %v918
  %v1004 = vpop.f32.mrb[0].mxu0
  %v1005 = vadd.f32 0.0, %v1004
  %v1006 = vpop.f32.mrb[0].mxu0
  %v1007 = vpop.f32.mrb[0].mxu0
  %v1008 = vadd.f32 0.0, %v1007
  %v1009 = vpop.f32.mrb[0].mxu0
  %1010 = vmatprep.mubr.bf16.mxu0 0
  %1011 = vmatmul.mubr.bf16.gmra.mrb[0].mxu0 %v921
  %v1012 = vpop.f32.mrb[0].mxu0
  %v1013 = vadd.f32 0.0, %v1012
  %v1014 = vpop.f32.mrb[0].mxu0
  %v1015 = vpop.f32.mrb[0].mxu0
  %v1016 = vadd.f32 0.0, %v1015
  %v1017 = vpop.f32.mrb[0].mxu0
  %1018 = vmatprep.mubr.bf16.mxu0 0
  %1019 = vmatmul.mubr.bf16.gmra.mrb[0].mxu0 %v924
  %v1020 = vpop.f32.mrb[0].mxu0
  %v1021 = vadd.f32 0.0, %v1020
  %v1022 = vpop.f32.mrb[0].mxu0
  %v1023 = vpop.f32.mrb[0].mxu0
  %v1024 = vadd.f32 0.0, %v1023
  %v1025 = vpop.f32.mrb[0].mxu0
  %1026 = vdwg.mxu0
  %vm1027 = vcmask 64512
  %v1028 = vsel %vm1027, %v965, 0.0
  %v1029 = vsel %vm1027, %v968, 0.0
  %v1030 = vadd.f32 %v1028, %v1029
  %v1031 = vsel %vm1027, %v973, 0.0
  %v1032 = vadd.f32 %v1030, %v1031
  %v1033 = vsel %vm1027, %v976, 0.0
  %v1034 = vadd.f32 %v1032, %v1033
  %v1035 = vsel %vm1027, %v981, 0.0
  %v1036 = vadd.f32 %v1034, %v1035
  %v1037 = vsel %vm1027, %v984, 0.0
  %v1038 = vadd.f32 %v1036, %v1037
  %v1039 = vsel %vm1027, %v989, 0.0
  %v1040 = vadd.f32 %v1038, %v1039
  %v1041 = vsel %vm1027, %v992, 0.0
  %v1042 = vadd.f32 %v1040, %v1041
  %v1043 = vsel %vm1027, %v997, 0.0
  %v1044 = vadd.f32 %v1042, %v1043
  %v1045 = vsel %vm1027, %v1000, 0.0
  %v1046 = vadd.f32 %v1044, %v1045
  %v1047 = vsel %vm1027, %v1005, 0.0
  %v1048 = vadd.f32 %v1046, %v1047
  %v1049 = vsel %vm1027, %v1008, 0.0
  %v1050 = vadd.f32 %v1048, %v1049
  %v1051 = vsel %vm1027, %v1013, 0.0
  %v1052 = vadd.f32 %v1050, %v1051
  %v1053 = vsel %vm1027, %v1016, 0.0
  %v1054 = vadd.f32 %v1052, %v1053
  %v1055 = vsel %vm1027, %v1021, 0.0
  %v1056 = vadd.f32 %v1054, %v1055
  %v1057 = vsel %vm1027, %v1024, 0.0
  %v1058 = vadd.f32 %v1056, %v1057
  %v1059 = vrot.slane %v1058, 4
  %v1060 = vadd.f32 %v1058, %v1059
  %v1061 = vrot.slane %v1060, 2
  %v1062 = vadd.f32 %v1060, %v1061
  %v1063 = vrot.slane %v1062, 1
  %v1064 = vadd.f32 %v1062, %v1063
  %v1065 = vrcp.pop 128.0
  %v1066 = vmul.f32 %v1064, %v1065
  %v1067 = vmul.f32 %v965, %v965
  %v1068 = vmul.f32 %v968, %v968
  %v1069 = vmul.f32 %v973, %v973
  %v1070 = vmul.f32 %v976, %v976
  %v1071 = vmul.f32 %v981, %v981
  %v1072 = vmul.f32 %v984, %v984
  %v1073 = vmul.f32 %v989, %v989
  %v1074 = vmul.f32 %v992, %v992
  %v1075 = vmul.f32 %v997, %v997
  %v1076 = vmul.f32 %v1000, %v1000
  %v1077 = vmul.f32 %v1005, %v1005
  %v1078 = vmul.f32 %v1008, %v1008
  %v1079 = vmul.f32 %v1013, %v1013
  %v1080 = vmul.f32 %v1016, %v1016
  %v1081 = vmul.f32 %v1021, %v1021
  %v1082 = vmul.f32 %v1024, %v1024
  %v1083 = vsel %vm1027, %v1067, 0.0
  %v1084 = vsel %vm1027, %v1068, 0.0
  %v1085 = vadd.f32 %v1083, %v1084
  %v1086 = vsel %vm1027, %v1069, 0.0
  %v1087 = vadd.f32 %v1085, %v1086
  %v1088 = vsel %vm1027, %v1070, 0.0
  %v1089 = vadd.f32 %v1087, %v1088
  %v1090 = vsel %vm1027, %v1071, 0.0
  %v1091 = vadd.f32 %v1089, %v1090
  %v1092 = vsel %vm1027, %v1072, 0.0
  %v1093 = vadd.f32 %v1091, %v1092
  %v1094 = vsel %vm1027, %v1073, 0.0
  %v1095 = vadd.f32 %v1093, %v1094
  %v1096 = vsel %vm1027, %v1074, 0.0
  %v1097 = vadd.f32 %v1095, %v1096
  %v1098 = vsel %vm1027, %v1075, 0.0
  %v1099 = vadd.f32 %v1097, %v1098
  %v1100 = vsel %vm1027, %v1076, 0.0
  %v1101 = vadd.f32 %v1099, %v1100
  %v1102 = vsel %vm1027, %v1077, 0.0
  %v1103 = vadd.f32 %v1101, %v1102
  %v1104 = vsel %vm1027, %v1078, 0.0
  %v1105 = vadd.f32 %v1103, %v1104
  %v1106 = vsel %vm1027, %v1079, 0.0
  %v1107 = vadd.f32 %v1105, %v1106
  %v1108 = vsel %vm1027, %v1080, 0.0
  %v1109 = vadd.f32 %v1107, %v1108
  %v1110 = vsel %vm1027, %v1081, 0.0
  %v1111 = vadd.f32 %v1109, %v1110
  %v1112 = vsel %vm1027, %v1082, 0.0
  %v1113 = vadd.f32 %v1111, %v1112
  %v1114 = vrot.slane %v1113, 4
  %v1115 = vadd.f32 %v1113, %v1114
  %v1116 = vrot.slane %v1115, 2
  %v1117 = vadd.f32 %v1115, %v1116
  %v1118 = vrot.slane %v1117, 1
  %v1119 = vadd.f32 %v1117, %v1118
  %v1120 = vmul.f32 %v1119, %v1065
  %v1121 = vmul.f32 %v1066, %v1066
  %v1122 = vsub.f32 %v1120, %v1121
  %v1123 = vsub.f32 %v965, %v1066
  %v1124 = vsub.f32 %v968, %v1066
  %v1125 = vsub.f32 %v973, %v1066
  %v1126 = vsub.f32 %v976, %v1066
  %v1127 = vsub.f32 %v981, %v1066
  %v1128 = vsub.f32 %v984, %v1066
  %v1129 = vsub.f32 %v989, %v1066
  %v1130 = vsub.f32 %v992, %v1066
  %v1131 = vsub.f32 %v997, %v1066
  %v1132 = vsub.f32 %v1000, %v1066
  %v1133 = vsub.f32 %v1005, %v1066
  %v1134 = vsub.f32 %v1008, %v1066
  %v1135 = vsub.f32 %v1013, %v1066
  %v1136 = vsub.f32 %v1016, %v1066
  %v1137 = vsub.f32 %v1021, %v1066
  %v1138 = vsub.f32 %v1024, %v1066
  %v1139 = vadd.f32 %v1122, 1e-05
  %v1140 = vrsqrt.pop %v1139
  %v1141 = vmul.f32 %v1123, %v1140
  %v1142 = vmul.f32 %v1124, %v1140
  %v1143 = vmul.f32 %v1125, %v1140
  %v1144 = vmul.f32 %v1126, %v1140
  %v1145 = vmul.f32 %v1127, %v1140
  %v1146 = vmul.f32 %v1128, %v1140
  %v1147 = vmul.f32 %v1129, %v1140
  %v1148 = vmul.f32 %v1130, %v1140
  %v1149 = vmul.f32 %v1131, %v1140
  %v1150 = vmul.f32 %v1132, %v1140
  %v1151 = vmul.f32 %v1133, %v1140
  %v1152 = vmul.f32 %v1134, %v1140
  %v1153 = vmul.f32 %v1135, %v1140
  %v1154 = vmul.f32 %v1136, %v1140
  %v1155 = vmul.f32 %v1137, %v1140
  %v1156 = vmul.f32 %v1138, %v1140
  %v1157 = vmax.f32 %v1141, 0.0
  %v1158 = vmax.f32 %v1142, 0.0
  %v1159 = vmax.f32 %v1143, 0.0
  %v1160 = vmax.f32 %v1144, 0.0
  %v1161 = vmax.f32 %v1145, 0.0
  %v1162 = vmax.f32 %v1146, 0.0
  %v1163 = vmax.f32 %v1147, 0.0
  %v1164 = vmax.f32 %v1148, 0.0
  %v1165 = vmax.f32 %v1149, 0.0
  %v1166 = vmax.f32 %v1150, 0.0
  %v1167 = vmax.f32 %v1151, 0.0
  %v1168 = vmax.f32 %v1152, 0.0
  %v1169 = vmax.f32 %v1153, 0.0
  %v1170 = vmax.f32 %v1154, 0.0
  %v1171 = vmax.f32 %v1155, 0.0
  %v1172 = vmax.f32 %v1156, 0.0
  %1173 = vst.msk [vmem:[#allocation2] sm:$0xff] %vm1027, 0.0
  %1174 = vst.msk [vmem:[#allocation2 + $0x40] sm:$0xff] %vm1027, 0.0
  %vm1175 = vcmask 57344
  %1176 = vst.msk [vmem:[#allocation2] sm:$0x1] %vm1175, 0.0
  %1177 = vst.msk [vmem:[#allocation2 + $0x8] sm:$0x1] %vm1175, 0.0
  %1178 = vst.msk [vmem:[#allocation2 + $0x10] sm:$0x1] %vm1175, 0.0
  %1179 = vst.msk [vmem:[#allocation2 + $0x18] sm:$0x1] %vm1175, 0.0
  %1180 = vst.msk [vmem:[#allocation2 + $0x20] sm:$0x1] %vm1175, 0.0
  %1181 = vst.msk [vmem:[#allocation2 + $0x28] sm:$0x1] %vm1175, 0.0
  %1182 = vst.msk [vmem:[#allocation2 + $0x30] sm:$0x1] %vm1175, 0.0
  %1183 = vst.msk [vmem:[#allocation2 + $0x38] sm:$0x1] %vm1175, 0.0
  %1184 = vst.msk [vmem:[#allocation2 + $0x40] sm:$0x1] %vm1175, 0.0
  %1185 = vst.msk [vmem:[#allocation2 + $0x48] sm:$0x1] %vm1175, 0.0
  %1186 = vst.msk [vmem:[#allocation2 + $0x50] sm:$0x1] %vm1175, 0.0
  %1187 = vst.msk [vmem:[#allocation2 + $0x58] sm:$0x1] %vm1175, 0.0
  %1188 = vst.msk [vmem:[#allocation2 + $0x60] sm:$0x1] %vm1175, 0.0
  %1189 = vst.msk [vmem:[#allocation2 + $0x68] sm:$0x1] %vm1175, 0.0
  %1190 = vst.msk [vmem:[#allocation2 + $0x70] sm:$0x1] %vm1175, 0.0
  %1191 = vst.msk [vmem:[#allocation2 + $0x78] sm:$0x1] %vm1175, 0.0
  %vm1192 = vcmask 63488
  %1193 = vst.msk [vmem:[%s246 + $0x1] sm:$0x7f] %vm1192, %v1157
  %1194 = vst.msk [vmem:[%s246 + $0x9] sm:$0x7f] %vm1192, %v1158
  %1195 = vst.msk [vmem:[%s246 + $0x11] sm:$0x7f] %vm1192, %v1159
  %1196 = vst.msk [vmem:[%s246 + $0x19] sm:$0x7f] %vm1192, %v1160
  %1197 = vst.msk [vmem:[%s246 + $0x21] sm:$0x7f] %vm1192, %v1161
  %1198 = vst.msk [vmem:[%s246 + $0x29] sm:$0x7f] %vm1192, %v1162
  %1199 = vst.msk [vmem:[%s246 + $0x31] sm:$0x7f] %vm1192, %v1163
  %1200 = vst.msk [vmem:[%s246 + $0x41] sm:$0x7f] %vm1192, %v1165
  %1201 = vst.msk [vmem:[%s246 + $0x49] sm:$0x7f] %vm1192, %v1166
  %1202 = vst.msk [vmem:[%s246 + $0x51] sm:$0x7f] %vm1192, %v1167
  %1203 = vst.msk [vmem:[%s246 + $0x59] sm:$0x7f] %vm1192, %v1168
  %1204 = vst.msk [vmem:[%s246 + $0x61] sm:$0x7f] %vm1192, %v1169
  %1205 = vst.msk [vmem:[%s246 + $0x69] sm:$0x7f] %vm1192, %v1170
  %1206 = vst.msk [vmem:[%s246 + $0x71] sm:$0x7f] %vm1192, %v1171
  %vm1207 = vcmask 130112
  %1208 = vst.msk [vmem:[#allocation2] sm:$0xff] %vm1207, 0.0
  %1209 = vst.msk [vmem:[#allocation2 + $0x40] sm:$0xff] %vm1207, 0.0
  %1224 = vrot.lane.b32.xlu0 %v1157, 8
  %v1225 = vpop.permute.xlu0 %1224
  %1226 = vrot.lane.b32.xlu0 %v1158, 8
  %v1227 = vpop.permute.xlu0 %1226
  %1228 = vrot.lane.b32.xlu0 %v1159, 8
  %v1229 = vpop.permute.xlu0 %1228
  %1230 = vrot.lane.b32.xlu0 %v1160, 8
  %v1231 = vpop.permute.xlu0 %1230
  %1232 = vrot.lane.b32.xlu0 %v1161, 8
  %v1233 = vpop.permute.xlu0 %1232
  %1234 = vrot.lane.b32.xlu0 %v1162, 8
  %v1235 = vpop.permute.xlu0 %1234
  %1236 = vrot.lane.b32.xlu0 %v1163, 8
  %v1237 = vpop.permute.xlu0 %1236
  %1238 = vrot.lane.b32.xlu0 %v1165, 8
  %v1239 = vpop.permute.xlu0 %1238
  %1240 = vrot.lane.b32.xlu0 %v1166, 8
  %v1241 = vpop.permute.xlu0 %1240
  %1242 = vrot.lane.b32.xlu0 %v1167, 8
  %v1243 = vpop.permute.xlu0 %1242
  %1244 = vrot.lane.b32.xlu0 %v1168, 8
  %v1245 = vpop.permute.xlu0 %1244
  %1246 = vrot.lane.b32.xlu0 %v1169, 8
  %v1247 = vpop.permute.xlu0 %1246
  %1248 = vrot.lane.b32.xlu0 %v1170, 8
  %v1249 = vpop.permute.xlu0 %1248
  %1250 = vrot.lane.b32.xlu0 %v1171, 8
  %v1251 = vpop.permute.xlu0 %1250
  %1266 = vst.msk [vmem:[%s246] sm:$0xff] %vm1207, %v1225
  %1267 = vst.msk [vmem:[%s246 + $0x8] sm:$0xff] %vm1207, %v1227
  %1268 = vst.msk [vmem:[%s246 + $0x10] sm:$0xff] %vm1207, %v1229
  %1269 = vst.msk [vmem:[%s246 + $0x18] sm:$0xff] %vm1207, %v1231
  %1270 = vst.msk [vmem:[%s246 + $0x20] sm:$0xff] %vm1207, %v1233
  %1271 = vst.msk [vmem:[%s246 + $0x28] sm:$0xff] %vm1207, %v1235
  %1272 = vst.msk [vmem:[%s246 + $0x30] sm:$0xff] %vm1207, %v1237
  %1273 = vst.msk [vmem:[%s246 + $0x40] sm:$0xff] %vm1207, %v1239
  %1274 = vst.msk [vmem:[%s246 + $0x48] sm:$0xff] %vm1207, %v1241
  %1275 = vst.msk [vmem:[%s246 + $0x50] sm:$0xff] %vm1207, %v1243
  %1276 = vst.msk [vmem:[%s246 + $0x58] sm:$0xff] %vm1207, %v1245
  %1277 = vst.msk [vmem:[%s246 + $0x60] sm:$0xff] %vm1207, %v1247
  %1278 = vst.msk [vmem:[%s246 + $0x68] sm:$0xff] %vm1207, %v1249
  %1279 = vst.msk [vmem:[%s246 + $0x70] sm:$0xff] %vm1207, %v1251
  %vm1280 = vcmask 195712
  %1281 = vst.msk [vmem:[#allocation2] sm:$0xff] %vm1280, 0.0
  %1282 = vst.msk [vmem:[#allocation2 + $0x40] sm:$0xff] %vm1280, 0.0
  %vm1283 = vcmask 188544
  %1284 = vst.msk [vmem:[#allocation2 + $0x7] sm:$0x1] %vm1283, 0.0
  %1285 = vst.msk [vmem:[#allocation2 + $0xf] sm:$0x1] %vm1283, 0.0
  %1286 = vst.msk [vmem:[#allocation2 + $0x17] sm:$0x1] %vm1283, 0.0
  %1287 = vst.msk [vmem:[#allocation2 + $0x1f] sm:$0x1] %vm1283, 0.0
  %1288 = vst.msk [vmem:[#allocation2 + $0x27] sm:$0x1] %vm1283, 0.0
  %1289 = vst.msk [vmem:[#allocation2 + $0x2f] sm:$0x1] %vm1283, 0.0
  %1290 = vst.msk [vmem:[#allocation2 + $0x37] sm:$0x1] %vm1283, 0.0
  %1291 = vst.msk [vmem:[#allocation2 + $0x3f] sm:$0x1] %vm1283, 0.0
  %1292 = vst.msk [vmem:[#allocation2 + $0x47] sm:$0x1] %vm1283, 0.0
  %1293 = vst.msk [vmem:[#allocation2 + $0x4f] sm:$0x1] %vm1283, 0.0
  %1294 = vst.msk [vmem:[#allocation2 + $0x57] sm:$0x1] %vm1283, 0.0
  %1295 = vst.msk [vmem:[#allocation2 + $0x5f] sm:$0x1] %vm1283, 0.0
  %1296 = vst.msk [vmem:[#allocation2 + $0x67] sm:$0x1] %vm1283, 0.0
  %1297 = vst.msk [vmem:[#allocation2 + $0x6f] sm:$0x1] %vm1283, 0.0
  %1298 = vst.msk [vmem:[#allocation2 + $0x77] sm:$0x1] %vm1283, 0.0
  %1299 = vst.msk [vmem:[#allocation2 + $0x7f] sm:$0x1] %vm1283, 0.0
  %1300 = vrot.lane.b32.xlu0 %v1157, 16
  %v1301 = vpop.permute.xlu0 %1300
  %1302 = vrot.lane.b32.xlu0 %v1158, 16
  %v1303 = vpop.permute.xlu0 %1302
  %1304 = vrot.lane.b32.xlu0 %v1159, 16
  %v1305 = vpop.permute.xlu0 %1304
  %1306 = vrot.lane.b32.xlu0 %v1160, 16
  %v1307 = vpop.permute.xlu0 %1306
  %1308 = vrot.lane.b32.xlu0 %v1161, 16
  %v1309 = vpop.permute.xlu0 %1308
  %1310 = vrot.lane.b32.xlu0 %v1162, 16
  %v1311 = vpop.permute.xlu0 %1310
  %1312 = vrot.lane.b32.xlu0 %v1163, 16
  %v1313 = vpop.permute.xlu0 %1312
  %1314 = vrot.lane.b32.xlu0 %v1165, 16
  %v1315 = vpop.permute.xlu0 %1314
  %1316 = vrot.lane.b32.xlu0 %v1166, 16
  %v1317 = vpop.permute.xlu0 %1316
  %1318 = vrot.lane.b32.xlu0 %v1167, 16
  %v1319 = vpop.permute.xlu0 %1318
  %1320 = vrot.lane.b32.xlu0 %v1168, 16
  %v1321 = vpop.permute.xlu0 %1320
  %1322 = vrot.lane.b32.xlu0 %v1169, 16
  %v1323 = vpop.permute.xlu0 %1322
  %1324 = vrot.lane.b32.xlu0 %v1170, 16
  %v1325 = vpop.permute.xlu0 %1324
  %1326 = vrot.lane.b32.xlu0 %v1171, 16
  %v1327 = vpop.permute.xlu0 %1326
  %vm1342 = vcmask 195713
  %1343 = vst.msk [vmem:[%s246 - $0x1] sm:$0xfe] %vm1342, %v1301
  %1344 = vst.msk [vmem:[%s246 + $0x7] sm:$0xfe] %vm1342, %v1303
  %1345 = vst.msk [vmem:[%s246 + $0xf] sm:$0xfe] %vm1342, %v1305
  %1346 = vst.msk [vmem:[%s246 + $0x17] sm:$0xfe] %vm1342, %v1307
  %1347 = vst.msk [vmem:[%s246 + $0x1f] sm:$0xfe] %vm1342, %v1309
  %1348 = vst.msk [vmem:[%s246 + $0x27] sm:$0xfe] %vm1342, %v1311
  %1349 = vst.msk [vmem:[%s246 + $0x2f] sm:$0xfe] %vm1342, %v1313
  %1350 = vst.msk [vmem:[%s246 + $0x3f] sm:$0xfe] %vm1342, %v1315
  %1351 = vst.msk [vmem:[%s246 + $0x47] sm:$0xfe] %vm1342, %v1317
  %1352 = vst.msk [vmem:[%s246 + $0x4f] sm:$0xfe] %vm1342, %v1319
  %1353 = vst.msk [vmem:[%s246 + $0x57] sm:$0xfe] %vm1342, %v1321
  %1354 = vst.msk [vmem:[%s246 + $0x5f] sm:$0xfe] %vm1342, %v1323
  %1355 = vst.msk [vmem:[%s246 + $0x67] sm:$0xfe] %vm1342, %v1325
  %1356 = vst.msk [vmem:[%s246 + $0x6f] sm:$0xfe] %vm1342, %v1327
  %vm1357 = vcmask 254144
  %1358 = vst.msk [vmem:[#allocation2] sm:$0x1] %vm1357, 0.0
  %1359 = vst.msk [vmem:[#allocation2 + $0x8] sm:$0x1] %vm1357, 0.0
  %1360 = vst.msk [vmem:[#allocation2 + $0x10] sm:$0x1] %vm1357, 0.0
  %1361 = vst.msk [vmem:[#allocation2 + $0x18] sm:$0x1] %vm1357, 0.0
  %1362 = vst.msk [vmem:[#allocation2 + $0x20] sm:$0x1] %vm1357, 0.0
  %1363 = vst.msk [vmem:[#allocation2 + $0x28] sm:$0x1] %vm1357, 0.0
  %1364 = vst.msk [vmem:[#allocation2 + $0x30] sm:$0x1] %vm1357, 0.0
  %1365 = vst.msk [vmem:[#allocation2 + $0x38] sm:$0x1] %vm1357, 0.0
  %1366 = vst.msk [vmem:[#allocation2 + $0x40] sm:$0x1] %vm1357, 0.0
  %1367 = vst.msk [vmem:[#allocation2 + $0x48] sm:$0x1] %vm1357, 0.0
  %1368 = vst.msk [vmem:[#allocation2 + $0x50] sm:$0x1] %vm1357, 0.0
  %1369 = vst.msk [vmem:[#allocation2 + $0x58] sm:$0x1] %vm1357, 0.0
  %1370 = vst.msk [vmem:[#allocation2 + $0x60] sm:$0x1] %vm1357, 0.0
  %1371 = vst.msk [vmem:[#allocation2 + $0x68] sm:$0x1] %vm1357, 0.0
  %1372 = vst.msk [vmem:[#allocation2 + $0x70] sm:$0x1] %vm1357, 0.0
  %1373 = vst.msk [vmem:[#allocation2 + $0x78] sm:$0x1] %vm1357, 0.0
  %1376 = vrot.lane.b32.xlu0 %v1157, 24
  %v1377 = vpop.permute.xlu0 %1376
  %1378 = vrot.lane.b32.xlu0 %v1158, 24
  %v1379 = vpop.permute.xlu0 %1378
  %1380 = vrot.lane.b32.xlu0 %v1159, 24
  %v1381 = vpop.permute.xlu0 %1380
  %1382 = vrot.lane.b32.xlu0 %v1160, 24
  %v1383 = vpop.permute.xlu0 %1382
  %1384 = vrot.lane.b32.xlu0 %v1161, 24
  %v1385 = vpop.permute.xlu0 %1384
  %1386 = vrot.lane.b32.xlu0 %v1162, 24
  %v1387 = vpop.permute.xlu0 %1386
  %1388 = vrot.lane.b32.xlu0 %v1163, 24
  %v1389 = vpop.permute.xlu0 %1388
  %1390 = vrot.lane.b32.xlu0 %v1164, 24
  %v1391 = vpop.permute.xlu0 %1390
  %1392 = vrot.lane.b32.xlu0 %v1165, 24
  %v1393 = vpop.permute.xlu0 %1392
  %1394 = vrot.lane.b32.xlu0 %v1166, 24
  %v1395 = vpop.permute.xlu0 %1394
  %1396 = vrot.lane.b32.xlu0 %v1167, 24
  %v1397 = vpop.permute.xlu0 %1396
  %1398 = vrot.lane.b32.xlu0 %v1168, 24
  %v1399 = vpop.permute.xlu0 %1398
  %1400 = vrot.lane.b32.xlu0 %v1169, 24
  %v1401 = vpop.permute.xlu0 %1400
  %1402 = vrot.lane.b32.xlu0 %v1170, 24
  %v1403 = vpop.permute.xlu0 %1402
  %1404 = vrot.lane.b32.xlu0 %v1171, 24
  %v1405 = vpop.permute.xlu0 %1404
  %1406 = vrot.lane.b32.xlu0 %v1172, 24
  %v1407 = vpop.permute.xlu0 %1406
  %vm1424 = vcmask 260288
  %1425 = vst.msk [vmem:[#allocation2 + $0x1] sm:$0x7f] %vm1424, %v1377
  %1426 = vst.msk [vmem:[#allocation2 + $0x9] sm:$0x7f] %vm1424, %v1379
  %1427 = vst.msk [vmem:[#allocation2 + $0x11] sm:$0x7f] %vm1424, %v1381
  %1428 = vst.msk [vmem:[#allocation2 + $0x19] sm:$0x7f] %vm1424, %v1383
  %1429 = vst.msk [vmem:[#allocation2 + $0x21] sm:$0x7f] %vm1424, %v1385
  %1430 = vst.msk [vmem:[#allocation2 + $0x29] sm:$0x7f] %vm1424, %v1387
  %1431 = vst.msk [vmem:[#allocation2 + $0x31] sm:$0x7f] %vm1424, %v1389
  %1432 = vst.msk [vmem:[#allocation2 + $0x39] sm:$0x7f] %vm1424, %v1391
  %1433 = vst.msk [vmem:[#allocation2 + $0x41] sm:$0x7f] %vm1424, %v1393
  %1434 = vst.msk [vmem:[#allocation2 + $0x49] sm:$0x7f] %vm1424, %v1395
  %1435 = vst.msk [vmem:[#allocation2 + $0x51] sm:$0x7f] %vm1424, %v1397
  %1436 = vst.msk [vmem:[#allocation2 + $0x59] sm:$0x7f] %vm1424, %v1399
  %1437 = vst.msk [vmem:[#allocation2 + $0x61] sm:$0x7f] %vm1424, %v1401
  %1438 = vst.msk [vmem:[#allocation2 + $0x69] sm:$0x7f] %vm1424, %v1403
  %1439 = vst.msk [vmem:[#allocation2 + $0x71] sm:$0x7f] %vm1424, %v1405
  %1440 = vst.msk [vmem:[#allocation2 + $0x79] sm:$0x7f] %vm1424, %v1407
  %1441 = vrot.lane.b32.xlu0 %v1157, 32
  %v1442 = vpop.permute.xlu0 %1441
  %1443 = vrot.lane.b32.xlu0 %v1158, 32
  %v1444 = vpop.permute.xlu0 %1443
  %1445 = vrot.lane.b32.xlu0 %v1159, 32
  %v1446 = vpop.permute.xlu0 %1445
  %1447 = vrot.lane.b32.xlu0 %v1160, 32
  %v1448 = vpop.permute.xlu0 %1447
  %1449 = vrot.lane.b32.xlu0 %v1161, 32
  %v1450 = vpop.permute.xlu0 %1449
  %1451 = vrot.lane.b32.xlu0 %v1162, 32
  %v1452 = vpop.permute.xlu0 %1451
  %1453 = vrot.lane.b32.xlu0 %v1163, 32
  %v1454 = vpop.permute.xlu0 %1453
  %1455 = vrot.lane.b32.xlu0 %v1164, 32
  %v1456 = vpop.permute.xlu0 %1455
  %1457 = vrot.lane.b32.xlu0 %v1165, 32
  %v1458 = vpop.permute.xlu0 %1457
  %1459 = vrot.lane.b32.xlu0 %v1166, 32
  %v1460 = vpop.permute.xlu0 %1459
  %1461 = vrot.lane.b32.xlu0 %v1167, 32
  %v1462 = vpop.permute.xlu0 %1461
  %1463 = vrot.lane.b32.xlu0 %v1168, 32
  %v1464 = vpop.permute.xlu0 %1463
  %1465 = vrot.lane.b32.xlu0 %v1169, 32
  %v1466 = vpop.permute.xlu0 %1465
  %1467 = vrot.lane.b32.xlu0 %v1170, 32
  %v1468 = vpop.permute.xlu0 %1467
  %1469 = vrot.lane.b32.xlu0 %v1171, 32
  %v1470 = vpop.permute.xlu0 %1469
  %1471 = vrot.lane.b32.xlu0 %v1172, 32
  %v1472 = vpop.permute.xlu0 %1471
  %vm1489 = vcmask 326912
  %1490 = vst.msk [vmem:[#allocation2] sm:$0xff] %vm1489, %v1442
  %1491 = vst.msk [vmem:[#allocation2 + $0x8] sm:$0xff] %vm1489, %v1444
  %1492 = vst.msk [vmem:[#allocation2 + $0x10] sm:$0xff] %vm1489, %v1446
  %1493 = vst.msk [vmem:[#allocation2 + $0x18] sm:$0xff] %vm1489, %v1448
  %1494 = vst.msk [vmem:[#allocation2 + $0x20] sm:$0xff] %vm1489, %v1450
  %1495 = vst.msk [vmem:[#allocation2 + $0x28] sm:$0xff] %vm1489, %v1452
  %1496 = vst.msk [vmem:[#allocation2 + $0x30] sm:$0xff] %vm1489, %v1454
  %1497 = vst.msk [vmem:[#allocation2 + $0x38] sm:$0xff] %vm1489, %v1456
  %1498 = vst.msk [vmem:[#allocation2 + $0x40] sm:$0xff] %vm1489, %v1458
  %1499 = vst.msk [vmem:[#allocation2 + $0x48] sm:$0xff] %vm1489, %v1460
  %1500 = vst.msk [vmem:[#allocation2 + $0x50] sm:$0xff] %vm1489, %v1462
  %1501 = vst.msk [vmem:[#allocation2 + $0x58] sm:$0xff] %vm1489, %v1464
  %1502 = vst.msk [vmem:[#allocation2 + $0x60] sm:$0xff] %vm1489, %v1466
  %1503 = vst.msk [vmem:[#allocation2 + $0x68] sm:$0xff] %vm1489, %v1468
  %1504 = vst.msk [vmem:[#allocation2 + $0x70] sm:$0xff] %vm1489, %v1470
  %1505 = vst.msk [vmem:[#allocation2 + $0x78] sm:$0xff] %vm1489, %v1472
  %vm1506 = vcmask 385344
  %1507 = vst.msk [vmem:[#allocation2 + $0x7] sm:$0x1] %vm1506, 0.0
  %1508 = vst.msk [vmem:[#allocation2 + $0xf] sm:$0x1] %vm1506, 0.0
  %1509 = vst.msk [vmem:[#allocation2 + $0x17] sm:$0x1] %vm1506, 0.0
  %1510 = vst.msk [vmem:[#allocation2 + $0x1f] sm:$0x1] %vm1506, 0.0
  %1511 = vst.msk [vmem:[#allocation2 + $0x27] sm:$0x1] %vm1506, 0.0
  %1512 = vst.msk [vmem:[#allocation2 + $0x2f] sm:$0x1] %vm1506, 0.0
  %1513 = vst.msk [vmem:[#allocation2 + $0x37] sm:$0x1] %vm1506, 0.0
  %1514 = vst.msk [vmem:[#allocation2 + $0x3f] sm:$0x1] %vm1506, 0.0
  %1515 = vst.msk [vmem:[#allocation2 + $0x47] sm:$0x1] %vm1506, 0.0
  %1516 = vst.msk [vmem:[#allocation2 + $0x4f] sm:$0x1] %vm1506, 0.0
  %1517 = vst.msk [vmem:[#allocation2 + $0x57] sm:$0x1] %vm1506, 0.0
  %1518 = vst.msk [vmem:[#allocation2 + $0x5f] sm:$0x1] %vm1506, 0.0
  %1519 = vst.msk [vmem:[#allocation2 + $0x67] sm:$0x1] %vm1506, 0.0
  %1520 = vst.msk [vmem:[#allocation2 + $0x6f] sm:$0x1] %vm1506, 0.0
  %1521 = vst.msk [vmem:[#allocation2 + $0x77] sm:$0x1] %vm1506, 0.0
  %1522 = vst.msk [vmem:[#allocation2 + $0x7f] sm:$0x1] %vm1506, 0.0
  %1523 = vrot.lane.b32.xlu0 %v1157, 40
  %v1524 = vpop.permute.xlu0 %1523
  %1525 = vrot.lane.b32.xlu0 %v1158, 40
  %v1526 = vpop.permute.xlu0 %1525
  %1527 = vrot.lane.b32.xlu0 %v1159, 40
  %v1528 = vpop.permute.xlu0 %1527
  %1529 = vrot.lane.b32.xlu0 %v1160, 40
  %v1530 = vpop.permute.xlu0 %1529
  %1531 = vrot.lane.b32.xlu0 %v1161, 40
  %v1532 = vpop.permute.xlu0 %1531
  %1533 = vrot.lane.b32.xlu0 %v1162, 40
  %v1534 = vpop.permute.xlu0 %1533
  %1535 = vrot.lane.b32.xlu0 %v1163, 40
  %v1536 = vpop.permute.xlu0 %1535
  %1537 = vrot.lane.b32.xlu0 %v1164, 40
  %v1538 = vpop.permute.xlu0 %1537
  %1539 = vrot.lane.b32.xlu0 %v1165, 40
  %v1540 = vpop.permute.xlu0 %1539
  %1541 = vrot.lane.b32.xlu0 %v1166, 40
  %v1542 = vpop.permute.xlu0 %1541
  %1543 = vrot.lane.b32.xlu0 %v1167, 40
  %v1544 = vpop.permute.xlu0 %1543
  %1545 = vrot.lane.b32.xlu0 %v1168, 40
  %v1546 = vpop.permute.xlu0 %1545
  %1547 = vrot.lane.b32.xlu0 %v1169, 40
  %v1548 = vpop.permute.xlu0 %1547
  %1549 = vrot.lane.b32.xlu0 %v1170, 40
  %v1550 = vpop.permute.xlu0 %1549
  %1551 = vrot.lane.b32.xlu0 %v1171, 40
  %v1552 = vpop.permute.xlu0 %1551
  %1553 = vrot.lane.b32.xlu0 %v1172, 40
  %v1554 = vpop.permute.xlu0 %1553
  %vm1571 = vcmask 392513
  %1572 = vst.msk [vmem:[#allocation2 - $0x1] sm:$0xfe] %vm1571, %v1524
  %1573 = vst.msk [vmem:[#allocation2 + $0x7] sm:$0xfe] %vm1571, %v1526
  %1574 = vst.msk [vmem:[#allocation2 + $0xf] sm:$0xfe] %vm1571, %v1528
  %1575 = vst.msk [vmem:[#allocation2 + $0x17] sm:$0xfe] %vm1571, %v1530
  %1576 = vst.msk [vmem:[#allocation2 + $0x1f] sm:$0xfe] %vm1571, %v1532
  %1577 = vst.msk [vmem:[#allocation2 + $0x27] sm:$0xfe] %vm1571, %v1534
  %1578 = vst.msk [vmem:[#allocation2 + $0x2f] sm:$0xfe] %vm1571, %v1536
  %1579 = vst.msk [vmem:[#allocation2 + $0x37] sm:$0xfe] %vm1571, %v1538
  %1580 = vst.msk [vmem:[#allocation2 + $0x3f] sm:$0xfe] %vm1571, %v1540
  %1581 = vst.msk [vmem:[#allocation2 + $0x47] sm:$0xfe] %vm1571, %v1542
  %1582 = vst.msk [vmem:[#allocation2 + $0x4f] sm:$0xfe] %vm1571, %v1544
  %1583 = vst.msk [vmem:[#allocation2 + $0x57] sm:$0xfe] %vm1571, %v1546
  %1584 = vst.msk [vmem:[#allocation2 + $0x5f] sm:$0xfe] %vm1571, %v1548
  %1585 = vst.msk [vmem:[#allocation2 + $0x67] sm:$0xfe] %vm1571, %v1550
  %1586 = vst.msk [vmem:[#allocation2 + $0x6f] sm:$0xfe] %vm1571, %v1552
  %1587 = vst.msk [vmem:[#allocation2 + $0x77] sm:$0xfe] %vm1571, %v1554
  %vm1588 = vcmask 458112
  %1589 = vst.msk [vmem:[%s643] sm:$0xff] %vm1588, 0.0
  %1590 = vst.msk [vmem:[%s643 + $0x40] sm:$0xff] %vm1588, 0.0
  %vm1591 = vcmask 450944
  %1592 = vst.msk [vmem:[#allocation2] sm:$0x1] %vm1591, 0.0
  %1593 = vst.msk [vmem:[#allocation2 + $0x8] sm:$0x1] %vm1591, 0.0
  %1594 = vst.msk [vmem:[#allocation2 + $0x10] sm:$0x1] %vm1591, 0.0
  %1595 = vst.msk [vmem:[#allocation2 + $0x18] sm:$0x1] %vm1591, 0.0
  %1596 = vst.msk [vmem:[#allocation2 + $0x20] sm:$0x1] %vm1591, 0.0
  %1597 = vst.msk [vmem:[#allocation2 + $0x28] sm:$0x1] %vm1591, 0.0
  %1598 = vst.msk [vmem:[#allocation2 + $0x30] sm:$0x1] %vm1591, 0.0
  %1599 = vst.msk [vmem:[#allocation2 + $0x38] sm:$0x1] %vm1591, 0.0
  %1600 = vst.msk [vmem:[#allocation2 + $0x40] sm:$0x1] %vm1591, 0.0
  %1601 = vst.msk [vmem:[#allocation2 + $0x48] sm:$0x1] %vm1591, 0.0
  %1602 = vst.msk [vmem:[#allocation2 + $0x50] sm:$0x1] %vm1591, 0.0
  %1603 = vst.msk [vmem:[#allocation2 + $0x58] sm:$0x1] %vm1591, 0.0
  %1604 = vst.msk [vmem:[#allocation2 + $0x60] sm:$0x1] %vm1591, 0.0
  %1605 = vst.msk [vmem:[#allocation2 + $0x68] sm:$0x1] %vm1591, 0.0
  %1606 = vst.msk [vmem:[#allocation2 + $0x70] sm:$0x1] %vm1591, 0.0
  %1607 = vst.msk [vmem:[#allocation2 + $0x78] sm:$0x1] %vm1591, 0.0
  %1608 = vrot.lane.b32.xlu0 %v1158, 48
  %v1609 = vpop.permute.xlu0 %1608
  %1610 = vrot.lane.b32.xlu0 %v1159, 48
  %v1611 = vpop.permute.xlu0 %1610
  %1612 = vrot.lane.b32.xlu0 %v1160, 48
  %v1613 = vpop.permute.xlu0 %1612
  %1614 = vrot.lane.b32.xlu0 %v1161, 48
  %v1615 = vpop.permute.xlu0 %1614
  %1616 = vrot.lane.b32.xlu0 %v1162, 48
  %v1617 = vpop.permute.xlu0 %1616
  %1618 = vrot.lane.b32.xlu0 %v1163, 48
  %v1619 = vpop.permute.xlu0 %1618
  %1620 = vrot.lane.b32.xlu0 %v1164, 48
  %v1621 = vpop.permute.xlu0 %1620
  %1622 = vrot.lane.b32.xlu0 %v1166, 48
  %v1623 = vpop.permute.xlu0 %1622
  %1624 = vrot.lane.b32.xlu0 %v1167, 48
  %v1625 = vpop.permute.xlu0 %1624
  %1626 = vrot.lane.b32.xlu0 %v1168, 48
  %v1627 = vpop.permute.xlu0 %1626
  %1628 = vrot.lane.b32.xlu0 %v1169, 48
  %v1629 = vpop.permute.xlu0 %1628
  %1630 = vrot.lane.b32.xlu0 %v1170, 48
  %v1631 = vpop.permute.xlu0 %1630
  %1632 = vrot.lane.b32.xlu0 %v1171, 48
  %v1633 = vpop.permute.xlu0 %1632
  %1634 = vrot.lane.b32.xlu0 %v1172, 48
  %v1635 = vpop.permute.xlu0 %1634
  %vm1650 = vcmask 457088
  %1651 = vst.msk [vmem:[#allocation2 + $0x1] sm:$0x7f] %vm1650, %v1609
  %1652 = vst.msk [vmem:[#allocation2 + $0x9] sm:$0x7f] %vm1650, %v1611
  %1653 = vst.msk [vmem:[#allocation2 + $0x11] sm:$0x7f] %vm1650, %v1613
  %1654 = vst.msk [vmem:[#allocation2 + $0x19] sm:$0x7f] %vm1650, %v1615
  %1655 = vst.msk [vmem:[#allocation2 + $0x21] sm:$0x7f] %vm1650, %v1617
  %1656 = vst.msk [vmem:[#allocation2 + $0x29] sm:$0x7f] %vm1650, %v1619
  %1657 = vst.msk [vmem:[#allocation2 + $0x31] sm:$0x7f] %vm1650, %v1621
  %1658 = vst.msk [vmem:[#allocation2 + $0x41] sm:$0x7f] %vm1650, %v1623
  %1659 = vst.msk [vmem:[#allocation2 + $0x49] sm:$0x7f] %vm1650, %v1625
  %1660 = vst.msk [vmem:[#allocation2 + $0x51] sm:$0x7f] %vm1650, %v1627
  %1661 = vst.msk [vmem:[#allocation2 + $0x59] sm:$0x7f] %vm1650, %v1629
  %1662 = vst.msk [vmem:[#allocation2 + $0x61] sm:$0x7f] %vm1650, %v1631
  %1663 = vst.msk [vmem:[#allocation2 + $0x69] sm:$0x7f] %vm1650, %v1633
  %1664 = vst.msk [vmem:[#allocation2 + $0x71] sm:$0x7f] %vm1650, %v1635
  %vm1665 = vcmask 523712
  %1666 = vst.msk [vmem:[%s643] sm:$0xff] %vm1665, 0.0
  %1667 = vst.msk [vmem:[%s643 + $0x40] sm:$0xff] %vm1665, 0.0
  %1668 = vrot.lane.b32.xlu0 %v1158, 56
  %v1669 = vpop.permute.xlu0 %1668
  %1670 = vrot.lane.b32.xlu0 %v1159, 56
  %v1671 = vpop.permute.xlu0 %1670
  %1672 = vrot.lane.b32.xlu0 %v1160, 56
  %v1673 = vpop.permute.xlu0 %1672
  %1674 = vrot.lane.b32.xlu0 %v1161, 56
  %v1675 = vpop.permute.xlu0 %1674
  %1676 = vrot.lane.b32.xlu0 %v1162, 56
  %v1677 = vpop.permute.xlu0 %1676
  %1678 = vrot.lane.b32.xlu0 %v1163, 56
  %v1679 = vpop.permute.xlu0 %1678
  %1680 = vrot.lane.b32.xlu0 %v1164, 56
  %v1681 = vpop.permute.xlu0 %1680
  %1682 = vrot.lane.b32.xlu0 %v1166, 56
  %v1683 = vpop.permute.xlu0 %1682
  %1684 = vrot.lane.b32.xlu0 %v1167, 56
  %v1685 = vpop.permute.xlu0 %1684
  %1686 = vrot.lane.b32.xlu0 %v1168, 56
  %v1687 = vpop.permute.xlu0 %1686
  %1688 = vrot.lane.b32.xlu0 %v1169, 56
  %v1689 = vpop.permute.xlu0 %1688
  %1690 = vrot.lane.b32.xlu0 %v1170, 56
  %v1691 = vpop.permute.xlu0 %1690
  %1692 = vrot.lane.b32.xlu0 %v1171, 56
  %v1693 = vpop.permute.xlu0 %1692
  %1694 = vrot.lane.b32.xlu0 %v1172, 56
  %v1695 = vpop.permute.xlu0 %1694
  %1710 = vst.msk [vmem:[#allocation2] sm:$0xff] %vm1665, %v1669
  %1711 = vst.msk [vmem:[#allocation2 + $0x8] sm:$0xff] %vm1665, %v1671
  %1712 = vst.msk [vmem:[#allocation2 + $0x10] sm:$0xff] %vm1665, %v1673
  %1713 = vst.msk [vmem:[#allocation2 + $0x18] sm:$0xff] %vm1665, %v1675
  %1714 = vst.msk [vmem:[#allocation2 + $0x20] sm:$0xff] %vm1665, %v1677
  %1715 = vst.msk [vmem:[#allocation2 + $0x28] sm:$0xff] %vm1665, %v1679
  %1716 = vst.msk [vmem:[#allocation2 + $0x30] sm:$0xff] %vm1665, %v1681
  %1717 = vst.msk [vmem:[#allocation2 + $0x40] sm:$0xff] %vm1665, %v1683
  %1718 = vst.msk [vmem:[#allocation2 + $0x48] sm:$0xff] %vm1665, %v1685
  %1719 = vst.msk [vmem:[#allocation2 + $0x50] sm:$0xff] %vm1665, %v1687
  %1720 = vst.msk [vmem:[#allocation2 + $0x58] sm:$0xff] %vm1665, %v1689
  %1721 = vst.msk [vmem:[#allocation2 + $0x60] sm:$0xff] %vm1665, %v1691
  %1722 = vst.msk [vmem:[#allocation2 + $0x68] sm:$0xff] %vm1665, %v1693
  %1723 = vst.msk [vmem:[#allocation2 + $0x70] sm:$0xff] %vm1665, %v1695
  %vm1724 = vcmask 589312
  %1725 = vst.msk [vmem:[%s643] sm:$0xff] %vm1724, 0.0
  %1726 = vst.msk [vmem:[%s643 + $0x40] sm:$0xff] %vm1724, 0.0
  %vm1727 = vcmask 582144
  %1728 = vst.msk [vmem:[#allocation2 + $0x7] sm:$0x1] %vm1727, 0.0
  %1729 = vst.msk [vmem:[#allocation2 + $0xf] sm:$0x1] %vm1727, 0.0
  %1730 = vst.msk [vmem:[#allocation2 + $0x17] sm:$0x1] %vm1727, 0.0
  %1731 = vst.msk [vmem:[#allocation2 + $0x1f] sm:$0x1] %vm1727, 0.0
  %1732 = vst.msk [vmem:[#allocation2 + $0x27] sm:$0x1] %vm1727, 0.0
  %1733 = vst.msk [vmem:[#allocation2 + $0x2f] sm:$0x1] %vm1727, 0.0
  %1734 = vst.msk [vmem:[#allocation2 + $0x37] sm:$0x1] %vm1727, 0.0
  %1735 = vst.msk [vmem:[#allocation2 + $0x3f] sm:$0x1] %vm1727, 0.0
  %1736 = vst.msk [vmem:[#allocation2 + $0x47] sm:$0x1] %vm1727, 0.0
  %1737 = vst.msk [vmem:[#allocation2 + $0x4f] sm:$0x1] %vm1727, 0.0
  %1738 = vst.msk [vmem:[#allocation2 + $0x57] sm:$0x1] %vm1727, 0.0
  %1739 = vst.msk [vmem:[#allocation2 + $0x5f] sm:$0x1] %vm1727, 0.0
  %1740 = vst.msk [vmem:[#allocation2 + $0x67] sm:$0x1] %vm1727, 0.0
  %1741 = vst.msk [vmem:[#allocation2 + $0x6f] sm:$0x1] %vm1727, 0.0
  %1742 = vst.msk [vmem:[#allocation2 + $0x77] sm:$0x1] %vm1727, 0.0
  %1743 = vst.msk [vmem:[#allocation2 + $0x7f] sm:$0x1] %vm1727, 0.0
  %1744 = vrot.lane.b32.xlu0 %v1158, 64
  %v1745 = vpop.permute.xlu0 %1744
  %1746 = vrot.lane.b32.xlu0 %v1159, 64
  %v1747 = vpop.permute.xlu0 %1746
  %1748 = vrot.lane.b32.xlu0 %v1160, 64
  %v1749 = vpop.permute.xlu0 %1748
  %1750 = vrot.lane.b32.xlu0 %v1161, 64
  %v1751 = vpop.permute.xlu0 %1750
  %1752 = vrot.lane.b32.xlu0 %v1162, 64
  %v1753 = vpop.permute.xlu0 %1752
  %1754 = vrot.lane.b32.xlu0 %v1163, 64
  %v1755 = vpop.permute.xlu0 %1754
  %1756 = vrot.lane.b32.xlu0 %v1164, 64
  %v1757 = vpop.permute.xlu0 %1756
  %1758 = vrot.lane.b32.xlu0 %v1166, 64
  %v1759 = vpop.permute.xlu0 %1758
  %1760 = vrot.lane.b32.xlu0 %v1167, 64
  %v1761 = vpop.permute.xlu0 %1760
  %1762 = vrot.lane.b32.xlu0 %v1168, 64
  %v1763 = vpop.permute.xlu0 %1762
  %1764 = vrot.lane.b32.xlu0 %v1169, 64
  %v1765 = vpop.permute.xlu0 %1764
  %1766 = vrot.lane.b32.xlu0 %v1170, 64
  %v1767 = vpop.permute.xlu0 %1766
  %1768 = vrot.lane.b32.xlu0 %v1171, 64
  %v1769 = vpop.permute.xlu0 %1768
  %1770 = vrot.lane.b32.xlu0 %v1172, 64
  %v1771 = vpop.permute.xlu0 %1770
  %vm1786 = vcmask 589313
  %1787 = vst.msk [vmem:[#allocation2 - $0x1] sm:$0xfe] %vm1786, %v1745
  %1788 = vst.msk [vmem:[#allocation2 + $0x7] sm:$0xfe] %vm1786, %v1747
  %1789 = vst.msk [vmem:[#allocation2 + $0xf] sm:$0xfe] %vm1786, %v1749
  %1790 = vst.msk [vmem:[#allocation2 + $0x17] sm:$0xfe] %vm1786, %v1751
  %1791 = vst.msk [vmem:[#allocation2 + $0x1f] sm:$0xfe] %vm1786, %v1753
  %1792 = vst.msk [vmem:[#allocation2 + $0x27] sm:$0xfe] %vm1786, %v1755
  %1793 = vst.msk [vmem:[#allocation2 + $0x2f] sm:$0xfe] %vm1786, %v1757
  %1794 = vst.msk [vmem:[#allocation2 + $0x3f] sm:$0xfe] %vm1786, %v1759
  %1795 = vst.msk [vmem:[#allocation2 + $0x47] sm:$0xfe] %vm1786, %v1761
  %1796 = vst.msk [vmem:[#allocation2 + $0x4f] sm:$0xfe] %vm1786, %v1763
  %1797 = vst.msk [vmem:[#allocation2 + $0x57] sm:$0xfe] %vm1786, %v1765
  %1798 = vst.msk [vmem:[#allocation2 + $0x5f] sm:$0xfe] %vm1786, %v1767
  %1799 = vst.msk [vmem:[#allocation2 + $0x67] sm:$0xfe] %vm1786, %v1769
  %1800 = vst.msk [vmem:[#allocation2 + $0x6f] sm:$0xfe] %vm1786, %v1771
  %v1801 = vld [vmem:[#allocation2] sm:$0xff]
  %v1802 = vld [vmem:[#allocation2 + $0x8] sm:$0xff]
  %v1803 = vld [vmem:[#allocation2 + $0x10] sm:$0xff]
  %v1804 = vld [vmem:[#allocation2 + $0x18] sm:$0xff]
  %v1805 = vld [vmem:[#allocation2 + $0x20] sm:$0xff]
  %v1806 = vld [vmem:[#allocation2 + $0x28] sm:$0xff]
  %v1807 = vld [vmem:[#allocation2 + $0x30] sm:$0xff]
  %v1808 = vld [vmem:[#allocation2 + $0x38] sm:$0xff]
  %v1809 = vld [vmem:[#allocation2 + $0x40] sm:$0xff]
  %v1810 = vld [vmem:[#allocation2 + $0x48] sm:$0xff]
  %v1811 = vld [vmem:[#allocation2 + $0x50] sm:$0xff]
  %v1812 = vld [vmem:[#allocation2 + $0x58] sm:$0xff]
  %v1813 = vld [vmem:[#allocation2 + $0x60] sm:$0xff]
  %v1814 = vld [vmem:[#allocation2 + $0x68] sm:$0xff]
  %v1815 = vld [vmem:[#allocation2 + $0x70] sm:$0xff]
  %v1816 = vld [vmem:[#allocation2 + $0x78] sm:$0xff]
  %v1817 = vpack.c.bf16 %v1802, %v1801
  %v1818 = vpack.c.bf16 %v1804, %v1803
  %v1819 = vpack.c.bf16 %v1806, %v1805
  %v1820 = vpack.c.bf16 %v1808, %v1807
  %v1821 = vpack.c.bf16 %v1810, %v1809
  %v1822 = vpack.c.bf16 %v1812, %v1811
  %v1823 = vpack.c.bf16 %v1814, %v1813
  %v1824 = vpack.c.bf16 %v1816, %v1815
  %v1825 = vld [vmem:[%s2] sm:$0xf]
  %v1826 = vld [vmem:[%s2 + $0x4] sm:$0xf]
  %v1827 = vld [vmem:[%s2 + $0x8] sm:$0xf]
  %v1828 = vld [vmem:[%s2 + $0xc] sm:$0xf]
  %v1829 = vld [vmem:[%s2 + $0x10] sm:$0xf]
  %v1830 = vld [vmem:[%s2 + $0x14] sm:$0xf]
  %v1831 = vld [vmem:[%s2 + $0x18] sm:$0xf]
  %v1832 = vld [vmem:[%s2 + $0x1c] sm:$0xf]
  %v1833 = vld [vmem:[%s2 + $0x20] sm:$0xf]
  %v1843 = vunpack.c.l.b16 %v1825
  %v1844 = vunpack.c.l.b16 %v1826
  %v1845 = vunpack.c.l.b16 %v1827
  %v1846 = vunpack.c.l.b16 %v1828
  %v1847 = vunpack.c.l.b16 %v1829
  %v1848 = vunpack.c.l.b16 %v1830
  %v1849 = vunpack.c.l.b16 %v1831
  %v1850 = vunpack.c.l.b16 %v1832
  %v1851 = vunpack.c.l.b16 %v1833
  %v1852 = vpack.c.b16 %v1844, %v1843
  %v1853 = vpack.c.b16 %v1846, %v1845
  %v1854 = vpack.c.b16 %v1848, %v1847
  %v1855 = vpack.c.b16 %v1850, %v1849
  %v1856 = vpack.c.b16 %v1851, %v1851
  %vm1861 = vcmask 588800
  %v1863 = vsel %vm1861, %v1817, 0
  %v1866 = vsel %vm1861, %v1818, 0
  %v1869 = vsel %vm1861, %v1819, 0
  %v1872 = vsel %vm1861, %v1820, 0
  %v1875 = vsel %vm1861, %v1821, 0
  %v1878 = vsel %vm1861, %v1822, 0
  %v1881 = vsel %vm1861, %v1823, 0
  %v1884 = vsel %vm1861, %v1824, 0
  %vm1886 = vcmask 1043456
  %v1888 = vsel %vm1886, %v1856, 0
  %1890 = vmatprep.subr.bf16.mxu0 0
  %1891 = vmatpush1.bf16.msra.mxu0 %v1852
  %1892 = vmatprep.subr.bf16.mxu0 0
  %1893 = vmatpush1.bf16.msra.mxu0 %v1853
  %1894 = vmatprep.subr.bf16.mxu0 0
  %1895 = vmatpush1.bf16.msra.mxu0 %v1854
  %1896 = vmatprep.subr.bf16.mxu0 0
  %1897 = vmatpush1.bf16.msra.mxu0 %v1855
  %1898 = vmatprep.subr.bf16.mxu0 0
  %1899 = vmatpush1.bf16.msra.mxu0 %v1888
  %1900 = vmatprep.subr.bf16.mxu0 0
  %1901 = vmatpush1.bf16.msra.mxu0 0
  %1902 = vmatprep.subr.bf16.mxu0 0
  %1903 = vmatpush1.bf16.msra.mxu0 0
  %1904 = vmatprep.subr.bf16.mxu0 0
  %1905 = vmatpush1.bf16.msra.mxu0 0
  %1906 = vmatprep.subr.bf16.mxu0 0
  %1907 = vmatpush1.bf16.msra.mxu0 0
  %1908 = vmatprep.subr.bf16.mxu0 0
  %1909 = vmatpush1.bf16.msra.mxu0 0
  %1910 = vmatprep.subr.bf16.mxu0 0
  %1911 = vmatpush1.bf16.msra.mxu0 0
  %1912 = vmatprep.subr.bf16.mxu0 0
  %1913 = vmatpush1.bf16.msra.mxu0 0
  %1914 = vmatprep.subr.bf16.mxu0 0
  %1915 = vmatpush1.bf16.msra.mxu0 0
  %1916 = vmatprep.subr.bf16.mxu0 0
  %1917 = vmatpush1.bf16.msra.mxu0 0
  %1918 = vmatprep.subr.bf16.mxu0 0
  %1919 = vmatpush1.bf16.msra.mxu0 0
  %1920 = vmatprep.subr.bf16.mxu0 0
  %1921 = vmatpush1.bf16.msra.mxu0 0
  %1922 = vmatprep.mubr.bf16.mxu0 0
  %1923 = vmatmul.mubr.bf16.gmra.mrb[0].mxu0 %v1863
  %v1924 = vpop.f32.mrb[0].mxu0
  %v1925 = vadd.f32 0.0, %v1924
  %v1926 = vpop.f32.mrb[0].mxu0
  %v1927 = vpop.f32.mrb[0].mxu0
  %v1928 = vadd.f32 0.0, %v1927
  %v1929 = vpop.f32.mrb[0].mxu0
  %1930 = vmatprep.mubr.bf16.mxu0 0
  %1931 = vmatmul.mubr.bf16.gmra.mrb[0].mxu0 %v1866
  %v1932 = vpop.f32.mrb[0].mxu0
  %v1933 = vadd.f32 0.0, %v1932
  %v1934 = vpop.f32.mrb[0].mxu0
  %v1935 = vpop.f32.mrb[0].mxu0
  %v1936 = vadd.f32 0.0, %v1935
  %v1937 = vpop.f32.mrb[0].mxu0
  %1938 = vmatprep.mubr.bf16.mxu0 0
  %1939 = vmatmul.mubr.bf16.gmra.mrb[0].mxu0 %v1869
  %v1940 = vpop.f32.mrb[0].mxu0
  %v1941 = vadd.f32 0.0, %v1940
  %v1942 = vpop.f32.mrb[0].mxu0
  %v1943 = vpop.f32.mrb[0].mxu0
  %v1944 = vadd.f32 0.0, %v1943
  %v1945 = vpop.f32.mrb[0].mxu0
  %1946 = vmatprep.mubr.bf16.mxu0 0
  %1947 = vmatmul.mubr.bf16.gmra.mrb[0].mxu0 %v1872
  %v1948 = vpop.f32.mrb[0].mxu0
  %v1949 = vadd.f32 0.0, %v1948
  %v1950 = vpop.f32.mrb[0].mxu0
  %v1951 = vpop.f32.mrb[0].mxu0
  %v1952 = vadd.f32 0.0, %v1951
  %v1953 = vpop.f32.mrb[0].mxu0
  %1954 = vmatprep.mubr.bf16.mxu0 0
  %1955 = vmatmul.mubr.bf16.gmra.mrb[0].mxu0 %v1875
  %v1956 = vpop.f32.mrb[0].mxu0
  %v1957 = vadd.f32 0.0, %v1956
  %v1958 = vpop.f32.mrb[0].mxu0
  %v1959 = vpop.f32.mrb[0].mxu0
  %v1960 = vadd.f32 0.0, %v1959
  %v1961 = vpop.f32.mrb[0].mxu0
  %1962 = vmatprep.mubr.bf16.mxu0 0
  %1963 = vmatmul.mubr.bf16.gmra.mrb[0].mxu0 %v1878
  %v1964 = vpop.f32.mrb[0].mxu0
  %v1965 = vadd.f32 0.0, %v1964
  %v1966 = vpop.f32.mrb[0].mxu0
  %v1967 = vpop.f32.mrb[0].mxu0
  %v1968 = vadd.f32 0.0, %v1967
  %v1969 = vpop.f32.mrb[0].mxu0
  %1970 = vmatprep.mubr.bf16.mxu0 0
  %1971 = vmatmul.mubr.bf16.gmra.mrb[0].mxu0 %v1881
  %v1972 = vpop.f32.mrb[0].mxu0
  %v1973 = vadd.f32 0.0, %v1972
  %v1974 = vpop.f32.mrb[0].mxu0
  %v1975 = vpop.f32.mrb[0].mxu0
  %v1976 = vadd.f32 0.0, %v1975
  %v1977 = vpop.f32.mrb[0].mxu0
  %1978 = vmatprep.mubr.bf16.mxu0 0
  %1979 = vmatmul.mubr.bf16.gmra.mrb[0].mxu0 %v1884
  %v1980 = vpop.f32.mrb[0].mxu0
  %v1981 = vadd.f32 0.0, %v1980
  %v1982 = vpop.f32.mrb[0].mxu0
  %v1983 = vpop.f32.mrb[0].mxu0
  %v1984 = vadd.f32 0.0, %v1983
  %v1985 = vpop.f32.mrb[0].mxu0
  %1986 = vdwg.mxu0
  %v1987 = vsel %vm1027, %v1925, 0.0
  %v1988 = vsel %vm1027, %v1928, 0.0
  %v1989 = vadd.f32 %v1987, %v1988
  %v1990 = vsel %vm1027, %v1933, 0.0
  %v1991 = vadd.f32 %v1989, %v1990
  %v1992 = vsel %vm1027, %v1936, 0.0
  %v1993 = vadd.f32 %v1991, %v1992
  %v1994 = vsel %vm1027, %v1941, 0.0
  %v1995 = vadd.f32 %v1993, %v1994
  %v1996 = vsel %vm1027, %v1944, 0.0
  %v1997 = vadd.f32 %v1995, %v1996
  %v1998 = vsel %vm1027, %v1949, 0.0
  %v1999 = vadd.f32 %v1997, %v1998
  %v2000 = vsel %vm1027, %v1952, 0.0
  %v2001 = vadd.f32 %v1999, %v2000
  %v2002 = vsel %vm1027, %v1957, 0.0
  %v2003 = vadd.f32 %v2001, %v2002
  %v2004 = vsel %vm1027, %v1960, 0.0
  %v2005 = vadd.f32 %v2003, %v2004
  %v2006 = vsel %vm1027, %v1965, 0.0
  %v2007 = vadd.f32 %v2005, %v2006
  %v2008 = vsel %vm1027, %v1968, 0.0
  %v2009 = vadd.f32 %v2007, %v2008
  %v2010 = vsel %vm1027, %v1973, 0.0
  %v2011 = vadd.f32 %v2009, %v2010
  %v2012 = vsel %vm1027, %v1976, 0.0
  %v2013 = vadd.f32 %v2011, %v2012
  %v2014 = vsel %vm1027, %v1981, 0.0
  %v2015 = vadd.f32 %v2013, %v2014
  %v2016 = vsel %vm1027, %v1984, 0.0
  %v2017 = vadd.f32 %v2015, %v2016
  %v2018 = vrot.slane %v2017, 4
  %v2019 = vadd.f32 %v2017, %v2018
  %v2020 = vrot.slane %v2019, 2
  %v2021 = vadd.f32 %v2019, %v2020
  %v2022 = vrot.slane %v2021, 1
  %v2023 = vadd.f32 %v2021, %v2022
  %v2024 = vmul.f32 %v2023, %v1065
  %v2025 = vmul.f32 %v1925, %v1925
  %v2026 = vmul.f32 %v1928, %v1928
  %v2027 = vmul.f32 %v1933, %v1933
  %v2028 = vmul.f32 %v1936, %v1936
  %v2029 = vmul.f32 %v1941, %v1941
  %v2030 = vmul.f32 %v1944, %v1944
  %v2031 = vmul.f32 %v1949, %v1949
  %v2032 = vmul.f32 %v1952, %v1952
  %v2033 = vmul.f32 %v1957, %v1957
  %v2034 = vmul.f32 %v1960, %v1960
  %v2035 = vmul.f32 %v1965, %v1965
  %v2036 = vmul.f32 %v1968, %v1968
  %v2037 = vmul.f32 %v1973, %v1973
  %v2038 = vmul.f32 %v1976, %v1976
  %v2039 = vmul.f32 %v1981, %v1981
  %v2040 = vmul.f32 %v1984, %v1984
  %v2041 = vsel %vm1027, %v2025, 0.0
  %v2042 = vsel %vm1027, %v2026, 0.0
  %v2043 = vadd.f32 %v2041, %v2042
  %v2044 = vsel %vm1027, %v2027, 0.0
  %v2045 = vadd.f32 %v2043, %v2044
  %v2046 = vsel %vm1027, %v2028, 0.0
  %v2047 = vadd.f32 %v2045, %v2046
  %v2048 = vsel %vm1027, %v2029, 0.0
  %v2049 = vadd.f32 %v2047, %v2048
  %v2050 = vsel %vm1027, %v2030, 0.0
  %v2051 = vadd.f32 %v2049, %v2050
  %v2052 = vsel %vm1027, %v2031, 0.0
  %v2053 = vadd.f32 %v2051, %v2052
  %v2054 = vsel %vm1027, %v2032, 0.0
  %v2055 = vadd.f32 %v2053, %v2054
  %v2056 = vsel %vm1027, %v2033, 0.0
  %v2057 = vadd.f32 %v2055, %v2056
  %v2058 = vsel %vm1027, %v2034, 0.0
  %v2059 = vadd.f32 %v2057, %v2058
  %v2060 = vsel %vm1027, %v2035, 0.0
  %v2061 = vadd.f32 %v2059, %v2060
  %v2062 = vsel %vm1027, %v2036, 0.0
  %v2063 = vadd.f32 %v2061, %v2062
  %v2064 = vsel %vm1027, %v2037, 0.0
  %v2065 = vadd.f32 %v2063, %v2064
  %v2066 = vsel %vm1027, %v2038, 0.0
  %v2067 = vadd.f32 %v2065, %v2066
  %v2068 = vsel %vm1027, %v2039, 0.0
  %v2069 = vadd.f32 %v2067, %v2068
  %v2070 = vsel %vm1027, %v2040, 0.0
  %v2071 = vadd.f32 %v2069, %v2070
  %v2072 = vrot.slane %v2071, 4
  %v2073 = vadd.f32 %v2071, %v2072
  %v2074 = vrot.slane %v2073, 2
  %v2075 = vadd.f32 %v2073, %v2074
  %v2076 = vrot.slane %v2075, 1
  %v2077 = vadd.f32 %v2075, %v2076
  %v2078 = vmul.f32 %v2077, %v1065
  %v2079 = vmul.f32 %v2024, %v2024
  %v2080 = vsub.f32 %v2078, %v2079
  %v2081 = vsub.f32 %v1925, %v2024
  %v2082 = vsub.f32 %v1928, %v2024
  %v2083 = vsub.f32 %v1933, %v2024
  %v2084 = vsub.f32 %v1936, %v2024
  %v2085 = vsub.f32 %v1941, %v2024
  %v2086 = vsub.f32 %v1944, %v2024
  %v2087 = vsub.f32 %v1949, %v2024
  %v2088 = vsub.f32 %v1952, %v2024
  %v2089 = vsub.f32 %v1957, %v2024
  %v2090 = vsub.f32 %v1960, %v2024
  %v2091 = vsub.f32 %v1965, %v2024
  %v2092 = vsub.f32 %v1968, %v2024
  %v2093 = vsub.f32 %v1973, %v2024
  %v2094 = vsub.f32 %v1976, %v2024
  %v2095 = vsub.f32 %v1981, %v2024
  %v2096 = vsub.f32 %v1984, %v2024
  %v2097 = vadd.f32 %v2080, 1e-05
  %v2098 = vrsqrt.pop %v2097
  %v2099 = vmul.f32 %v2081, %v2098
  %v2100 = vmul.f32 %v2082, %v2098
  %v2101 = vmul.f32 %v2083, %v2098
  %v2102 = vmul.f32 %v2084, %v2098
  %v2103 = vmul.f32 %v2085, %v2098
  %v2104 = vmul.f32 %v2086, %v2098
  %v2105 = vmul.f32 %v2087, %v2098
  %v2106 = vmul.f32 %v2088, %v2098
  %v2107 = vmul.f32 %v2089, %v2098
  %v2108 = vmul.f32 %v2090, %v2098
  %v2109 = vmul.f32 %v2091, %v2098
  %v2110 = vmul.f32 %v2092, %v2098
  %v2111 = vmul.f32 %v2093, %v2098
  %v2112 = vmul.f32 %v2094, %v2098
  %v2113 = vmul.f32 %v2095, %v2098
  %v2114 = vmul.f32 %v2096, %v2098
  %v2115 = vmax.f32 %v2099, 0.0
  %v2116 = vmax.f32 %v2100, 0.0
  %v2117 = vmax.f32 %v2101, 0.0
  %v2118 = vmax.f32 %v2102, 0.0
  %v2119 = vmax.f32 %v2103, 0.0
  %v2120 = vmax.f32 %v2104, 0.0
  %v2121 = vmax.f32 %v2105, 0.0
  %v2122 = vmax.f32 %v2106, 0.0
  %v2123 = vmax.f32 %v2107, 0.0
  %v2124 = vmax.f32 %v2108, 0.0
  %v2125 = vmax.f32 %v2109, 0.0
  %v2126 = vmax.f32 %v2110, 0.0
  %v2127 = vmax.f32 %v2111, 0.0
  %v2128 = vmax.f32 %v2112, 0.0
  %v2129 = vmax.f32 %v2113, 0.0
  %v2130 = vmax.f32 %v2114, 0.0
  %v2131 = vpack.c.bf16 %v184, %v181
  %v2132 = vpack.c.bf16 %v190, %v187
  %v2133 = vpack.c.bf16 %v196, %v193
  %v2134 = vpack.c.bf16 %v202, %v199
  %v2135 = vpack.c.bf16 %v208, %v205
  %v2136 = vpack.c.bf16 %v214, %v211
  %v2137 = vpack.c.bf16 %v220, %v217
  %v2138 = vpack.c.bf16 %v226, %v223
  %v2139 = vld [vmem:[%s3] sm:$0x3]
  %v2141 = vsel %vm82, %v2131, 0
  %v2144 = vsel %vm82, %v2132, 0
  %v2147 = vsel %vm82, %v2133, 0
  %v2150 = vsel %vm82, %v2134, 0
  %v2153 = vsel %vm82, %v2135, 0
  %v2156 = vsel %vm82, %v2136, 0
  %v2159 = vsel %vm82, %v2137, 0
  %v2162 = vsel %vm82, %v2138, 0
  %v2165 = vsel %vm926, %v2139, 0
  %2167 = vmatprep.subr.bf16.mxu0 0
  %2168 = vmatpush1.bf16.msra.mxu0 %v2165
  %2169 = vmatprep.subr.bf16.mxu0 0
  %2170 = vmatpush1.bf16.msra.mxu0 0
  %2171 = vmatprep.subr.bf16.mxu0 0
  %2172 = vmatpush1.bf16.msra.mxu0 0
  %2173 = vmatprep.subr.bf16.mxu0 0
  %2174 = vmatpush1.bf16.msra.mxu0 0
  %2175 = vmatprep.subr.bf16.mxu0 0
  %2176 = vmatpush1.bf16.msra.mxu0 0
  %2177 = vmatprep.subr.bf16.mxu0 0
  %2178 = vmatpush1.bf16.msra.mxu0 0
  %2179 = vmatprep.subr.bf16.mxu0 0
  %2180 = vmatpush1.bf16.msra.mxu0 0
  %2181 = vmatprep.subr.bf16.mxu0 0
  %2182 = vmatpush1.bf16.msra.mxu0 0
  %2183 = vmatprep.subr.bf16.mxu0 0
  %2184 = vmatpush1.bf16.msra.mxu0 0
  %2185 = vmatprep.subr.bf16.mxu0 0
  %2186 = vmatpush1.bf16.msra.mxu0 0
  %2187 = vmatprep.subr.bf16.mxu0 0
  %2188 = vmatpush1.bf16.msra.mxu0 0
  %2189 = vmatprep.subr.bf16.mxu0 0
  %2190 = vmatpush1.bf16.msra.mxu0 0
  %2191 = vmatprep.subr.bf16.mxu0 0
  %2192 = vmatpush1.bf16.msra.mxu0 0
  %2193 = vmatprep.subr.bf16.mxu0 0
  %2194 = vmatpush1.bf16.msra.mxu0 0
  %2195 = vmatprep.subr.bf16.mxu0 0
  %2196 = vmatpush1.bf16.msra.mxu0 0
  %2197 = vmatprep.subr.bf16.mxu0 0
  %2198 = vmatpush1.bf16.msra.mxu0 0
  %2199 = vmatprep.mubr.bf16.mxu0 0
  %2200 = vmatmul.mubr.bf16.gmra.mrb[0].mxu0 %v2141
  %v2201 = vpop.f32.mrb[0].mxu0
  %v2202 = vadd.f32 0.0, %v2201
  %v2203 = vpop.f32.mrb[0].mxu0
  %v2204 = vpop.f32.mrb[0].mxu0
  %v2205 = vadd.f32 0.0, %v2204
  %v2206 = vpop.f32.mrb[0].mxu0
  %2207 = vmatprep.mubr.bf16.mxu0 0
  %2208 = vmatmul.mubr.bf16.gmra.mrb[0].mxu0 %v2144
  %v2209 = vpop.f32.mrb[0].mxu0
  %v2210 = vadd.f32 0.0, %v2209
  %v2211 = vpop.f32.mrb[0].mxu0
  %v2212 = vpop.f32.mrb[0].mxu0
  %v2213 = vadd.f32 0.0, %v2212
  %v2214 = vpop.f32.mrb[0].mxu0
  %2215 = vmatprep.mubr.bf16.mxu0 0
  %2216 = vmatmul.mubr.bf16.gmra.mrb[0].mxu0 %v2147
  %v2217 = vpop.f32.mrb[0].mxu0
  %v2218 = vadd.f32 0.0, %v2217
  %v2219 = vpop.f32.mrb[0].mxu0
  %v2220 = vpop.f32.mrb[0].mxu0
  %v2221 = vadd.f32 0.0, %v2220
  %v2222 = vpop.f32.mrb[0].mxu0
  %2223 = vmatprep.mubr.bf16.mxu0 0
  %2224 = vmatmul.mubr.bf16.gmra.mrb[0].mxu0 %v2150
  %v2225 = vpop.f32.mrb[0].mxu0
  %v2226 = vadd.f32 0.0, %v2225
  %v2227 = vpop.f32.mrb[0].mxu0
  %v2228 = vpop.f32.mrb[0].mxu0
  %v2229 = vadd.f32 0.0, %v2228
  %v2230 = vpop.f32.mrb[0].mxu0
  %2231 = vmatprep.mubr.bf16.mxu0 0
  %2232 = vmatmul.mubr.bf16.gmra.mrb[0].mxu0 %v2153
  %v2233 = vpop.f32.mrb[0].mxu0
  %v2234 = vadd.f32 0.0, %v2233
  %v2235 = vpop.f32.mrb[0].mxu0
  %v2236 = vpop.f32.mrb[0].mxu0
  %v2237 = vadd.f32 0.0, %v2236
  %v2238 = vpop.f32.mrb[0].mxu0
  %2239 = vmatprep.mubr.bf16.mxu0 0
  %2240 = vmatmul.mubr.bf16.gmra.mrb[0].mxu0 %v2156
  %v2241 = vpop.f32.mrb[0].mxu0
  %v2242 = vadd.f32 0.0, %v2241
  %v2243 = vpop.f32.mrb[0].mxu0
  %v2244 = vpop.f32.mrb[0].mxu0
  %v2245 = vadd.f32 0.0, %v2244
  %v2246 = vpop.f32.mrb[0].mxu0
  %2247 = vmatprep.mubr.bf16.mxu0 0
  %2248 = vmatmul.mubr.bf16.gmra.mrb[0].mxu0 %v2159
  %v2249 = vpop.f32.mrb[0].mxu0
  %v2250 = vadd.f32 0.0, %v2249
  %v2251 = vpop.f32.mrb[0].mxu0
  %v2252 = vpop.f32.mrb[0].mxu0
  %v2253 = vadd.f32 0.0, %v2252
  %v2254 = vpop.f32.mrb[0].mxu0
  %2255 = vmatprep.mubr.bf16.mxu0 0
  %2256 = vmatmul.mubr.bf16.gmra.mrb[0].mxu0 %v2162
  %v2257 = vpop.f32.mrb[0].mxu0
  %v2258 = vadd.f32 0.0, %v2257
  %v2259 = vpop.f32.mrb[0].mxu0
  %v2260 = vpop.f32.mrb[0].mxu0
  %v2261 = vadd.f32 0.0, %v2260
  %v2262 = vpop.f32.mrb[0].mxu0
  %2263 = vdwg.mxu0
  %v2264 = vsel %vm1027, %v2202, 0.0
  %v2265 = vsel %vm1027, %v2205, 0.0
  %v2266 = vadd.f32 %v2264, %v2265
  %v2267 = vsel %vm1027, %v2210, 0.0
  %v2268 = vadd.f32 %v2266, %v2267
  %v2269 = vsel %vm1027, %v2213, 0.0
  %v2270 = vadd.f32 %v2268, %v2269
  %v2271 = vsel %vm1027, %v2218, 0.0
  %v2272 = vadd.f32 %v2270, %v2271
  %v2273 = vsel %vm1027, %v2221, 0.0
  %v2274 = vadd.f32 %v2272, %v2273
  %v2275 = vsel %vm1027, %v2226, 0.0
  %v2276 = vadd.f32 %v2274, %v2275
  %v2277 = vsel %vm1027, %v2229, 0.0
  %v2278 = vadd.f32 %v2276, %v2277
  %v2279 = vsel %vm1027, %v2234, 0.0
  %v2280 = vadd.f32 %v2278, %v2279
  %v2281 = vsel %vm1027, %v2237, 0.0
  %v2282 = vadd.f32 %v2280, %v2281
  %v2283 = vsel %vm1027, %v2242, 0.0
  %v2284 = vadd.f32 %v2282, %v2283
  %v2285 = vsel %vm1027, %v2245, 0.0
  %v2286 = vadd.f32 %v2284, %v2285
  %v2287 = vsel %vm1027, %v2250, 0.0
  %v2288 = vadd.f32 %v2286, %v2287
  %v2289 = vsel %vm1027, %v2253, 0.0
  %v2290 = vadd.f32 %v2288, %v2289
  %v2291 = vsel %vm1027, %v2258, 0.0
  %v2292 = vadd.f32 %v2290, %v2291
  %v2293 = vsel %vm1027, %v2261, 0.0
  %v2294 = vadd.f32 %v2292, %v2293
  %v2295 = vrot.slane %v2294, 4
  %v2296 = vadd.f32 %v2294, %v2295
  %v2297 = vrot.slane %v2296, 2
  %v2298 = vadd.f32 %v2296, %v2297
  %v2299 = vrot.slane %v2298, 1
  %v2300 = vadd.f32 %v2298, %v2299
  %v2301 = vmul.f32 %v2300, %v1065
  %v2302 = vmul.f32 %v2202, %v2202
  %v2303 = vmul.f32 %v2205, %v2205
  %v2304 = vmul.f32 %v2210, %v2210
  %v2305 = vmul.f32 %v2213, %v2213
  %v2306 = vmul.f32 %v2218, %v2218
  %v2307 = vmul.f32 %v2221, %v2221
  %v2308 = vmul.f32 %v2226, %v2226
  %v2309 = vmul.f32 %v2229, %v2229
  %v2310 = vmul.f32 %v2234, %v2234
  %v2311 = vmul.f32 %v2237, %v2237
  %v2312 = vmul.f32 %v2242, %v2242
  %v2313 = vmul.f32 %v2245, %v2245
  %v2314 = vmul.f32 %v2250, %v2250
  %v2315 = vmul.f32 %v2253, %v2253
  %v2316 = vmul.f32 %v2258, %v2258
  %v2317 = vmul.f32 %v2261, %v2261
  %v2318 = vsel %vm1027, %v2302, 0.0
  %v2319 = vsel %vm1027, %v2303, 0.0
  %v2320 = vadd.f32 %v2318, %v2319
  %v2321 = vsel %vm1027, %v2304, 0.0
  %v2322 = vadd.f32 %v2320, %v2321
  %v2323 = vsel %vm1027, %v2305, 0.0
  %v2324 = vadd.f32 %v2322, %v2323
  %v2325 = vsel %vm1027, %v2306, 0.0
  %v2326 = vadd.f32 %v2324, %v2325
  %v2327 = vsel %vm1027, %v2307, 0.0
  %v2328 = vadd.f32 %v2326, %v2327
  %v2329 = vsel %vm1027, %v2308, 0.0
  %v2330 = vadd.f32 %v2328, %v2329
  %v2331 = vsel %vm1027, %v2309, 0.0
  %v2332 = vadd.f32 %v2330, %v2331
  %v2333 = vsel %vm1027, %v2310, 0.0
  %v2334 = vadd.f32 %v2332, %v2333
  %v2335 = vsel %vm1027, %v2311, 0.0
  %v2336 = vadd.f32 %v2334, %v2335
  %v2337 = vsel %vm1027, %v2312, 0.0
  %v2338 = vadd.f32 %v2336, %v2337
  %v2339 = vsel %vm1027, %v2313, 0.0
  %v2340 = vadd.f32 %v2338, %v2339
  %v2341 = vsel %vm1027, %v2314, 0.0
  %v2342 = vadd.f32 %v2340, %v2341
  %v2343 = vsel %vm1027, %v2315, 0.0
  %v2344 = vadd.f32 %v2342, %v2343
  %v2345 = vsel %vm1027, %v2316, 0.0
  %v2346 = vadd.f32 %v2344, %v2345
  %v2347 = vsel %vm1027, %v2317, 0.0
  %v2348 = vadd.f32 %v2346, %v2347
  %v2349 = vrot.slane %v2348, 4
  %v2350 = vadd.f32 %v2348, %v2349
  %v2351 = vrot.slane %v2350, 2
  %v2352 = vadd.f32 %v2350, %v2351
  %v2353 = vrot.slane %v2352, 1
  %v2354 = vadd.f32 %v2352, %v2353
  %v2355 = vmul.f32 %v2354, %v1065
  %v2356 = vmul.f32 %v2301, %v2301
  %v2357 = vsub.f32 %v2355, %v2356
  %v2358 = vsub.f32 %v2202, %v2301
  %v2359 = vsub.f32 %v2205, %v2301
  %v2360 = vsub.f32 %v2210, %v2301
  %v2361 = vsub.f32 %v2213, %v2301
  %v2362 = vsub.f32 %v2218, %v2301
  %v2363 = vsub.f32 %v2221, %v2301
  %v2364 = vsub.f32 %v2226, %v2301
  %v2365 = vsub.f32 %v2229, %v2301
  %v2366 = vsub.f32 %v2234, %v2301
  %v2367 = vsub.f32 %v2237, %v2301
  %v2368 = vsub.f32 %v2242, %v2301
  %v2369 = vsub.f32 %v2245, %v2301
  %v2370 = vsub.f32 %v2250, %v2301
  %v2371 = vsub.f32 %v2253, %v2301
  %v2372 = vsub.f32 %v2258, %v2301
  %v2373 = vsub.f32 %v2261, %v2301
  %v2374 = vadd.f32 %v2357, 1e-05
  %v2375 = vrsqrt.pop %v2374
  %v2376 = vmul.f32 %v2358, %v2375
  %v2377 = vmul.f32 %v2359, %v2375
  %v2378 = vmul.f32 %v2360, %v2375
  %v2379 = vmul.f32 %v2361, %v2375
  %v2380 = vmul.f32 %v2362, %v2375
  %v2381 = vmul.f32 %v2363, %v2375
  %v2382 = vmul.f32 %v2364, %v2375
  %v2383 = vmul.f32 %v2365, %v2375
  %v2384 = vmul.f32 %v2366, %v2375
  %v2385 = vmul.f32 %v2367, %v2375
  %v2386 = vmul.f32 %v2368, %v2375
  %v2387 = vmul.f32 %v2369, %v2375
  %v2388 = vmul.f32 %v2370, %v2375
  %v2389 = vmul.f32 %v2371, %v2375
  %v2390 = vmul.f32 %v2372, %v2375
  %v2391 = vmul.f32 %v2373, %v2375
  %v2392 = vadd.f32 %v2115, %v2376
  %v2393 = vadd.f32 %v2116, %v2377
  %v2394 = vadd.f32 %v2117, %v2378
  %v2395 = vadd.f32 %v2118, %v2379
  %v2396 = vadd.f32 %v2119, %v2380
  %v2397 = vadd.f32 %v2120, %v2381
  %v2398 = vadd.f32 %v2121, %v2382
  %v2399 = vadd.f32 %v2122, %v2383
  %v2400 = vadd.f32 %v2123, %v2384
  %v2401 = vadd.f32 %v2124, %v2385
  %v2402 = vadd.f32 %v2125, %v2386
  %v2403 = vadd.f32 %v2126, %v2387
  %v2404 = vadd.f32 %v2127, %v2388
  %v2405 = vadd.f32 %v2128, %v2389
  %v2406 = vadd.f32 %v2129, %v2390
  %v2407 = vadd.f32 %v2130, %v2391
  %2408 = vst.msk [vmem:[%s4] sm:$0xff] %vm1027, %v2392
  %2409 = vst.msk [vmem:[%s4 + $0x8] sm:$0xff] %vm1027, %v2393
  %2410 = vst.msk [vmem:[%s4 + $0x10] sm:$0xff] %vm1027, %v2394
  %2411 = vst.msk [vmem:[%s4 + $0x18] sm:$0xff] %vm1027, %v2395
  %2412 = vst.msk [vmem:[%s4 + $0x20] sm:$0xff] %vm1027, %v2396
  %2413 = vst.msk [vmem:[%s4 + $0x28] sm:$0xff] %vm1027, %v2397
  %2414 = vst.msk [vmem:[%s4 + $0x30] sm:$0xff] %vm1027, %v2398
  %2415 = vst.msk [vmem:[%s4 + $0x38] sm:$0xff] %vm1027, %v2399
  %2416 = vst.msk [vmem:[%s4 + $0x40] sm:$0xff] %vm1027, %v2400
  %2417 = vst.msk [vmem:[%s4 + $0x48] sm:$0xff] %vm1027, %v2401
  %2418 = vst.msk [vmem:[%s4 + $0x50] sm:$0xff] %vm1027, %v2402
  %2419 = vst.msk [vmem:[%s4 + $0x58] sm:$0xff] %vm1027, %v2403
  %2420 = vst.msk [vmem:[%s4 + $0x60] sm:$0xff] %vm1027, %v2404
  %2421 = vst.msk [vmem:[%s4 + $0x68] sm:$0xff] %vm1027, %v2405
  %2422 = vst.msk [vmem:[%s4 + $0x70] sm:$0xff] %vm1027, %v2406
  %2423 = vst.msk [vmem:[%s4 + $0x78] sm:$0xff] %vm1027, %v2407
  // Predicated region
  $region18: #{tpu_custom_call.1} parent=0 // pred_check
    _
  $region19: #{tpu_custom_call.1} parent=0 // pred_check_branch
    %2425 = sbr.rel (0) target = $region21
  $region20: #{tpu_custom_call.1} parent=0 // pred_region
    _
  $region21: #{tpu_custom_call.1} parent=0 // pred_fallthru
    _
  // Predicated region
  $region22: #{tpu_custom_call.1} parent=0 // pred_check
    _
  $region23: #{tpu_custom_call.1} parent=0 // pred_check_branch
    %2427 = sbr.rel (0) target = $region25
  $region24: #{tpu_custom_call.1} parent=0 // pred_region
    _
  $region25: #{tpu_custom_call.1} parent=0 // pred_fallthru
    _

</llo_original>
